<compile_context>
chip_gen: v6e
topology: v6e:2x2x1
jax: 0.10.0
libtpu: 0.0.40
codegen_flags: <defaults>
</compile_context>

<pallas_src>
import functools

import numpy as np
import jax
import jax.numpy as jnp
from jax import lax
from jax.experimental import pallas as pl
from jax.experimental.pallas import tpu as pltpu


_TAP_OFFSETS = tuple((kh - 1, kw - 1) for kh in range(3) for kw in range(3))


def _make_taps(Hu, Wu):
    """Per-tap (flat lane shift, validity mask) for a 3x3 pad-1 conv on (C, Hu*Wu)."""
    n = Hu * Wu
    lane = lax.broadcasted_iota(jnp.int32, (1, n), 1)
    # p = lane // Wu, q = lane % Wu (computed via f32 to avoid vector integer division).
    p = jnp.floor((lane.astype(jnp.float32) + 0.5) * (1.0 / Wu)).astype(jnp.int32)
    q = lane - p * Wu
    taps = []
    for oh, ow in _TAP_OFFSETS:
        off = oh * Wu + ow
        if oh == 0 and ow == 0:
            taps.append((0, None))
            continue
        ph = p + oh
        qw = q + ow
        mask = (ph >= 0) & (ph < Hu) & (qw >= 0) & (qw < Wu)
        taps.append((off, mask))
    return taps


def _conv3x3_taps(x, w_taps_ref, taps):
    """3x3 'SAME' conv: x (Cin, N) NCHW-flat; w_taps_ref (9, Cout, Cin), tap t = kh*3+kw."""
    n = x.shape[1]
    cout = w_taps_ref.shape[1]
    acc = jnp.zeros((cout, n), jnp.float32)
    for t, (off, mask) in enumerate(taps):
        shifted = x if off == 0 else pltpu.roll(x, shift=(-off) % n, axis=1)
        if mask is not None:
            shifted = jnp.where(mask, shifted, 0.0)
        wt = w_taps_ref[t]                                   # (Cout, Cin)
        acc = acc + jnp.dot(wt, shifted.astype(wt.dtype),
                            preferred_element_type=jnp.float32)
    return acc


def _instance_norm(z, eps=1e-5):
    """Parameter-free InstanceNorm over the spatial (lane) axis. z: (C, N) f32."""
    mean = jnp.mean(z, axis=1, keepdims=True)
    zc = z - mean
    var = jnp.mean(zc * zc, axis=1, keepdims=True)
    return zc * lax.rsqrt(var + eps)


def _decode_block_kernel(x_ref, up_ref, w1_ref, w2_ref, w3_ref,
                         wc1_ref, wc2_ref, wsa_ref, o_ref, *, Hu, Wu):
    taps = _make_taps(Hu, Wu)

    # ---- bilinear x2 upsample: one f32 matmul with the precomputed kron matrix ----
    x = x_ref[0]                                                      # (Cin, H*W)
    u = jnp.dot(x, up_ref[...], preferred_element_type=jnp.float32)   # (Cin, Hu*Wu)

    # ---- branch 1: conv3x3_1 -> conv3x3_2 -> InstanceNorm -> ReLU ----
    h1 = _conv3x3_taps(u, w1_ref, taps)                               # (Cin,  Nu) f32
    z = _conv3x3_taps(h1, w2_ref, taps)                               # (Cout, Nu) f32
    y = jnp.maximum(_instance_norm(z), 0.0)

    # ---- CBAM channel attention: shared 1x1-conv MLP on global max/avg pools ----
    gmax = jnp.max(y, axis=1, keepdims=True)                          # (Cout, 1)
    gavg = jnp.mean(y, axis=1, keepdims=True)                         # (Cout, 1)
    wc1 = wc1_ref[...]                                                # (Cr, Cout)
    wc2 = wc2_ref[...]                                                # (Cout, Cr)

    def _fc(v):
        h = jnp.maximum(jnp.dot(wc1, v, preferred_element_type=jnp.float32), 0.0)
        return jnp.dot(wc2, h, preferred_element_type=jnp.float32)

    ca = jax.nn.sigmoid(_fc(gmax) + _fc(gavg))                        # (Cout, 1)
    x1 = y * ca                                                       # lane-broadcast

    # ---- CBAM spatial attention: [max_c, mean_c] -> 3x3 conv -> sigmoid ----
    smax = jnp.max(x1, axis=0, keepdims=True)                         # (1, Nu)
    smean = jnp.mean(x1, axis=0, keepdims=True)                       # (1, Nu)
    s = jnp.concatenate([smax, smean], axis=0)                        # (2, Nu)
    sa = jax.nn.sigmoid(_conv3x3_taps(s, wsa_ref, taps))              # (1, Nu)
    x2 = x1 * sa                                                      # sublane-broadcast

    # ---- branch 2: conv1x1 -> InstanceNorm -> ReLU on the upsampled input ----
    w3 = w3_ref[...]                                                  # (Cout, Cin)
    z2 = jnp.dot(w3, u.astype(w3.dtype), preferred_element_type=jnp.float32)
    b2 = jnp.maximum(_instance_norm(z2), 0.0)

    o_ref[0] = (x2 + b2).astype(o_ref.dtype)


# ----------------------------------------------------------------------------------
# Wrapper
# ----------------------------------------------------------------------------------
def _upsample_matrix_1d(n_in, n_out):
    """1-D PyTorch bilinear (align_corners=False) interpolation matrix (n_out, n_in)."""
    m = np.zeros((n_out, n_in), np.float32)
    scale = n_in / n_out
    for i in range(n_out):
        src = max((i + 0.5) * scale - 0.5, 0.0)
        i0 = min(int(np.floor(src)), n_in - 1)
        i1 = min(i0 + 1, n_in - 1)
        lam = src - i0
        m[i, i0] += 1.0 - lam
        m[i, i1] += lam
    return m


def make_upsample_matrix(H, W, do_upsample):
    if not do_upsample:
        return np.eye(H * W, dtype=np.float32), H, W
    Hu, Wu = 2 * H, 2 * W
    # up[p*Wu + q, h*W + w] = rowUp[p, h] * colUp[q, w]
    up = np.kron(_upsample_matrix_1d(H, Hu), _upsample_matrix_1d(W, Wu))
    return up.astype(np.float32), Hu, Wu


def _to_taps(w_oihw):
    """(O, I, 3, 3) conv weight -> (9, O, I), tap index t = kh*3 + kw."""
    o, i = w_oihw.shape[:2]
    return jnp.transpose(w_oihw, (2, 3, 0, 1)).reshape(9, o, i)


def decode_block_pallas(x, params, upsample=True):
    """x: (B, Cin, H, W) float32 (NCHW, matching PyTorch). Returns (B, Cout, H', W')."""
    B, Cin, H, W = x.shape
    Cout = params["w2"].shape[0]
    up_np, Hu, Wu = make_upsample_matrix(H, W, upsample)
    N, Nu = H * W, Hu * Wu

    x_flat = x.reshape(B, Cin, N)
    up_t = jnp.asarray(up_np.T)                                       # (N, Nu) f32

    # bf16 operands for the big MXU matmuls (f32 accumulation in-kernel);
    # tiny attention weights stay f32.
    w1 = _to_taps(params["w1"]).astype(jnp.bfloat16)                  # (9, Cin, Cin)
    w2 = _to_taps(params["w2"]).astype(jnp.bfloat16)                  # (9, Cout, Cin)
    w3 = params["w3"][:, :, 0, 0].astype(jnp.bfloat16)                # (Cout, Cin)
    wc1 = params["wc1"][:, :, 0, 0].astype(jnp.float32)               # (Cr, Cout)
    wc2 = params["wc2"][:, :, 0, 0].astype(jnp.float32)               # (Cout, Cr)
    wsa = _to_taps(params["wsa"]).astype(jnp.float32)                 # (9, 1, 2)
    Cr = wc1.shape[0]

    kernel = functools.partial(_decode_block_kernel, Hu=Hu, Wu=Wu)

    flops = 2 * B * (Cin * N * Nu                 # upsample matmul
                     + 9 * Nu * Cin * Cin         # conv3x3_1
                     + 9 * Nu * Cin * Cout        # conv3x3_2
                     + Nu * Cin * Cout            # conv1x1
                     + 9 * Nu * 2)                # spatial-attention conv
    bytes_accessed = ((x_flat.size + up_t.size + wc1.size + wc2.size + wsa.size) * 4
                      + (w1.size + w2.size + w3.size) * 2
                      + B * Cout * Nu * 4)
    cost = pl.CostEstimate(flops=int(flops),
                           transcendentals=int(B * (Nu + 4 * Cout)),
                           bytes_accessed=int(bytes_accessed))

    out_flat = pl.pallas_call(
        kernel,
        out_shape=jax.ShapeDtypeStruct((B, Cout, Nu), jnp.float32),
        grid_spec=pltpu.PrefetchScalarGridSpec(
            num_scalar_prefetch=0,
            grid=(B,),
            in_specs=[
                pl.BlockSpec((1, Cin, N), lambda b: (b, 0, 0)),       # input image
                pl.BlockSpec((N, Nu), lambda b: (0, 0)),              # upsample matrix
                pl.BlockSpec((9, Cin, Cin), lambda b: (0, 0, 0)),     # conv3x3_1 taps
                pl.BlockSpec((9, Cout, Cin), lambda b: (0, 0, 0)),    # conv3x3_2 taps
                pl.BlockSpec((Cout, Cin), lambda b: (0, 0)),          # conv1x1
                pl.BlockSpec((Cr, Cout), lambda b: (0, 0)),           # CBAM fc 1
                pl.BlockSpec((Cout, Cr), lambda b: (0, 0)),           # CBAM fc 2
                pl.BlockSpec((9, 1, 2), lambda b: (0, 0, 0)),         # spatial-attn taps
            ],
            out_specs=pl.BlockSpec((1, Cout, Nu), lambda b: (b, 0, 0)),
        ),
        compiler_params=pltpu.CompilerParams(
            dimension_semantics=("parallel",),
            vmem_limit_bytes=32 * 1024 * 1024,
        ),
        cost_estimate=cost,
    )(x_flat, up_t, w1, w2, w3, wc1, wc2, wsa)

    return out_flat.reshape(B, Cout, Hu, Wu)


# ----------------------------------------------------------------------------------
# Parameter init (mimics init_weight: He-normal convs, no biases anywhere)
# ----------------------------------------------------------------------------------
def init_params(key, in_channel, out_channel, reduction=16):
    cr = max(out_channel // reduction, 1)
    ks = jax.random.split(key, 6)

    def he(k, shape):  # Conv2d: N(0, sqrt(2 / fan_out)), fan_out = kh*kw*out_channels
        fan_out = shape[2] * shape[3] * shape[0]
        return (jax.random.normal(k, shape) * np.sqrt(2.0 / fan_out)).astype(jnp.float32)

    return dict(
        w1=he(ks[0], (in_channel, in_channel, 3, 3)),   # conv3x3_1
        w2=he(ks[1], (out_channel, in_channel, 3, 3)),  # conv3x3_2
        w3=he(ks[2], (out_channel, in_channel, 1, 1)),  # conv1x1
        wc1=he(ks[3], (cr, out_channel, 1, 1)),         # CBAM fc reduce
        wc2=he(ks[4], (out_channel, cr, 1, 1)),         # CBAM fc expand
        wsa=he(ks[5], (1, 2, 3, 3)),                    # spatial attention conv
    )


# ----------------------------------------------------------------------------------
# Pure-JAX f32 reference matching the PyTorch forward
# ----------------------------------------------------------------------------------
def _instance_norm_ref(x, eps=1e-5):
    mean = jnp.mean(x, axis=(2, 3), keepdims=True)
    var = jnp.mean((x - mean) ** 2, axis=(2, 3), keepdims=True)
    return (x - mean) * lax.rsqrt(var + eps)


def _conv_ref(x, w):
    dn = lax.conv_dimension_numbers(x.shape, w.shape, ("NCHW", "OIHW", "NCHW"))
    return lax.conv_general_dilated(x, w, (1, 1), "SAME", dimension_numbers=dn,
                                    precision=lax.Precision.HIGHEST)


def decode_block_reference(x, params, upsample=True):
    B, Cin, H, W = x.shape
    up_np, Hu, Wu = make_upsample_matrix(H, W, upsample)
    u = jnp.einsum("bcn,mn->bcm", x.reshape(B, Cin, H * W), jnp.asarray(up_np),
                   precision=lax.Precision.HIGHEST).reshape(B, Cin, Hu, Wu)

    h1 = _conv_ref(u, params["w1"])
    y = jax.nn.relu(_instance_norm_ref(_conv_ref(h1, params["w2"])))

    # CBAM
    wc1 = params["wc1"][:, :, 0, 0]
    wc2 = params["wc2"][:, :, 0, 0]

    def fc(v):
        return jnp.maximum(v @ wc1.T, 0.0) @ wc2.T

    gmax = jnp.max(y, axis=(2, 3))
    gavg = jnp.mean(y, axis=(2, 3))
    ca = jax.nn.sigmoid(fc(gmax) + fc(gavg))[:, :, None, None]
    x1 = y * ca
    s = jnp.concatenate([jnp.max(x1, axis=1, keepdims=True),
                         jnp.mean(x1, axis=1, keepdims=True)], axis=1)
    sa = jax.nn.sigmoid(_conv_ref(s, params["wsa"]))
    x2 = x1 * sa

    z2 = jnp.einsum("oc,bchw->bohw", params["w3"][:, :, 0, 0], u,
                    precision=lax.Precision.HIGHEST)
    return x2 + jax.nn.relu(_instance_norm_ref(z2))


if __name__ == "__main__":
    B, Cin, Cout, H, W = 2, 32, 16, 8, 8

    key = jax.random.PRNGKey(0)
    kx, kp = jax.random.split(key)
    x = jax.random.normal(kx, (B, Cin, H, W), dtype=jnp.float32)
    params = init_params(kp, Cin, Cout, reduction=16)

    out = decode_block_pallas(x, params, upsample=True)
    out = jax.block_until_ready(out)

    ref = decode_block_reference(x, params, upsample=True)
    assert out.shape == (B, Cout, 2 * H, 2 * W)
    # bf16 MXU operands (f32 accumulation) vs the all-f32 reference -> relaxed tolerance.
    max_diff = jnp.max(jnp.abs(out - ref))
    assert jnp.allclose(out, ref, atol=3e-2, rtol=3e-2), f"mismatch vs reference: {max_diff:.4e}"

    print("KERNEL_OK")
</pallas_src>

<mosaic_0001>
module attributes {stable_mosaic.version = 11 : i64} {
  func.func @_decode_block_kernel(%arg0: i32, %arg1: memref<1x32x64xf32, #tpu.memory_space<vmem>>, %arg2: memref<64x256xf32, #tpu.memory_space<vmem>>, %arg3: memref<9x32x32xbf16, #tpu.memory_space<vmem>>, %arg4: memref<9x16x32xbf16, #tpu.memory_space<vmem>>, %arg5: memref<16x32xbf16, #tpu.memory_space<vmem>>, %arg6: memref<1x16xf32, #tpu.memory_space<vmem>>, %arg7: memref<16x1xf32, #tpu.memory_space<vmem>>, %arg8: memref<9x1x2xf32, #tpu.memory_space<vmem>>, %arg9: memref<1x16x256xf32, #tpu.memory_space<vmem>>) attributes {dimension_semantics = [#tpu.dimension_semantics<parallel>], iteration_bounds = array<i64: 2>, scalar_prefetch = 0 : i64, scratch_operands = 0 : i64, tpu.core_type = #tpu.core_type<tc>, window_params = [{transform_indices = @transform_0, window_bounds = array<i64: 1, 32, 64>}, {pipeline_mode = #tpu.pipeline_mode<synchronous>, transform_indices = @transform_1, window_bounds = array<i64: 64, 256>}, {pipeline_mode = #tpu.pipeline_mode<synchronous>, transform_indices = @transform_2, window_bounds = array<i64: 9, 32, 32>}, {pipeline_mode = #tpu.pipeline_mode<synchronous>, transform_indices = @transform_3, window_bounds = array<i64: 9, 16, 32>}, {pipeline_mode = #tpu.pipeline_mode<synchronous>, transform_indices = @transform_4, window_bounds = array<i64: 16, 32>}, {pipeline_mode = #tpu.pipeline_mode<synchronous>, transform_indices = @transform_5, window_bounds = array<i64: 1, 16>}, {pipeline_mode = #tpu.pipeline_mode<synchronous>, transform_indices = @transform_6, window_bounds = array<i64: 16, 1>}, {pipeline_mode = #tpu.pipeline_mode<synchronous>, transform_indices = @transform_7, window_bounds = array<i64: 9, 1, 2>}, {transform_indices = @transform_8, window_bounds = array<i64: 1, 16, 256>}]} {
    %0 = tpu.iota {dimensions = array<i32: 1>} : vector<1x256xi32>
    %1 = arith.sitofp %0 : vector<1x256xi32> to vector<1x256xf32>
    %cst = arith.constant 5.000000e-01 : f32
    %2 = vector.broadcast %cst : f32 to vector<1x256xf32>
    %3 = arith.addf %1, %2 : vector<1x256xf32>
    %cst_0 = arith.constant 6.250000e-02 : f32
    %4 = vector.broadcast %cst_0 : f32 to vector<1x256xf32>
    %5 = arith.mulf %3, %4 : vector<1x256xf32>
    %6 = math.floor %5 : vector<1x256xf32>
    %7 = arith.fptosi %6 : vector<1x256xf32> to vector<1x256xi32>
    %c16_i32 = arith.constant 16 : i32
    %8 = vector.broadcast %c16_i32 : i32 to vector<1x256xi32>
    %9 = arith.muli %7, %8 : vector<1x256xi32>
    %10 = arith.subi %0, %9 : vector<1x256xi32>
    %c-1_i32 = arith.constant -1 : i32
    %11 = vector.broadcast %c-1_i32 : i32 to vector<1x256xi32>
    %12 = arith.addi %7, %11 : vector<1x256xi32>
    %c-1_i32_1 = arith.constant -1 : i32
    %13 = vector.broadcast %c-1_i32_1 : i32 to vector<1x256xi32>
    %14 = arith.addi %10, %13 : vector<1x256xi32>
    %c0_i32 = arith.constant 0 : i32
    %15 = vector.broadcast %c0_i32 : i32 to vector<1x256xi32>
    %16 = arith.cmpi sge, %12, %15 : vector<1x256xi32>
    %c16_i32_2 = arith.constant 16 : i32
    %17 = vector.broadcast %c16_i32_2 : i32 to vector<1x256xi32>
    %18 = arith.cmpi slt, %12, %17 : vector<1x256xi32>
    %19 = arith.andi %16, %18 : vector<1x256xi1>
    %c0_i32_3 = arith.constant 0 : i32
    %20 = vector.broadcast %c0_i32_3 : i32 to vector<1x256xi32>
    %21 = arith.cmpi sge, %14, %20 : vector<1x256xi32>
    %22 = arith.andi %19, %21 : vector<1x256xi1>
    %c16_i32_4 = arith.constant 16 : i32
    %23 = vector.broadcast %c16_i32_4 : i32 to vector<1x256xi32>
    %24 = arith.cmpi slt, %14, %23 : vector<1x256xi32>
    %25 = arith.andi %22, %24 : vector<1x256xi1>
    %c-1_i32_5 = arith.constant -1 : i32
    %26 = vector.broadcast %c-1_i32_5 : i32 to vector<1x256xi32>
    %27 = arith.addi %7, %26 : vector<1x256xi32>
    %c0_i32_6 = arith.constant 0 : i32
    %28 = vector.broadcast %c0_i32_6 : i32 to vector<1x256xi32>
    %29 = arith.addi %10, %28 : vector<1x256xi32>
    %c0_i32_7 = arith.constant 0 : i32
    %30 = vector.broadcast %c0_i32_7 : i32 to vector<1x256xi32>
    %31 = arith.cmpi sge, %27, %30 : vector<1x256xi32>
    %c16_i32_8 = arith.constant 16 : i32
    %32 = vector.broadcast %c16_i32_8 : i32 to vector<1x256xi32>
    %33 = arith.cmpi slt, %27, %32 : vector<1x256xi32>
    %34 = arith.andi %31, %33 : vector<1x256xi1>
    %c0_i32_9 = arith.constant 0 : i32
    %35 = vector.broadcast %c0_i32_9 : i32 to vector<1x256xi32>
    %36 = arith.cmpi sge, %29, %35 : vector<1x256xi32>
    %37 = arith.andi %34, %36 : vector<1x256xi1>
    %c16_i32_10 = arith.constant 16 : i32
    %38 = vector.broadcast %c16_i32_10 : i32 to vector<1x256xi32>
    %39 = arith.cmpi slt, %29, %38 : vector<1x256xi32>
    %40 = arith.andi %37, %39 : vector<1x256xi1>
    %c-1_i32_11 = arith.constant -1 : i32
    %41 = vector.broadcast %c-1_i32_11 : i32 to vector<1x256xi32>
    %42 = arith.addi %7, %41 : vector<1x256xi32>
    %c1_i32 = arith.constant 1 : i32
    %43 = vector.broadcast %c1_i32 : i32 to vector<1x256xi32>
    %44 = arith.addi %10, %43 : vector<1x256xi32>
    %c0_i32_12 = arith.constant 0 : i32
    %45 = vector.broadcast %c0_i32_12 : i32 to vector<1x256xi32>
    %46 = arith.cmpi sge, %42, %45 : vector<1x256xi32>
    %c16_i32_13 = arith.constant 16 : i32
    %47 = vector.broadcast %c16_i32_13 : i32 to vector<1x256xi32>
    %48 = arith.cmpi slt, %42, %47 : vector<1x256xi32>
    %49 = arith.andi %46, %48 : vector<1x256xi1>
    %c0_i32_14 = arith.constant 0 : i32
    %50 = vector.broadcast %c0_i32_14 : i32 to vector<1x256xi32>
    %51 = arith.cmpi sge, %44, %50 : vector<1x256xi32>
    %52 = arith.andi %49, %51 : vector<1x256xi1>
    %c16_i32_15 = arith.constant 16 : i32
    %53 = vector.broadcast %c16_i32_15 : i32 to vector<1x256xi32>
    %54 = arith.cmpi slt, %44, %53 : vector<1x256xi32>
    %55 = arith.andi %52, %54 : vector<1x256xi1>
    %c0_i32_16 = arith.constant 0 : i32
    %56 = vector.broadcast %c0_i32_16 : i32 to vector<1x256xi32>
    %57 = arith.addi %7, %56 : vector<1x256xi32>
    %c-1_i32_17 = arith.constant -1 : i32
    %58 = vector.broadcast %c-1_i32_17 : i32 to vector<1x256xi32>
    %59 = arith.addi %10, %58 : vector<1x256xi32>
    %c0_i32_18 = arith.constant 0 : i32
    %60 = vector.broadcast %c0_i32_18 : i32 to vector<1x256xi32>
    %61 = arith.cmpi sge, %57, %60 : vector<1x256xi32>
    %c16_i32_19 = arith.constant 16 : i32
    %62 = vector.broadcast %c16_i32_19 : i32 to vector<1x256xi32>
    %63 = arith.cmpi slt, %57, %62 : vector<1x256xi32>
    %64 = arith.andi %61, %63 : vector<1x256xi1>
    %c0_i32_20 = arith.constant 0 : i32
    %65 = vector.broadcast %c0_i32_20 : i32 to vector<1x256xi32>
    %66 = arith.cmpi sge, %59, %65 : vector<1x256xi32>
    %67 = arith.andi %64, %66 : vector<1x256xi1>
    %c16_i32_21 = arith.constant 16 : i32
    %68 = vector.broadcast %c16_i32_21 : i32 to vector<1x256xi32>
    %69 = arith.cmpi slt, %59, %68 : vector<1x256xi32>
    %70 = arith.andi %67, %69 : vector<1x256xi1>
    %c0_i32_22 = arith.constant 0 : i32
    %71 = vector.broadcast %c0_i32_22 : i32 to vector<1x256xi32>
    %72 = arith.addi %7, %71 : vector<1x256xi32>
    %c1_i32_23 = arith.constant 1 : i32
    %73 = vector.broadcast %c1_i32_23 : i32 to vector<1x256xi32>
    %74 = arith.addi %10, %73 : vector<1x256xi32>
    %c0_i32_24 = arith.constant 0 : i32
    %75 = vector.broadcast %c0_i32_24 : i32 to vector<1x256xi32>
    %76 = arith.cmpi sge, %72, %75 : vector<1x256xi32>
    %c16_i32_25 = arith.constant 16 : i32
    %77 = vector.broadcast %c16_i32_25 : i32 to vector<1x256xi32>
    %78 = arith.cmpi slt, %72, %77 : vector<1x256xi32>
    %79 = arith.andi %76, %78 : vector<1x256xi1>
    %c0_i32_26 = arith.constant 0 : i32
    %80 = vector.broadcast %c0_i32_26 : i32 to vector<1x256xi32>
    %81 = arith.cmpi sge, %74, %80 : vector<1x256xi32>
    %82 = arith.andi %79, %81 : vector<1x256xi1>
    %c16_i32_27 = arith.constant 16 : i32
    %83 = vector.broadcast %c16_i32_27 : i32 to vector<1x256xi32>
    %84 = arith.cmpi slt, %74, %83 : vector<1x256xi32>
    %85 = arith.andi %82, %84 : vector<1x256xi1>
    %c1_i32_28 = arith.constant 1 : i32
    %86 = vector.broadcast %c1_i32_28 : i32 to vector<1x256xi32>
    %87 = arith.addi %7, %86 : vector<1x256xi32>
    %c-1_i32_29 = arith.constant -1 : i32
    %88 = vector.broadcast %c-1_i32_29 : i32 to vector<1x256xi32>
    %89 = arith.addi %10, %88 : vector<1x256xi32>
    %c0_i32_30 = arith.constant 0 : i32
    %90 = vector.broadcast %c0_i32_30 : i32 to vector<1x256xi32>
    %91 = arith.cmpi sge, %87, %90 : vector<1x256xi32>
    %c16_i32_31 = arith.constant 16 : i32
    %92 = vector.broadcast %c16_i32_31 : i32 to vector<1x256xi32>
    %93 = arith.cmpi slt, %87, %92 : vector<1x256xi32>
    %94 = arith.andi %91, %93 : vector<1x256xi1>
    %c0_i32_32 = arith.constant 0 : i32
    %95 = vector.broadcast %c0_i32_32 : i32 to vector<1x256xi32>
    %96 = arith.cmpi sge, %89, %95 : vector<1x256xi32>
    %97 = arith.andi %94, %96 : vector<1x256xi1>
    %c16_i32_33 = arith.constant 16 : i32
    %98 = vector.broadcast %c16_i32_33 : i32 to vector<1x256xi32>
    %99 = arith.cmpi slt, %89, %98 : vector<1x256xi32>
    %100 = arith.andi %97, %99 : vector<1x256xi1>
    %c1_i32_34 = arith.constant 1 : i32
    %101 = vector.broadcast %c1_i32_34 : i32 to vector<1x256xi32>
    %102 = arith.addi %7, %101 : vector<1x256xi32>
    %c0_i32_35 = arith.constant 0 : i32
    %103 = vector.broadcast %c0_i32_35 : i32 to vector<1x256xi32>
    %104 = arith.addi %10, %103 : vector<1x256xi32>
    %c0_i32_36 = arith.constant 0 : i32
    %105 = vector.broadcast %c0_i32_36 : i32 to vector<1x256xi32>
    %106 = arith.cmpi sge, %102, %105 : vector<1x256xi32>
    %c16_i32_37 = arith.constant 16 : i32
    %107 = vector.broadcast %c16_i32_37 : i32 to vector<1x256xi32>
    %108 = arith.cmpi slt, %102, %107 : vector<1x256xi32>
    %109 = arith.andi %106, %108 : vector<1x256xi1>
    %c0_i32_38 = arith.constant 0 : i32
    %110 = vector.broadcast %c0_i32_38 : i32 to vector<1x256xi32>
    %111 = arith.cmpi sge, %104, %110 : vector<1x256xi32>
    %112 = arith.andi %109, %111 : vector<1x256xi1>
    %c16_i32_39 = arith.constant 16 : i32
    %113 = vector.broadcast %c16_i32_39 : i32 to vector<1x256xi32>
    %114 = arith.cmpi slt, %104, %113 : vector<1x256xi32>
    %115 = arith.andi %112, %114 : vector<1x256xi1>
    %c1_i32_40 = arith.constant 1 : i32
    %116 = vector.broadcast %c1_i32_40 : i32 to vector<1x256xi32>
    %117 = arith.addi %7, %116 : vector<1x256xi32>
    %c1_i32_41 = arith.constant 1 : i32
    %118 = vector.broadcast %c1_i32_41 : i32 to vector<1x256xi32>
    %119 = arith.addi %10, %118 : vector<1x256xi32>
    %c0_i32_42 = arith.constant 0 : i32
    %120 = vector.broadcast %c0_i32_42 : i32 to vector<1x256xi32>
    %121 = arith.cmpi sge, %117, %120 : vector<1x256xi32>
    %c16_i32_43 = arith.constant 16 : i32
    %122 = vector.broadcast %c16_i32_43 : i32 to vector<1x256xi32>
    %123 = arith.cmpi slt, %117, %122 : vector<1x256xi32>
    %124 = arith.andi %121, %123 : vector<1x256xi1>
    %c0_i32_44 = arith.constant 0 : i32
    %125 = vector.broadcast %c0_i32_44 : i32 to vector<1x256xi32>
    %126 = arith.cmpi sge, %119, %125 : vector<1x256xi32>
    %127 = arith.andi %124, %126 : vector<1x256xi1>
    %c16_i32_45 = arith.constant 16 : i32
    %128 = vector.broadcast %c16_i32_45 : i32 to vector<1x256xi32>
    %129 = arith.cmpi slt, %119, %128 : vector<1x256xi32>
    %130 = arith.andi %127, %129 : vector<1x256xi1>
    %c0 = arith.constant 0 : index
    %c0_46 = arith.constant 0 : index
    %c0_47 = arith.constant 0 : index
    %131 = vector.load %arg1[%c0, %c0_46, %c0_47] : memref<1x32x64xf32, #tpu.memory_space<vmem>>, vector<1x32x64xf32>
    %132 = vector.shape_cast %131 : vector<1x32x64xf32> to vector<32x64xf32>
    %c0_48 = arith.constant 0 : index
    %c0_49 = arith.constant 0 : index
    %133 = vector.load %arg2[%c0_48, %c0_49] : memref<64x256xf32, #tpu.memory_space<vmem>>, vector<64x256xf32>
    %cst_50 = arith.constant dense<0.000000e+00> : vector<32x256xf32>
    %134 = tpu.matmul %132, %133, %cst_50 {dimension_numbers = #tpu.dot_dimension_numbers<[1], [0], [0], [1], [0, 0, 1, 1], [], []>} : vector<32x64xf32>, vector<64x256xf32>, vector<32x256xf32> -> vector<32x256xf32>
    %cst_51 = arith.constant 0.000000e+00 : f32
    %135 = vector.broadcast %cst_51 : f32 to vector<32x256xf32>
    %c17_i32 = arith.constant 17 : i32
    %136 = tpu.dynamic_rotate %134 by %c17_i32 dim 1 : vector<32x256xf32>, i32 -> vector<32x256xf32>
    %cst_52 = arith.constant 0.000000e+00 : f32
    %137 = vector.shape_cast %25 : vector<1x256xi1> to vector<1x256xi1>
    %138 = vector.broadcast %137 : vector<1x256xi1> to vector<32x256xi1>
    %139 = vector.broadcast %cst_52 : f32 to vector<32x256xf32>
    %140 = arith.select %138, %136, %139 : vector<32x256xi1>, vector<32x256xf32>
    %c0_53 = arith.constant 0 : index
    %c0_54 = arith.constant 0 : index
    %c0_55 = arith.constant 0 : index
    %141 = vector.load %arg3[%c0_53, %c0_54, %c0_55] : memref<9x32x32xbf16, #tpu.memory_space<vmem>>, vector<1x32x32xbf16>
    %142 = vector.shape_cast %141 : vector<1x32x32xbf16> to vector<32x32xbf16>
    %143 = arith.truncf %140 : vector<32x256xf32> to vector<32x256xbf16>
    %cst_56 = arith.constant dense<0.000000e+00> : vector<32x256xf32>
    %144 = tpu.matmul %142, %143, %cst_56 {dimension_numbers = #tpu.dot_dimension_numbers<[1], [0], [0], [1], [0, 0, 1, 1], [], []>} : vector<32x32xbf16>, vector<32x256xbf16>, vector<32x256xf32> -> vector<32x256xf32>
    %145 = arith.addf %135, %144 : vector<32x256xf32>
    %c16_i32_57 = arith.constant 16 : i32
    %146 = tpu.dynamic_rotate %134 by %c16_i32_57 dim 1 : vector<32x256xf32>, i32 -> vector<32x256xf32>
    %cst_58 = arith.constant 0.000000e+00 : f32
    %147 = vector.shape_cast %40 : vector<1x256xi1> to vector<1x256xi1>
    %148 = vector.broadcast %147 : vector<1x256xi1> to vector<32x256xi1>
    %149 = vector.broadcast %cst_58 : f32 to vector<32x256xf32>
    %150 = arith.select %148, %146, %149 : vector<32x256xi1>, vector<32x256xf32>
    %c1 = arith.constant 1 : index
    %c0_59 = arith.constant 0 : index
    %c0_60 = arith.constant 0 : index
    %151 = vector.load %arg3[%c1, %c0_59, %c0_60] : memref<9x32x32xbf16, #tpu.memory_space<vmem>>, vector<1x32x32xbf16>
    %152 = vector.shape_cast %151 : vector<1x32x32xbf16> to vector<32x32xbf16>
    %153 = arith.truncf %150 : vector<32x256xf32> to vector<32x256xbf16>
    %cst_61 = arith.constant dense<0.000000e+00> : vector<32x256xf32>
    %154 = tpu.matmul %152, %153, %cst_61 {dimension_numbers = #tpu.dot_dimension_numbers<[1], [0], [0], [1], [0, 0, 1, 1], [], []>} : vector<32x32xbf16>, vector<32x256xbf16>, vector<32x256xf32> -> vector<32x256xf32>
    %155 = arith.addf %145, %154 : vector<32x256xf32>
    %c15_i32 = arith.constant 15 : i32
    %156 = tpu.dynamic_rotate %134 by %c15_i32 dim 1 : vector<32x256xf32>, i32 -> vector<32x256xf32>
    %cst_62 = arith.constant 0.000000e+00 : f32
    %157 = vector.shape_cast %55 : vector<1x256xi1> to vector<1x256xi1>
    %158 = vector.broadcast %157 : vector<1x256xi1> to vector<32x256xi1>
    %159 = vector.broadcast %cst_62 : f32 to vector<32x256xf32>
    %160 = arith.select %158, %156, %159 : vector<32x256xi1>, vector<32x256xf32>
    %c2 = arith.constant 2 : index
    %c0_63 = arith.constant 0 : index
    %c0_64 = arith.constant 0 : index
    %161 = vector.load %arg3[%c2, %c0_63, %c0_64] : memref<9x32x32xbf16, #tpu.memory_space<vmem>>, vector<1x32x32xbf16>
    %162 = vector.shape_cast %161 : vector<1x32x32xbf16> to vector<32x32xbf16>
    %163 = arith.truncf %160 : vector<32x256xf32> to vector<32x256xbf16>
    %cst_65 = arith.constant dense<0.000000e+00> : vector<32x256xf32>
    %164 = tpu.matmul %162, %163, %cst_65 {dimension_numbers = #tpu.dot_dimension_numbers<[1], [0], [0], [1], [0, 0, 1, 1], [], []>} : vector<32x32xbf16>, vector<32x256xbf16>, vector<32x256xf32> -> vector<32x256xf32>
    %165 = arith.addf %155, %164 : vector<32x256xf32>
    %c1_i32_66 = arith.constant 1 : i32
    %166 = tpu.dynamic_rotate %134 by %c1_i32_66 dim 1 : vector<32x256xf32>, i32 -> vector<32x256xf32>
    %cst_67 = arith.constant 0.000000e+00 : f32
    %167 = vector.shape_cast %70 : vector<1x256xi1> to vector<1x256xi1>
    %168 = vector.broadcast %167 : vector<1x256xi1> to vector<32x256xi1>
    %169 = vector.broadcast %cst_67 : f32 to vector<32x256xf32>
    %170 = arith.select %168, %166, %169 : vector<32x256xi1>, vector<32x256xf32>
    %c3 = arith.constant 3 : index
    %c0_68 = arith.constant 0 : index
    %c0_69 = arith.constant 0 : index
    %171 = vector.load %arg3[%c3, %c0_68, %c0_69] : memref<9x32x32xbf16, #tpu.memory_space<vmem>>, vector<1x32x32xbf16>
    %172 = vector.shape_cast %171 : vector<1x32x32xbf16> to vector<32x32xbf16>
    %173 = arith.truncf %170 : vector<32x256xf32> to vector<32x256xbf16>
    %cst_70 = arith.constant dense<0.000000e+00> : vector<32x256xf32>
    %174 = tpu.matmul %172, %173, %cst_70 {dimension_numbers = #tpu.dot_dimension_numbers<[1], [0], [0], [1], [0, 0, 1, 1], [], []>} : vector<32x32xbf16>, vector<32x256xbf16>, vector<32x256xf32> -> vector<32x256xf32>
    %175 = arith.addf %165, %174 : vector<32x256xf32>
    %c4 = arith.constant 4 : index
    %c0_71 = arith.constant 0 : index
    %c0_72 = arith.constant 0 : index
    %176 = vector.load %arg3[%c4, %c0_71, %c0_72] : memref<9x32x32xbf16, #tpu.memory_space<vmem>>, vector<1x32x32xbf16>
    %177 = vector.shape_cast %176 : vector<1x32x32xbf16> to vector<32x32xbf16>
    %178 = arith.truncf %134 : vector<32x256xf32> to vector<32x256xbf16>
    %cst_73 = arith.constant dense<0.000000e+00> : vector<32x256xf32>
    %179 = tpu.matmul %177, %178, %cst_73 {dimension_numbers = #tpu.dot_dimension_numbers<[1], [0], [0], [1], [0, 0, 1, 1], [], []>} : vector<32x32xbf16>, vector<32x256xbf16>, vector<32x256xf32> -> vector<32x256xf32>
    %180 = arith.addf %175, %179 : vector<32x256xf32>
    %c255_i32 = arith.constant 255 : i32
    %181 = tpu.dynamic_rotate %134 by %c255_i32 dim 1 : vector<32x256xf32>, i32 -> vector<32x256xf32>
    %cst_74 = arith.constant 0.000000e+00 : f32
    %182 = vector.shape_cast %85 : vector<1x256xi1> to vector<1x256xi1>
    %183 = vector.broadcast %182 : vector<1x256xi1> to vector<32x256xi1>
    %184 = vector.broadcast %cst_74 : f32 to vector<32x256xf32>
    %185 = arith.select %183, %181, %184 : vector<32x256xi1>, vector<32x256xf32>
    %c5 = arith.constant 5 : index
    %c0_75 = arith.constant 0 : index
    %c0_76 = arith.constant 0 : index
    %186 = vector.load %arg3[%c5, %c0_75, %c0_76] : memref<9x32x32xbf16, #tpu.memory_space<vmem>>, vector<1x32x32xbf16>
    %187 = vector.shape_cast %186 : vector<1x32x32xbf16> to vector<32x32xbf16>
    %188 = arith.truncf %185 : vector<32x256xf32> to vector<32x256xbf16>
    %cst_77 = arith.constant dense<0.000000e+00> : vector<32x256xf32>
    %189 = tpu.matmul %187, %188, %cst_77 {dimension_numbers = #tpu.dot_dimension_numbers<[1], [0], [0], [1], [0, 0, 1, 1], [], []>} : vector<32x32xbf16>, vector<32x256xbf16>, vector<32x256xf32> -> vector<32x256xf32>
    %190 = arith.addf %180, %189 : vector<32x256xf32>
    %c241_i32 = arith.constant 241 : i32
    %191 = tpu.dynamic_rotate %134 by %c241_i32 dim 1 : vector<32x256xf32>, i32 -> vector<32x256xf32>
    %cst_78 = arith.constant 0.000000e+00 : f32
    %192 = vector.shape_cast %100 : vector<1x256xi1> to vector<1x256xi1>
    %193 = vector.broadcast %192 : vector<1x256xi1> to vector<32x256xi1>
    %194 = vector.broadcast %cst_78 : f32 to vector<32x256xf32>
    %195 = arith.select %193, %191, %194 : vector<32x256xi1>, vector<32x256xf32>
    %c6 = arith.constant 6 : index
    %c0_79 = arith.constant 0 : index
    %c0_80 = arith.constant 0 : index
    %196 = vector.load %arg3[%c6, %c0_79, %c0_80] : memref<9x32x32xbf16, #tpu.memory_space<vmem>>, vector<1x32x32xbf16>
    %197 = vector.shape_cast %196 : vector<1x32x32xbf16> to vector<32x32xbf16>
    %198 = arith.truncf %195 : vector<32x256xf32> to vector<32x256xbf16>
    %cst_81 = arith.constant dense<0.000000e+00> : vector<32x256xf32>
    %199 = tpu.matmul %197, %198, %cst_81 {dimension_numbers = #tpu.dot_dimension_numbers<[1], [0], [0], [1], [0, 0, 1, 1], [], []>} : vector<32x32xbf16>, vector<32x256xbf16>, vector<32x256xf32> -> vector<32x256xf32>
    %200 = arith.addf %190, %199 : vector<32x256xf32>
    %c240_i32 = arith.constant 240 : i32
    %201 = tpu.dynamic_rotate %134 by %c240_i32 dim 1 : vector<32x256xf32>, i32 -> vector<32x256xf32>
    %cst_82 = arith.constant 0.000000e+00 : f32
    %202 = vector.shape_cast %115 : vector<1x256xi1> to vector<1x256xi1>
    %203 = vector.broadcast %202 : vector<1x256xi1> to vector<32x256xi1>
    %204 = vector.broadcast %cst_82 : f32 to vector<32x256xf32>
    %205 = arith.select %203, %201, %204 : vector<32x256xi1>, vector<32x256xf32>
    %c7 = arith.constant 7 : index
    %c0_83 = arith.constant 0 : index
    %c0_84 = arith.constant 0 : index
    %206 = vector.load %arg3[%c7, %c0_83, %c0_84] : memref<9x32x32xbf16, #tpu.memory_space<vmem>>, vector<1x32x32xbf16>
    %207 = vector.shape_cast %206 : vector<1x32x32xbf16> to vector<32x32xbf16>
    %208 = arith.truncf %205 : vector<32x256xf32> to vector<32x256xbf16>
    %cst_85 = arith.constant dense<0.000000e+00> : vector<32x256xf32>
    %209 = tpu.matmul %207, %208, %cst_85 {dimension_numbers = #tpu.dot_dimension_numbers<[1], [0], [0], [1], [0, 0, 1, 1], [], []>} : vector<32x32xbf16>, vector<32x256xbf16>, vector<32x256xf32> -> vector<32x256xf32>
    %210 = arith.addf %200, %209 : vector<32x256xf32>
    %c239_i32 = arith.constant 239 : i32
    %211 = tpu.dynamic_rotate %134 by %c239_i32 dim 1 : vector<32x256xf32>, i32 -> vector<32x256xf32>
    %cst_86 = arith.constant 0.000000e+00 : f32
    %212 = vector.shape_cast %130 : vector<1x256xi1> to vector<1x256xi1>
    %213 = vector.broadcast %212 : vector<1x256xi1> to vector<32x256xi1>
    %214 = vector.broadcast %cst_86 : f32 to vector<32x256xf32>
    %215 = arith.select %213, %211, %214 : vector<32x256xi1>, vector<32x256xf32>
    %c8 = arith.constant 8 : index
    %c0_87 = arith.constant 0 : index
    %c0_88 = arith.constant 0 : index
    %216 = vector.load %arg3[%c8, %c0_87, %c0_88] : memref<9x32x32xbf16, #tpu.memory_space<vmem>>, vector<1x32x32xbf16>
    %217 = vector.shape_cast %216 : vector<1x32x32xbf16> to vector<32x32xbf16>
    %218 = arith.truncf %215 : vector<32x256xf32> to vector<32x256xbf16>
    %cst_89 = arith.constant dense<0.000000e+00> : vector<32x256xf32>
    %219 = tpu.matmul %217, %218, %cst_89 {dimension_numbers = #tpu.dot_dimension_numbers<[1], [0], [0], [1], [0, 0, 1, 1], [], []>} : vector<32x32xbf16>, vector<32x256xbf16>, vector<32x256xf32> -> vector<32x256xf32>
    %220 = arith.addf %210, %219 : vector<32x256xf32>
    %cst_90 = arith.constant 0.000000e+00 : f32
    %221 = vector.broadcast %cst_90 : f32 to vector<16x256xf32>
    %c17_i32_91 = arith.constant 17 : i32
    %222 = tpu.dynamic_rotate %220 by %c17_i32_91 dim 1 : vector<32x256xf32>, i32 -> vector<32x256xf32>
    %cst_92 = arith.constant 0.000000e+00 : f32
    %223 = vector.shape_cast %25 : vector<1x256xi1> to vector<1x256xi1>
    %224 = vector.broadcast %223 : vector<1x256xi1> to vector<32x256xi1>
    %225 = vector.broadcast %cst_92 : f32 to vector<32x256xf32>
    %226 = arith.select %224, %222, %225 : vector<32x256xi1>, vector<32x256xf32>
    %c0_93 = arith.constant 0 : index
    %c0_94 = arith.constant 0 : index
    %c0_95 = arith.constant 0 : index
    %227 = vector.load %arg4[%c0_93, %c0_94, %c0_95] : memref<9x16x32xbf16, #tpu.memory_space<vmem>>, vector<1x16x32xbf16>
    %228 = vector.shape_cast %227 : vector<1x16x32xbf16> to vector<16x32xbf16>
    %229 = arith.truncf %226 : vector<32x256xf32> to vector<32x256xbf16>
    %cst_96 = arith.constant dense<0.000000e+00> : vector<16x256xf32>
    %230 = tpu.matmul %228, %229, %cst_96 {dimension_numbers = #tpu.dot_dimension_numbers<[1], [0], [0], [1], [0, 0, 1, 1], [], []>} : vector<16x32xbf16>, vector<32x256xbf16>, vector<16x256xf32> -> vector<16x256xf32>
    %231 = arith.addf %221, %230 : vector<16x256xf32>
    %c16_i32_97 = arith.constant 16 : i32
    %232 = tpu.dynamic_rotate %220 by %c16_i32_97 dim 1 : vector<32x256xf32>, i32 -> vector<32x256xf32>
    %cst_98 = arith.constant 0.000000e+00 : f32
    %233 = vector.shape_cast %40 : vector<1x256xi1> to vector<1x256xi1>
    %234 = vector.broadcast %233 : vector<1x256xi1> to vector<32x256xi1>
    %235 = vector.broadcast %cst_98 : f32 to vector<32x256xf32>
    %236 = arith.select %234, %232, %235 : vector<32x256xi1>, vector<32x256xf32>
    %c1_99 = arith.constant 1 : index
    %c0_100 = arith.constant 0 : index
    %c0_101 = arith.constant 0 : index
    %237 = vector.load %arg4[%c1_99, %c0_100, %c0_101] : memref<9x16x32xbf16, #tpu.memory_space<vmem>>, vector<1x16x32xbf16>
    %238 = vector.shape_cast %237 : vector<1x16x32xbf16> to vector<16x32xbf16>
    %239 = arith.truncf %236 : vector<32x256xf32> to vector<32x256xbf16>
    %cst_102 = arith.constant dense<0.000000e+00> : vector<16x256xf32>
    %240 = tpu.matmul %238, %239, %cst_102 {dimension_numbers = #tpu.dot_dimension_numbers<[1], [0], [0], [1], [0, 0, 1, 1], [], []>} : vector<16x32xbf16>, vector<32x256xbf16>, vector<16x256xf32> -> vector<16x256xf32>
    %241 = arith.addf %231, %240 : vector<16x256xf32>
    %c15_i32_103 = arith.constant 15 : i32
    %242 = tpu.dynamic_rotate %220 by %c15_i32_103 dim 1 : vector<32x256xf32>, i32 -> vector<32x256xf32>
    %cst_104 = arith.constant 0.000000e+00 : f32
    %243 = vector.shape_cast %55 : vector<1x256xi1> to vector<1x256xi1>
    %244 = vector.broadcast %243 : vector<1x256xi1> to vector<32x256xi1>
    %245 = vector.broadcast %cst_104 : f32 to vector<32x256xf32>
    %246 = arith.select %244, %242, %245 : vector<32x256xi1>, vector<32x256xf32>
    %c2_105 = arith.constant 2 : index
    %c0_106 = arith.constant 0 : index
    %c0_107 = arith.constant 0 : index
    %247 = vector.load %arg4[%c2_105, %c0_106, %c0_107] : memref<9x16x32xbf16, #tpu.memory_space<vmem>>, vector<1x16x32xbf16>
    %248 = vector.shape_cast %247 : vector<1x16x32xbf16> to vector<16x32xbf16>
    %249 = arith.truncf %246 : vector<32x256xf32> to vector<32x256xbf16>
    %cst_108 = arith.constant dense<0.000000e+00> : vector<16x256xf32>
    %250 = tpu.matmul %248, %249, %cst_108 {dimension_numbers = #tpu.dot_dimension_numbers<[1], [0], [0], [1], [0, 0, 1, 1], [], []>} : vector<16x32xbf16>, vector<32x256xbf16>, vector<16x256xf32> -> vector<16x256xf32>
    %251 = arith.addf %241, %250 : vector<16x256xf32>
    %c1_i32_109 = arith.constant 1 : i32
    %252 = tpu.dynamic_rotate %220 by %c1_i32_109 dim 1 : vector<32x256xf32>, i32 -> vector<32x256xf32>
    %cst_110 = arith.constant 0.000000e+00 : f32
    %253 = vector.shape_cast %70 : vector<1x256xi1> to vector<1x256xi1>
    %254 = vector.broadcast %253 : vector<1x256xi1> to vector<32x256xi1>
    %255 = vector.broadcast %cst_110 : f32 to vector<32x256xf32>
    %256 = arith.select %254, %252, %255 : vector<32x256xi1>, vector<32x256xf32>
    %c3_111 = arith.constant 3 : index
    %c0_112 = arith.constant 0 : index
    %c0_113 = arith.constant 0 : index
    %257 = vector.load %arg4[%c3_111, %c0_112, %c0_113] : memref<9x16x32xbf16, #tpu.memory_space<vmem>>, vector<1x16x32xbf16>
    %258 = vector.shape_cast %257 : vector<1x16x32xbf16> to vector<16x32xbf16>
    %259 = arith.truncf %256 : vector<32x256xf32> to vector<32x256xbf16>
    %cst_114 = arith.constant dense<0.000000e+00> : vector<16x256xf32>
    %260 = tpu.matmul %258, %259, %cst_114 {dimension_numbers = #tpu.dot_dimension_numbers<[1], [0], [0], [1], [0, 0, 1, 1], [], []>} : vector<16x32xbf16>, vector<32x256xbf16>, vector<16x256xf32> -> vector<16x256xf32>
    %261 = arith.addf %251, %260 : vector<16x256xf32>
    %c4_115 = arith.constant 4 : index
    %c0_116 = arith.constant 0 : index
    %c0_117 = arith.constant 0 : index
    %262 = vector.load %arg4[%c4_115, %c0_116, %c0_117] : memref<9x16x32xbf16, #tpu.memory_space<vmem>>, vector<1x16x32xbf16>
    %263 = vector.shape_cast %262 : vector<1x16x32xbf16> to vector<16x32xbf16>
    %264 = arith.truncf %220 : vector<32x256xf32> to vector<32x256xbf16>
    %cst_118 = arith.constant dense<0.000000e+00> : vector<16x256xf32>
    %265 = tpu.matmul %263, %264, %cst_118 {dimension_numbers = #tpu.dot_dimension_numbers<[1], [0], [0], [1], [0, 0, 1, 1], [], []>} : vector<16x32xbf16>, vector<32x256xbf16>, vector<16x256xf32> -> vector<16x256xf32>
    %266 = arith.addf %261, %265 : vector<16x256xf32>
    %c255_i32_119 = arith.constant 255 : i32
    %267 = tpu.dynamic_rotate %220 by %c255_i32_119 dim 1 : vector<32x256xf32>, i32 -> vector<32x256xf32>
    %cst_120 = arith.constant 0.000000e+00 : f32
    %268 = vector.shape_cast %85 : vector<1x256xi1> to vector<1x256xi1>
    %269 = vector.broadcast %268 : vector<1x256xi1> to vector<32x256xi1>
    %270 = vector.broadcast %cst_120 : f32 to vector<32x256xf32>
    %271 = arith.select %269, %267, %270 : vector<32x256xi1>, vector<32x256xf32>
    %c5_121 = arith.constant 5 : index
    %c0_122 = arith.constant 0 : index
    %c0_123 = arith.constant 0 : index
    %272 = vector.load %arg4[%c5_121, %c0_122, %c0_123] : memref<9x16x32xbf16, #tpu.memory_space<vmem>>, vector<1x16x32xbf16>
    %273 = vector.shape_cast %272 : vector<1x16x32xbf16> to vector<16x32xbf16>
    %274 = arith.truncf %271 : vector<32x256xf32> to vector<32x256xbf16>
    %cst_124 = arith.constant dense<0.000000e+00> : vector<16x256xf32>
    %275 = tpu.matmul %273, %274, %cst_124 {dimension_numbers = #tpu.dot_dimension_numbers<[1], [0], [0], [1], [0, 0, 1, 1], [], []>} : vector<16x32xbf16>, vector<32x256xbf16>, vector<16x256xf32> -> vector<16x256xf32>
    %276 = arith.addf %266, %275 : vector<16x256xf32>
    %c241_i32_125 = arith.constant 241 : i32
    %277 = tpu.dynamic_rotate %220 by %c241_i32_125 dim 1 : vector<32x256xf32>, i32 -> vector<32x256xf32>
    %cst_126 = arith.constant 0.000000e+00 : f32
    %278 = vector.shape_cast %100 : vector<1x256xi1> to vector<1x256xi1>
    %279 = vector.broadcast %278 : vector<1x256xi1> to vector<32x256xi1>
    %280 = vector.broadcast %cst_126 : f32 to vector<32x256xf32>
    %281 = arith.select %279, %277, %280 : vector<32x256xi1>, vector<32x256xf32>
    %c6_127 = arith.constant 6 : index
    %c0_128 = arith.constant 0 : index
    %c0_129 = arith.constant 0 : index
    %282 = vector.load %arg4[%c6_127, %c0_128, %c0_129] : memref<9x16x32xbf16, #tpu.memory_space<vmem>>, vector<1x16x32xbf16>
    %283 = vector.shape_cast %282 : vector<1x16x32xbf16> to vector<16x32xbf16>
    %284 = arith.truncf %281 : vector<32x256xf32> to vector<32x256xbf16>
    %cst_130 = arith.constant dense<0.000000e+00> : vector<16x256xf32>
    %285 = tpu.matmul %283, %284, %cst_130 {dimension_numbers = #tpu.dot_dimension_numbers<[1], [0], [0], [1], [0, 0, 1, 1], [], []>} : vector<16x32xbf16>, vector<32x256xbf16>, vector<16x256xf32> -> vector<16x256xf32>
    %286 = arith.addf %276, %285 : vector<16x256xf32>
    %c240_i32_131 = arith.constant 240 : i32
    %287 = tpu.dynamic_rotate %220 by %c240_i32_131 dim 1 : vector<32x256xf32>, i32 -> vector<32x256xf32>
    %cst_132 = arith.constant 0.000000e+00 : f32
    %288 = vector.shape_cast %115 : vector<1x256xi1> to vector<1x256xi1>
    %289 = vector.broadcast %288 : vector<1x256xi1> to vector<32x256xi1>
    %290 = vector.broadcast %cst_132 : f32 to vector<32x256xf32>
    %291 = arith.select %289, %287, %290 : vector<32x256xi1>, vector<32x256xf32>
    %c7_133 = arith.constant 7 : index
    %c0_134 = arith.constant 0 : index
    %c0_135 = arith.constant 0 : index
    %292 = vector.load %arg4[%c7_133, %c0_134, %c0_135] : memref<9x16x32xbf16, #tpu.memory_space<vmem>>, vector<1x16x32xbf16>
    %293 = vector.shape_cast %292 : vector<1x16x32xbf16> to vector<16x32xbf16>
    %294 = arith.truncf %291 : vector<32x256xf32> to vector<32x256xbf16>
    %cst_136 = arith.constant dense<0.000000e+00> : vector<16x256xf32>
    %295 = tpu.matmul %293, %294, %cst_136 {dimension_numbers = #tpu.dot_dimension_numbers<[1], [0], [0], [1], [0, 0, 1, 1], [], []>} : vector<16x32xbf16>, vector<32x256xbf16>, vector<16x256xf32> -> vector<16x256xf32>
    %296 = arith.addf %286, %295 : vector<16x256xf32>
    %c239_i32_137 = arith.constant 239 : i32
    %297 = tpu.dynamic_rotate %220 by %c239_i32_137 dim 1 : vector<32x256xf32>, i32 -> vector<32x256xf32>
    %cst_138 = arith.constant 0.000000e+00 : f32
    %298 = vector.shape_cast %130 : vector<1x256xi1> to vector<1x256xi1>
    %299 = vector.broadcast %298 : vector<1x256xi1> to vector<32x256xi1>
    %300 = vector.broadcast %cst_138 : f32 to vector<32x256xf32>
    %301 = arith.select %299, %297, %300 : vector<32x256xi1>, vector<32x256xf32>
    %c8_139 = arith.constant 8 : index
    %c0_140 = arith.constant 0 : index
    %c0_141 = arith.constant 0 : index
    %302 = vector.load %arg4[%c8_139, %c0_140, %c0_141] : memref<9x16x32xbf16, #tpu.memory_space<vmem>>, vector<1x16x32xbf16>
    %303 = vector.shape_cast %302 : vector<1x16x32xbf16> to vector<16x32xbf16>
    %304 = arith.truncf %301 : vector<32x256xf32> to vector<32x256xbf16>
    %cst_142 = arith.constant dense<0.000000e+00> : vector<16x256xf32>
    %305 = tpu.matmul %303, %304, %cst_142 {dimension_numbers = #tpu.dot_dimension_numbers<[1], [0], [0], [1], [0, 0, 1, 1], [], []>} : vector<16x32xbf16>, vector<32x256xbf16>, vector<16x256xf32> -> vector<16x256xf32>
    %306 = arith.addf %296, %305 : vector<16x256xf32>
    %cst_143 = arith.constant dense<0.000000e+00> : vector<16xf32>
    %307 = vector.multi_reduction <add>, %306, %cst_143 [1] : vector<16x256xf32> to vector<16xf32>
    %308 = vector.shape_cast %307 : vector<16xf32> to vector<16x1xf32>
    %cst_144 = arith.constant 2.560000e+02 : f32
    %309 = vector.broadcast %cst_144 : f32 to vector<16x1xf32>
    %310 = arith.divf %308, %309 : vector<16x1xf32>
    %311 = vector.broadcast %310 : vector<16x1xf32> to vector<16x256xf32>
    %312 = arith.subf %306, %311 : vector<16x256xf32>
    %313 = arith.mulf %312, %312 : vector<16x256xf32>
    %cst_145 = arith.constant dense<0.000000e+00> : vector<16xf32>
    %314 = vector.multi_reduction <add>, %313, %cst_145 [1] : vector<16x256xf32> to vector<16xf32>
    %315 = vector.shape_cast %314 : vector<16xf32> to vector<16x1xf32>
    %cst_146 = arith.constant 2.560000e+02 : f32
    %316 = vector.broadcast %cst_146 : f32 to vector<16x1xf32>
    %317 = arith.divf %315, %316 : vector<16x1xf32>
    %cst_147 = arith.constant 9.99999974E-6 : f32
    %318 = vector.broadcast %cst_147 : f32 to vector<16x1xf32>
    %319 = arith.addf %317, %318 : vector<16x1xf32>
    %320 = math.rsqrt %319 : vector<16x1xf32>
    %321 = vector.broadcast %320 : vector<16x1xf32> to vector<16x256xf32>
    %322 = arith.mulf %312, %321 : vector<16x256xf32>
    %cst_148 = arith.constant 0.000000e+00 : f32
    %323 = vector.broadcast %cst_148 : f32 to vector<16x256xf32>
    %324 = arith.maximumf %322, %323 : vector<16x256xf32>
    %cst_149 = arith.constant dense<0xFF800000> : vector<16xf32>
    %325 = vector.multi_reduction <maximumf>, %324, %cst_149 [1] : vector<16x256xf32> to vector<16xf32>
    %326 = vector.shape_cast %325 : vector<16xf32> to vector<16x1xf32>
    %cst_150 = arith.constant dense<0.000000e+00> : vector<16xf32>
    %327 = vector.multi_reduction <add>, %324, %cst_150 [1] : vector<16x256xf32> to vector<16xf32>
    %328 = vector.shape_cast %327 : vector<16xf32> to vector<16x1xf32>
    %cst_151 = arith.constant 2.560000e+02 : f32
    %329 = vector.broadcast %cst_151 : f32 to vector<16x1xf32>
    %330 = arith.divf %328, %329 : vector<16x1xf32>
    %c0_152 = arith.constant 0 : index
    %c0_153 = arith.constant 0 : index
    %331 = vector.load %arg6[%c0_152, %c0_153] : memref<1x16xf32, #tpu.memory_space<vmem>>, vector<1x16xf32>
    %c0_154 = arith.constant 0 : index
    %c0_155 = arith.constant 0 : index
    %332 = vector.load %arg7[%c0_154, %c0_155] : memref<16x1xf32, #tpu.memory_space<vmem>>, vector<16x1xf32>
    %cst_156 = arith.constant dense<0.000000e+00> : vector<1x1xf32>
    %333 = tpu.matmul %331, %326, %cst_156 {dimension_numbers = #tpu.dot_dimension_numbers<[1], [0], [0], [1], [0, 0, 1, 1], [], []>} : vector<1x16xf32>, vector<16x1xf32>, vector<1x1xf32> -> vector<1x1xf32>
    %cst_157 = arith.constant 0.000000e+00 : f32
    %334 = vector.broadcast %cst_157 : f32 to vector<1x1xf32>
    %335 = arith.maximumf %333, %334 : vector<1x1xf32>
    %cst_158 = arith.constant dense<0.000000e+00> : vector<16x1xf32>
    %336 = tpu.matmul %332, %335, %cst_158 {dimension_numbers = #tpu.dot_dimension_numbers<[1], [0], [0], [1], [0, 0, 1, 1], [], []>} : vector<16x1xf32>, vector<1x1xf32>, vector<16x1xf32> -> vector<16x1xf32>
    %cst_159 = arith.constant dense<0.000000e+00> : vector<1x1xf32>
    %337 = tpu.matmul %331, %330, %cst_159 {dimension_numbers = #tpu.dot_dimension_numbers<[1], [0], [0], [1], [0, 0, 1, 1], [], []>} : vector<1x16xf32>, vector<16x1xf32>, vector<1x1xf32> -> vector<1x1xf32>
    %cst_160 = arith.constant 0.000000e+00 : f32
    %338 = vector.broadcast %cst_160 : f32 to vector<1x1xf32>
    %339 = arith.maximumf %337, %338 : vector<1x1xf32>
    %cst_161 = arith.constant dense<0.000000e+00> : vector<16x1xf32>
    %340 = tpu.matmul %332, %339, %cst_161 {dimension_numbers = #tpu.dot_dimension_numbers<[1], [0], [0], [1], [0, 0, 1, 1], [], []>} : vector<16x1xf32>, vector<1x1xf32>, vector<16x1xf32> -> vector<16x1xf32>
    %341 = arith.addf %336, %340 : vector<16x1xf32>
    %342 = arith.negf %341 : vector<16x1xf32>
    %343 = math.exp %342 : vector<16x1xf32>
    %cst_162 = arith.constant 1.000000e+00 : f32
    %344 = vector.broadcast %cst_162 : f32 to vector<16x1xf32>
    %345 = arith.addf %344, %343 : vector<16x1xf32>
    %346 = arith.divf %344, %345 : vector<16x1xf32>
    %347 = vector.broadcast %346 : vector<16x1xf32> to vector<16x256xf32>
    %348 = arith.mulf %324, %347 : vector<16x256xf32>
    %cst_163 = arith.constant dense<0xFF800000> : vector<256xf32>
    %349 = vector.multi_reduction <maximumf>, %348, %cst_163 [0] : vector<16x256xf32> to vector<256xf32>
    %350 = vector.shape_cast %349 : vector<256xf32> to vector<1x256xf32>
    %cst_164 = arith.constant dense<0.000000e+00> : vector<256xf32>
    %351 = vector.multi_reduction <add>, %348, %cst_164 [0] : vector<16x256xf32> to vector<256xf32>
    %352 = vector.shape_cast %351 : vector<256xf32> to vector<1x256xf32>
    %cst_165 = arith.constant 1.600000e+01 : f32
    %353 = vector.broadcast %cst_165 : f32 to vector<1x256xf32>
    %354 = arith.divf %352, %353 : vector<1x256xf32>
    %355 = tpu.concatenate %350, %354 in 0 : vector<1x256xf32>, vector<1x256xf32> -> vector<2x256xf32>
    %cst_166 = arith.constant 0.000000e+00 : f32
    %356 = vector.broadcast %cst_166 : f32 to vector<1x256xf32>
    %c17_i32_167 = arith.constant 17 : i32
    %357 = tpu.dynamic_rotate %355 by %c17_i32_167 dim 1 : vector<2x256xf32>, i32 -> vector<2x256xf32>
    %cst_168 = arith.constant 0.000000e+00 : f32
    %358 = vector.shape_cast %25 : vector<1x256xi1> to vector<1x256xi1>
    %359 = vector.broadcast %358 : vector<1x256xi1> to vector<2x256xi1>
    %360 = vector.broadcast %cst_168 : f32 to vector<2x256xf32>
    %361 = arith.select %359, %357, %360 : vector<2x256xi1>, vector<2x256xf32>
    %c0_169 = arith.constant 0 : index
    %c0_170 = arith.constant 0 : index
    %c0_171 = arith.constant 0 : index
    %362 = vector.load %arg8[%c0_169, %c0_170, %c0_171] : memref<9x1x2xf32, #tpu.memory_space<vmem>>, vector<1x1x2xf32>
    %363 = vector.shape_cast %362 : vector<1x1x2xf32> to vector<1x2xf32>
    %cst_172 = arith.constant dense<0.000000e+00> : vector<1x256xf32>
    %364 = tpu.matmul %363, %361, %cst_172 {dimension_numbers = #tpu.dot_dimension_numbers<[1], [0], [0], [1], [0, 0, 1, 1], [], []>} : vector<1x2xf32>, vector<2x256xf32>, vector<1x256xf32> -> vector<1x256xf32>
    %365 = arith.addf %356, %364 : vector<1x256xf32>
    %c16_i32_173 = arith.constant 16 : i32
    %366 = tpu.dynamic_rotate %355 by %c16_i32_173 dim 1 : vector<2x256xf32>, i32 -> vector<2x256xf32>
    %cst_174 = arith.constant 0.000000e+00 : f32
    %367 = vector.shape_cast %40 : vector<1x256xi1> to vector<1x256xi1>
    %368 = vector.broadcast %367 : vector<1x256xi1> to vector<2x256xi1>
    %369 = vector.broadcast %cst_174 : f32 to vector<2x256xf32>
    %370 = arith.select %368, %366, %369 : vector<2x256xi1>, vector<2x256xf32>
    %c1_175 = arith.constant 1 : index
    %c0_176 = arith.constant 0 : index
    %c0_177 = arith.constant 0 : index
    %371 = vector.load %arg8[%c1_175, %c0_176, %c0_177] : memref<9x1x2xf32, #tpu.memory_space<vmem>>, vector<1x1x2xf32>
    %372 = vector.shape_cast %371 : vector<1x1x2xf32> to vector<1x2xf32>
    %cst_178 = arith.constant dense<0.000000e+00> : vector<1x256xf32>
    %373 = tpu.matmul %372, %370, %cst_178 {dimension_numbers = #tpu.dot_dimension_numbers<[1], [0], [0], [1], [0, 0, 1, 1], [], []>} : vector<1x2xf32>, vector<2x256xf32>, vector<1x256xf32> -> vector<1x256xf32>
    %374 = arith.addf %365, %373 : vector<1x256xf32>
    %c15_i32_179 = arith.constant 15 : i32
    %375 = tpu.dynamic_rotate %355 by %c15_i32_179 dim 1 : vector<2x256xf32>, i32 -> vector<2x256xf32>
    %cst_180 = arith.constant 0.000000e+00 : f32
    %376 = vector.shape_cast %55 : vector<1x256xi1> to vector<1x256xi1>
    %377 = vector.broadcast %376 : vector<1x256xi1> to vector<2x256xi1>
    %378 = vector.broadcast %cst_180 : f32 to vector<2x256xf32>
    %379 = arith.select %377, %375, %378 : vector<2x256xi1>, vector<2x256xf32>
    %c2_181 = arith.constant 2 : index
    %c0_182 = arith.constant 0 : index
    %c0_183 = arith.constant 0 : index
    %380 = vector.load %arg8[%c2_181, %c0_182, %c0_183] : memref<9x1x2xf32, #tpu.memory_space<vmem>>, vector<1x1x2xf32>
    %381 = vector.shape_cast %380 : vector<1x1x2xf32> to vector<1x2xf32>
    %cst_184 = arith.constant dense<0.000000e+00> : vector<1x256xf32>
    %382 = tpu.matmul %381, %379, %cst_184 {dimension_numbers = #tpu.dot_dimension_numbers<[1], [0], [0], [1], [0, 0, 1, 1], [], []>} : vector<1x2xf32>, vector<2x256xf32>, vector<1x256xf32> -> vector<1x256xf32>
    %383 = arith.addf %374, %382 : vector<1x256xf32>
    %c1_i32_185 = arith.constant 1 : i32
    %384 = tpu.dynamic_rotate %355 by %c1_i32_185 dim 1 : vector<2x256xf32>, i32 -> vector<2x256xf32>
    %cst_186 = arith.constant 0.000000e+00 : f32
    %385 = vector.shape_cast %70 : vector<1x256xi1> to vector<1x256xi1>
    %386 = vector.broadcast %385 : vector<1x256xi1> to vector<2x256xi1>
    %387 = vector.broadcast %cst_186 : f32 to vector<2x256xf32>
    %388 = arith.select %386, %384, %387 : vector<2x256xi1>, vector<2x256xf32>
    %c3_187 = arith.constant 3 : index
    %c0_188 = arith.constant 0 : index
    %c0_189 = arith.constant 0 : index
    %389 = vector.load %arg8[%c3_187, %c0_188, %c0_189] : memref<9x1x2xf32, #tpu.memory_space<vmem>>, vector<1x1x2xf32>
    %390 = vector.shape_cast %389 : vector<1x1x2xf32> to vector<1x2xf32>
    %cst_190 = arith.constant dense<0.000000e+00> : vector<1x256xf32>
    %391 = tpu.matmul %390, %388, %cst_190 {dimension_numbers = #tpu.dot_dimension_numbers<[1], [0], [0], [1], [0, 0, 1, 1], [], []>} : vector<1x2xf32>, vector<2x256xf32>, vector<1x256xf32> -> vector<1x256xf32>
    %392 = arith.addf %383, %391 : vector<1x256xf32>
    %c4_191 = arith.constant 4 : index
    %c0_192 = arith.constant 0 : index
    %c0_193 = arith.constant 0 : index
    %393 = vector.load %arg8[%c4_191, %c0_192, %c0_193] : memref<9x1x2xf32, #tpu.memory_space<vmem>>, vector<1x1x2xf32>
    %394 = vector.shape_cast %393 : vector<1x1x2xf32> to vector<1x2xf32>
    %cst_194 = arith.constant dense<0.000000e+00> : vector<1x256xf32>
    %395 = tpu.matmul %394, %355, %cst_194 {dimension_numbers = #tpu.dot_dimension_numbers<[1], [0], [0], [1], [0, 0, 1, 1], [], []>} : vector<1x2xf32>, vector<2x256xf32>, vector<1x256xf32> -> vector<1x256xf32>
    %396 = arith.addf %392, %395 : vector<1x256xf32>
    %c255_i32_195 = arith.constant 255 : i32
    %397 = tpu.dynamic_rotate %355 by %c255_i32_195 dim 1 : vector<2x256xf32>, i32 -> vector<2x256xf32>
    %cst_196 = arith.constant 0.000000e+00 : f32
    %398 = vector.shape_cast %85 : vector<1x256xi1> to vector<1x256xi1>
    %399 = vector.broadcast %398 : vector<1x256xi1> to vector<2x256xi1>
    %400 = vector.broadcast %cst_196 : f32 to vector<2x256xf32>
    %401 = arith.select %399, %397, %400 : vector<2x256xi1>, vector<2x256xf32>
    %c5_197 = arith.constant 5 : index
    %c0_198 = arith.constant 0 : index
    %c0_199 = arith.constant 0 : index
    %402 = vector.load %arg8[%c5_197, %c0_198, %c0_199] : memref<9x1x2xf32, #tpu.memory_space<vmem>>, vector<1x1x2xf32>
    %403 = vector.shape_cast %402 : vector<1x1x2xf32> to vector<1x2xf32>
    %cst_200 = arith.constant dense<0.000000e+00> : vector<1x256xf32>
    %404 = tpu.matmul %403, %401, %cst_200 {dimension_numbers = #tpu.dot_dimension_numbers<[1], [0], [0], [1], [0, 0, 1, 1], [], []>} : vector<1x2xf32>, vector<2x256xf32>, vector<1x256xf32> -> vector<1x256xf32>
    %405 = arith.addf %396, %404 : vector<1x256xf32>
    %c241_i32_201 = arith.constant 241 : i32
    %406 = tpu.dynamic_rotate %355 by %c241_i32_201 dim 1 : vector<2x256xf32>, i32 -> vector<2x256xf32>
    %cst_202 = arith.constant 0.000000e+00 : f32
    %407 = vector.shape_cast %100 : vector<1x256xi1> to vector<1x256xi1>
    %408 = vector.broadcast %407 : vector<1x256xi1> to vector<2x256xi1>
    %409 = vector.broadcast %cst_202 : f32 to vector<2x256xf32>
    %410 = arith.select %408, %406, %409 : vector<2x256xi1>, vector<2x256xf32>
    %c6_203 = arith.constant 6 : index
    %c0_204 = arith.constant 0 : index
    %c0_205 = arith.constant 0 : index
    %411 = vector.load %arg8[%c6_203, %c0_204, %c0_205] : memref<9x1x2xf32, #tpu.memory_space<vmem>>, vector<1x1x2xf32>
    %412 = vector.shape_cast %411 : vector<1x1x2xf32> to vector<1x2xf32>
    %cst_206 = arith.constant dense<0.000000e+00> : vector<1x256xf32>
    %413 = tpu.matmul %412, %410, %cst_206 {dimension_numbers = #tpu.dot_dimension_numbers<[1], [0], [0], [1], [0, 0, 1, 1], [], []>} : vector<1x2xf32>, vector<2x256xf32>, vector<1x256xf32> -> vector<1x256xf32>
    %414 = arith.addf %405, %413 : vector<1x256xf32>
    %c240_i32_207 = arith.constant 240 : i32
    %415 = tpu.dynamic_rotate %355 by %c240_i32_207 dim 1 : vector<2x256xf32>, i32 -> vector<2x256xf32>
    %cst_208 = arith.constant 0.000000e+00 : f32
    %416 = vector.shape_cast %115 : vector<1x256xi1> to vector<1x256xi1>
    %417 = vector.broadcast %416 : vector<1x256xi1> to vector<2x256xi1>
    %418 = vector.broadcast %cst_208 : f32 to vector<2x256xf32>
    %419 = arith.select %417, %415, %418 : vector<2x256xi1>, vector<2x256xf32>
    %c7_209 = arith.constant 7 : index
    %c0_210 = arith.constant 0 : index
    %c0_211 = arith.constant 0 : index
    %420 = vector.load %arg8[%c7_209, %c0_210, %c0_211] : memref<9x1x2xf32, #tpu.memory_space<vmem>>, vector<1x1x2xf32>
    %421 = vector.shape_cast %420 : vector<1x1x2xf32> to vector<1x2xf32>
    %cst_212 = arith.constant dense<0.000000e+00> : vector<1x256xf32>
    %422 = tpu.matmul %421, %419, %cst_212 {dimension_numbers = #tpu.dot_dimension_numbers<[1], [0], [0], [1], [0, 0, 1, 1], [], []>} : vector<1x2xf32>, vector<2x256xf32>, vector<1x256xf32> -> vector<1x256xf32>
    %423 = arith.addf %414, %422 : vector<1x256xf32>
    %c239_i32_213 = arith.constant 239 : i32
    %424 = tpu.dynamic_rotate %355 by %c239_i32_213 dim 1 : vector<2x256xf32>, i32 -> vector<2x256xf32>
    %cst_214 = arith.constant 0.000000e+00 : f32
    %425 = vector.shape_cast %130 : vector<1x256xi1> to vector<1x256xi1>
    %426 = vector.broadcast %425 : vector<1x256xi1> to vector<2x256xi1>
    %427 = vector.broadcast %cst_214 : f32 to vector<2x256xf32>
    %428 = arith.select %426, %424, %427 : vector<2x256xi1>, vector<2x256xf32>
    %c8_215 = arith.constant 8 : index
    %c0_216 = arith.constant 0 : index
    %c0_217 = arith.constant 0 : index
    %429 = vector.load %arg8[%c8_215, %c0_216, %c0_217] : memref<9x1x2xf32, #tpu.memory_space<vmem>>, vector<1x1x2xf32>
    %430 = vector.shape_cast %429 : vector<1x1x2xf32> to vector<1x2xf32>
    %cst_218 = arith.constant dense<0.000000e+00> : vector<1x256xf32>
    %431 = tpu.matmul %430, %428, %cst_218 {dimension_numbers = #tpu.dot_dimension_numbers<[1], [0], [0], [1], [0, 0, 1, 1], [], []>} : vector<1x2xf32>, vector<2x256xf32>, vector<1x256xf32> -> vector<1x256xf32>
    %432 = arith.addf %423, %431 : vector<1x256xf32>
    %433 = arith.negf %432 : vector<1x256xf32>
    %434 = math.exp %433 : vector<1x256xf32>
    %cst_219 = arith.constant 1.000000e+00 : f32
    %435 = vector.broadcast %cst_219 : f32 to vector<1x256xf32>
    %436 = arith.addf %435, %434 : vector<1x256xf32>
    %437 = arith.divf %435, %436 : vector<1x256xf32>
    %438 = vector.broadcast %437 : vector<1x256xf32> to vector<16x256xf32>
    %439 = arith.mulf %348, %438 : vector<16x256xf32>
    %c0_220 = arith.constant 0 : index
    %c0_221 = arith.constant 0 : index
    %440 = vector.load %arg5[%c0_220, %c0_221] : memref<16x32xbf16, #tpu.memory_space<vmem>>, vector<16x32xbf16>
    %441 = arith.truncf %134 : vector<32x256xf32> to vector<32x256xbf16>
    %cst_222 = arith.constant dense<0.000000e+00> : vector<16x256xf32>
    %442 = tpu.matmul %440, %441, %cst_222 {dimension_numbers = #tpu.dot_dimension_numbers<[1], [0], [0], [1], [0, 0, 1, 1], [], []>} : vector<16x32xbf16>, vector<32x256xbf16>, vector<16x256xf32> -> vector<16x256xf32>
    %cst_223 = arith.constant dense<0.000000e+00> : vector<16xf32>
    %443 = vector.multi_reduction <add>, %442, %cst_223 [1] : vector<16x256xf32> to vector<16xf32>
    %444 = vector.shape_cast %443 : vector<16xf32> to vector<16x1xf32>
    %cst_224 = arith.constant 2.560000e+02 : f32
    %445 = vector.broadcast %cst_224 : f32 to vector<16x1xf32>
    %446 = arith.divf %444, %445 : vector<16x1xf32>
    %447 = vector.broadcast %446 : vector<16x1xf32> to vector<16x256xf32>
    %448 = arith.subf %442, %447 : vector<16x256xf32>
    %449 = arith.mulf %448, %448 : vector<16x256xf32>
    %cst_225 = arith.constant dense<0.000000e+00> : vector<16xf32>
    %450 = vector.multi_reduction <add>, %449, %cst_225 [1] : vector<16x256xf32> to vector<16xf32>
    %451 = vector.shape_cast %450 : vector<16xf32> to vector<16x1xf32>
    %cst_226 = arith.constant 2.560000e+02 : f32
    %452 = vector.broadcast %cst_226 : f32 to vector<16x1xf32>
    %453 = arith.divf %451, %452 : vector<16x1xf32>
    %cst_227 = arith.constant 9.99999974E-6 : f32
    %454 = vector.broadcast %cst_227 : f32 to vector<16x1xf32>
    %455 = arith.addf %453, %454 : vector<16x1xf32>
    %456 = math.rsqrt %455 : vector<16x1xf32>
    %457 = vector.broadcast %456 : vector<16x1xf32> to vector<16x256xf32>
    %458 = arith.mulf %448, %457 : vector<16x256xf32>
    %cst_228 = arith.constant 0.000000e+00 : f32
    %459 = vector.broadcast %cst_228 : f32 to vector<16x256xf32>
    %460 = arith.maximumf %458, %459 : vector<16x256xf32>
    %461 = arith.addf %439, %460 : vector<16x256xf32>
    %c0_229 = arith.constant 0 : index
    %c0_230 = arith.constant 0 : index
    %c0_231 = arith.constant 0 : index
    %462 = vector.load %arg9[%c0_229, %c0_230, %c0_231] : memref<1x16x256xf32, #tpu.memory_space<vmem>>, vector<1x16x256xf32>
    %463 = vector.shape_cast %462 : vector<1x16x256xf32> to vector<16x256xf32>
    %464 = vector.shape_cast %461 : vector<16x256xf32> to vector<1x16x256xf32>
    tpu.vector_store %arg9[%c0_229, %c0_230, %c0_231], %464 {strides = array<i32>} : memref<1x16x256xf32, #tpu.memory_space<vmem>>, vector<1x16x256xf32>,
    return
  }
  func.func @transform_0(%arg0: i32) -> (i32, i32, i32) {
    %c0_i32 = arith.constant 0 : i32
    %c0_i32_0 = arith.constant 0 : i32
    %c0_i32_1 = arith.constant 0 : i32
    return %arg0, %c0_i32, %c0_i32_0 : i32, i32, i32
  }
  func.func @transform_1(%arg0: i32) -> (i32, i32) {
    %c0_i32 = arith.constant 0 : i32
    %c0_i32_0 = arith.constant 0 : i32
    %c0_i32_1 = arith.constant 0 : i32
    return %c0_i32, %c0_i32_0 : i32, i32
  }
  func.func @transform_2(%arg0: i32) -> (i32, i32, i32) {
    %c0_i32 = arith.constant 0 : i32
    %c0_i32_0 = arith.constant 0 : i32
    %c0_i32_1 = arith.constant 0 : i32
    %c0_i32_2 = arith.constant 0 : i32
    return %c0_i32, %c0_i32_0, %c0_i32_1 : i32, i32, i32
  }
  func.func @transform_3(%arg0: i32) -> (i32, i32, i32) {
    %c0_i32 = arith.constant 0 : i32
    %c0_i32_0 = arith.constant 0 : i32
    %c0_i32_1 = arith.constant 0 : i32
    %c0_i32_2 = arith.constant 0 : i32
    return %c0_i32, %c0_i32_0, %c0_i32_1 : i32, i32, i32
  }
  func.func @transform_4(%arg0: i32) -> (i32, i32) {
    %c0_i32 = arith.constant 0 : i32
    %c0_i32_0 = arith.constant 0 : i32
    %c0_i32_1 = arith.constant 0 : i32
    return %c0_i32, %c0_i32_0 : i32, i32
  }
  func.func @transform_5(%arg0: i32) -> (i32, i32) {
    %c0_i32 = arith.constant 0 : i32
    %c0_i32_0 = arith.constant 0 : i32
    %c0_i32_1 = arith.constant 0 : i32
    return %c0_i32, %c0_i32_0 : i32, i32
  }
  func.func @transform_6(%arg0: i32) -> (i32, i32) {
    %c0_i32 = arith.constant 0 : i32
    %c0_i32_0 = arith.constant 0 : i32
    %c0_i32_1 = arith.constant 0 : i32
    return %c0_i32, %c0_i32_0 : i32, i32
  }
  func.func @transform_7(%arg0: i32) -> (i32, i32, i32) {
    %c0_i32 = arith.constant 0 : i32
    %c0_i32_0 = arith.constant 0 : i32
    %c0_i32_1 = arith.constant 0 : i32
    %c0_i32_2 = arith.constant 0 : i32
    return %c0_i32, %c0_i32_0, %c0_i32_1 : i32, i32, i32
  }
  func.func @transform_8(%arg0: i32) -> (i32, i32, i32) {
    %c0_i32 = arith.constant 0 : i32
    %c0_i32_0 = arith.constant 0 : i32
    %c0_i32_1 = arith.constant 0 : i32
    return %arg0, %c0_i32, %c0_i32_0 : i32, i32, i32
  }
}

</mosaic_0001>

<llo_original>
// kernel: tpu_custom_call.1
$region0: #{tpu_custom_call.1}
  #allocation0 [shape = 'u32[]', space=smem, size = 0x4, offset = 0x4, fixed_abs, tag = 'smem constant byte address 0x4 - core index']
  #allocation1 [shape = 'u32[144,128]{1,0:T(1,128)}', space=vmem, size = 0x12000, scoped, tag = 'internal scratch']
  %s0 = inlined_call_operand.hbm [shape: f32[2,32,64], index: 0, kind: input, shape index: {}]
  %s1 = inlined_call_operand.hbm [shape: f32[64,256], index: 1, kind: input, shape index: {}]
  %s2 = inlined_call_operand.hbm [shape: bf16[9,32,32], index: 2, kind: input, shape index: {}]
  %s3 = inlined_call_operand.hbm [shape: bf16[9,16,32], index: 3, kind: input, shape index: {}]
  %s4 = inlined_call_operand.vmem [shape: bf16[16,32], index: 4, kind: input, shape index: {}]
  %s5 = inlined_call_operand.vmem [shape: f32[1,16], index: 5, kind: input, shape index: {}]
  %s6 = inlined_call_operand.vmem [shape: f32[16,1], index: 6, kind: input, shape index: {}]
  %s7 = inlined_call_operand.vmem [shape: f32[9,1,2], index: 7, kind: input, shape index: {}]
  %s8 = inlined_call_operand.hbm [shape: f32[2,16,256], index: 8, kind: output, shape index: {}]
  %s9 = sld [smem:[#allocation0]]
  $region81: #{tpu_custom_call.1} parent=0
    _
  %s11 = ssub.s32 1, %s9
  %s12 = scalar_select 0, %s11, %s9
  $region1: #{tpu_custom_call.1} parent=0
    #allocation2 [shape = 'u8[32768]{0}', space=vmem, size = 0x8000, scoped, tag = 'input window, operand 0']
    #allocation3 [shape = 's32[2]{0}', space=sflag, size = 0x8, scoped, tag = 'scoped memory for tpu_custom_call.1']
    #allocation4 [shape = 's32[2]{0}', space=sflag, size = 0x8, scoped, tag = 'scoped memory for tpu_custom_call.1']
    #allocation5 [shape = 'u8[65536]{0}', space=vmem, size = 0x10000, scoped, tag = 'input window, operand 1, single buffered']
    #allocation6 [shape = 's32[1]{0}', space=sflag, size = 0x4, scoped, tag = 'scoped memory for tpu_custom_call.1']
    #allocation7 [shape = 'u8[73728]{0}', space=vmem, size = 0x12000, scoped, tag = 'input window, operand 2, single buffered']
    #allocation8 [shape = 'u8[36864]{0}', space=vmem, size = 0x9000, scoped, tag = 'input window, operand 3, single buffered']
    #allocation9 [shape = 's32[1]{0}', space=sflag, size = 0x4, scoped, tag = 'scoped memory for tpu_custom_call.1']
    #allocation10 [shape = 'u8[32768]{0}', space=vmem, size = 0x8000, scoped, tag = 'output window, operand 0']
    %13 = vsyncpa [#allocation3], 0
    %s14 = scalar_lea.sflag [#allocation3], 1
    %15 = vsyncpa %s14, 0
    %16 = vsyncpa [#allocation6], 0
    %17 = vsyncpa [#allocation9], 0
    %18 = vsyncpa [#allocation4], 0
    %s19 = scalar_lea.sflag [#allocation4], 1
    %20 = vsyncpa %s19, 0
    loop: start=0, step=1, limit=4
    $region2: #{tpu_custom_call.1} parent=1 // loop_pre_header
      _
    $region3: #{tpu_custom_call.1} parent=1 // loop_header
      %s22 = sphi 0, %s26
      %p23 = scmp.ge.s32.totalorder %s22, 4
      %s32 = sphi 0, %s34
      %s35 = sphi 0, %s32
      %s36 = sphi 0, %s35
      %s52 = sphi 0, %s36
      %s56 = sphi 0, %s56
      %s58 = sphi 0, %s56
      %s59 = sphi 0, %s58
      %s73 = sphi 0, %s59
      %s77 = sphi 0, %s77
      %s79 = sphi 0, %s77
      %s80 = sphi 0, %s79
      %s94 = sphi 0, %s80
      %s98 = sphi 0, %s98
      %s100 = sphi 0, %s98
      %s101 = sphi 0, %s100
      %s115 = sphi 0, %s101
      %s119 = sphi 0, %s119
      %s121 = sphi 0, %s119
      %s122 = sphi 0, %s121
      %s136 = sphi 0, %s122
      %s140 = sphi 0, %s140
      %s142 = sphi 0, %s140
      %s143 = sphi 0, %s142
      %s157 = sphi 0, %s143
      %s161 = sphi 0, %s161
      %s163 = sphi 0, %s161
      %s164 = sphi 0, %s163
      %s178 = sphi 0, %s164
      %s182 = sphi 0, %s182
      %s184 = sphi 0, %s182
      %s185 = sphi 0, %s184
      %s199 = sphi 0, %s185
      %s205 = sphi 0, %s207
      %s208 = sphi 0, %s205
      %s209 = sphi 0, %s208
      %s225 = sphi 0, %s209
    $region4: #{tpu_custom_call.1} parent=1 // loop_header_branch
      %25 = sbr.rel (%p23) target = $region8
    $region5: #{tpu_custom_call.1} parent=1 // loop_body
      %s27 = ssub.s32 %s22, 1
      %s28 = ssub.s32 %s22, 2
      %s29 = sadd.s32 %s22, 1
      %s30 = ssub.s32 %s22, %s29
      %p31 = scmp.eq.s32.totalorder %s30, 0
      %s33 = sadd.s32 %s32, 1
      %s34 = scalar_select %p31, %s32, %s33
      %p37 = pneg %p31
      %p38 = scmp.eq.s32.totalorder %s22, 1
      %p39 = por %p37, %p38
      %p40 = scmp.ne.s32.totalorder %s32, %s35
      %p41 = scmp.eq.s32.totalorder %s22, 0
      %p42 = por %p40, %p41
      %p43 = scmp.ne.s32.totalorder %s32, %s35
      %p44 = scmp.eq.s32.totalorder %s27, 1
      %p45 = por %p43, %p44
      %p46 = scmp.ne.s32.totalorder %s35, %s36
      %p47 = scmp.eq.s32.totalorder %s27, 0
      %p48 = por %p46, %p47
      %p49 = scmp.ne.s32.totalorder %s35, %s36
      %p50 = scmp.eq.s32.totalorder %s28, 1
      %p51 = por %p49, %p50
      %p53 = scmp.ne.s32.totalorder %s36, %s52
      %p54 = scmp.eq.s32.totalorder %s28, 0
      %p55 = por %p53, %p54
      %s57 = sadd.s32 %s56, 1
      %p60 = scmp.eq.s32.totalorder %s22, 1
      %p61 = scmp.ne.s32.totalorder %s56, %s58
      %p62 = scmp.eq.s32.totalorder %s22, 0
      %p63 = por %p61, %p62
      %p64 = scmp.ne.s32.totalorder %s56, %s58
      %p65 = scmp.eq.s32.totalorder %s27, 1
      %p66 = por %p64, %p65
      %p67 = scmp.ne.s32.totalorder %s58, %s59
      %p68 = scmp.eq.s32.totalorder %s27, 0
      %p69 = por %p67, %p68
      %p70 = scmp.ne.s32.totalorder %s58, %s59
      %p71 = scmp.eq.s32.totalorder %s28, 1
      %p72 = por %p70, %p71
      %p74 = scmp.ne.s32.totalorder %s59, %s73
      %p75 = scmp.eq.s32.totalorder %s28, 0
      %p76 = por %p74, %p75
      %s78 = sadd.s32 %s77, 1
      %p81 = scmp.eq.s32.totalorder %s22, 1
      %p82 = scmp.ne.s32.totalorder %s77, %s79
      %p83 = scmp.eq.s32.totalorder %s22, 0
      %p84 = por %p82, %p83
      %p85 = scmp.ne.s32.totalorder %s77, %s79
      %p86 = scmp.eq.s32.totalorder %s27, 1
      %p87 = por %p85, %p86
      %p88 = scmp.ne.s32.totalorder %s79, %s80
      %p89 = scmp.eq.s32.totalorder %s27, 0
      %p90 = por %p88, %p89
      %p91 = scmp.ne.s32.totalorder %s79, %s80
      %p92 = scmp.eq.s32.totalorder %s28, 1
      %p93 = por %p91, %p92
      %p95 = scmp.ne.s32.totalorder %s80, %s94
      %p96 = scmp.eq.s32.totalorder %s28, 0
      %p97 = por %p95, %p96
      %s99 = sadd.s32 %s98, 1
      %p102 = scmp.eq.s32.totalorder %s22, 1
      %p103 = scmp.ne.s32.totalorder %s98, %s100
      %p104 = scmp.eq.s32.totalorder %s22, 0
      %p105 = por %p103, %p104
      %p106 = scmp.ne.s32.totalorder %s98, %s100
      %p107 = scmp.eq.s32.totalorder %s27, 1
      %p108 = por %p106, %p107
      %p109 = scmp.ne.s32.totalorder %s100, %s101
      %p110 = scmp.eq.s32.totalorder %s27, 0
      %p111 = por %p109, %p110
      %p112 = scmp.ne.s32.totalorder %s100, %s101
      %p113 = scmp.eq.s32.totalorder %s28, 1
      %p114 = por %p112, %p113
      %p116 = scmp.ne.s32.totalorder %s101, %s115
      %p117 = scmp.eq.s32.totalorder %s28, 0
      %p118 = por %p116, %p117
      %s120 = sadd.s32 %s119, 1
      %p123 = scmp.eq.s32.totalorder %s22, 1
      %p124 = scmp.ne.s32.totalorder %s119, %s121
      %p125 = scmp.eq.s32.totalorder %s22, 0
      %p126 = por %p124, %p125
      %p127 = scmp.ne.s32.totalorder %s119, %s121
      %p128 = scmp.eq.s32.totalorder %s27, 1
      %p129 = por %p127, %p128
      %p130 = scmp.ne.s32.totalorder %s121, %s122
      %p131 = scmp.eq.s32.totalorder %s27, 0
      %p132 = por %p130, %p131
      %p133 = scmp.ne.s32.totalorder %s121, %s122
      %p134 = scmp.eq.s32.totalorder %s28, 1
      %p135 = por %p133, %p134
      %p137 = scmp.ne.s32.totalorder %s122, %s136
      %p138 = scmp.eq.s32.totalorder %s28, 0
      %p139 = por %p137, %p138
      %s141 = sadd.s32 %s140, 1
      %p144 = scmp.eq.s32.totalorder %s22, 1
      %p145 = scmp.ne.s32.totalorder %s140, %s142
      %p146 = scmp.eq.s32.totalorder %s22, 0
      %p147 = por %p145, %p146
      %p148 = scmp.ne.s32.totalorder %s140, %s142
      %p149 = scmp.eq.s32.totalorder %s27, 1
      %p150 = por %p148, %p149
      %p151 = scmp.ne.s32.totalorder %s142, %s143
      %p152 = scmp.eq.s32.totalorder %s27, 0
      %p153 = por %p151, %p152
      %p154 = scmp.ne.s32.totalorder %s142, %s143
      %p155 = scmp.eq.s32.totalorder %s28, 1
      %p156 = por %p154, %p155
      %p158 = scmp.ne.s32.totalorder %s143, %s157
      %p159 = scmp.eq.s32.totalorder %s28, 0
      %p160 = por %p158, %p159
      %s162 = sadd.s32 %s161, 1
      %p165 = scmp.eq.s32.totalorder %s22, 1
      %p166 = scmp.ne.s32.totalorder %s161, %s163
      %p167 = scmp.eq.s32.totalorder %s22, 0
      %p168 = por %p166, %p167
      %p169 = scmp.ne.s32.totalorder %s161, %s163
      %p170 = scmp.eq.s32.totalorder %s27, 1
      %p171 = por %p169, %p170
      %p172 = scmp.ne.s32.totalorder %s163, %s164
      %p173 = scmp.eq.s32.totalorder %s27, 0
      %p174 = por %p172, %p173
      %p175 = scmp.ne.s32.totalorder %s163, %s164
      %p176 = scmp.eq.s32.totalorder %s28, 1
      %p177 = por %p175, %p176
      %p179 = scmp.ne.s32.totalorder %s164, %s178
      %p180 = scmp.eq.s32.totalorder %s28, 0
      %p181 = por %p179, %p180
      %s183 = sadd.s32 %s182, 1
      %p186 = scmp.eq.s32.totalorder %s22, 1
      %p187 = scmp.ne.s32.totalorder %s182, %s184
      %p188 = scmp.eq.s32.totalorder %s22, 0
      %p189 = por %p187, %p188
      %p190 = scmp.ne.s32.totalorder %s182, %s184
      %p191 = scmp.eq.s32.totalorder %s27, 1
      %p192 = por %p190, %p191
      %p193 = scmp.ne.s32.totalorder %s184, %s185
      %p194 = scmp.eq.s32.totalorder %s27, 0
      %p195 = por %p193, %p194
      %p196 = scmp.ne.s32.totalorder %s184, %s185
      %p197 = scmp.eq.s32.totalorder %s28, 1
      %p198 = por %p196, %p197
      %p200 = scmp.ne.s32.totalorder %s185, %s199
      %p201 = scmp.eq.s32.totalorder %s28, 0
      %p202 = por %p200, %p201
      %s203 = ssub.s32 %s22, %s29
      %p204 = scmp.eq.s32.totalorder %s203, 0
      %s206 = sadd.s32 %s205, 1
      %s207 = scalar_select %p204, %s205, %s206
      %p210 = pneg %p204
      %p211 = scmp.eq.s32.totalorder %s22, 1
      %p212 = por %p210, %p211
      %p213 = scmp.ne.s32.totalorder %s205, %s208
      %p214 = scmp.eq.s32.totalorder %s22, 0
      %p215 = por %p213, %p214
      %p216 = scmp.ne.s32.totalorder %s205, %s208
      %p217 = scmp.eq.s32.totalorder %s27, 1
      %p218 = por %p216, %p217
      %p219 = scmp.ne.s32.totalorder %s208, %s209
      %p220 = scmp.eq.s32.totalorder %s27, 0
      %p221 = por %p219, %p220
      %p222 = scmp.ne.s32.totalorder %s208, %s209
      %p223 = scmp.eq.s32.totalorder %s28, 1
      %p224 = por %p222, %p223
      %p226 = scmp.ne.s32.totalorder %s209, %s225
      %p227 = scmp.eq.s32.totalorder %s28, 0
      %p228 = por %p226, %p227
      %p229 = scmp.le.s32.totalorder 1, %s22
      %p230 = scmp.lt.s32.totalorder %s22, 3
      %p231 = pnand %p229, %p230
      %p232 = pneg %p231
      // Predicated region
      $region9: #{tpu_custom_call.1} parent=5 // pred_check
        _
      $region10: #{tpu_custom_call.1} parent=5 // pred_check_branch
        %234 = sbr.rel (%p231) target = $region12
      $region11: #{tpu_custom_call.1} parent=5 // pred_region
        %s235 = ssub.s32 %s22, 1
        // Predicated region
        $region13: #{tpu_custom_call.1} parent=11 // pred_check
          %p236 = pneg %p69
        $region14: #{tpu_custom_call.1} parent=11 // pred_check_branch
          %238 = sbr.rel (%p236) target = $region16
        $region15: #{tpu_custom_call.1} parent=11 // pred_region
          %s240 = ssub.s32 2048, 2048
          %241 = vsyncadd [#allocation6], %s240
          %s242 = sshll.u32 [#allocation5], 4
          %s243 = int_to_ptr.vmem [resolvable:$true] %s242
          %248 = dma.hbm_to_vmem [thread:$0]  %s1, 2048, %s243, [#allocation6], 256, 256, 16
        $region16: #{tpu_custom_call.1} parent=11 // pred_fallthru
          _
        // Predicated region
        $region17: #{tpu_custom_call.1} parent=11 // pred_check
          %p249 = pneg %p90
        $region18: #{tpu_custom_call.1} parent=11 // pred_check_branch
          %251 = sbr.rel (%p249) target = $region20
        $region19: #{tpu_custom_call.1} parent=11 // pred_region
          %s253 = ssub.s32 2304, 2304
          %254 = vsyncadd [#allocation6], %s253
          %s255 = sshll.u32 [#allocation7], 4
          %s256 = int_to_ptr.vmem [resolvable:$true] %s255
          %261 = dma.hbm_to_vmem [thread:$0]  %s2, 2304, %s256, [#allocation6], 64, 64, 4
        $region20: #{tpu_custom_call.1} parent=11 // pred_fallthru
          _
        // Predicated region
        $region21: #{tpu_custom_call.1} parent=11 // pred_check
          %p262 = pneg %p111
        $region22: #{tpu_custom_call.1} parent=11 // pred_check_branch
          %264 = sbr.rel (%p262) target = $region24
        $region23: #{tpu_custom_call.1} parent=11 // pred_region
          %s266 = ssub.s32 1152, 1152
          %267 = vsyncadd [#allocation9], %s266
          %s268 = sshll.u32 [#allocation8], 4
          %s269 = int_to_ptr.vmem [resolvable:$true] %s268
          %274 = dma.hbm_to_vmem [thread:$0]  %s3, 1152, %s269, [#allocation9], 64, 64, 4
        $region24: #{tpu_custom_call.1} parent=11 // pred_fallthru
          _
        // Predicated region
        $region25: #{tpu_custom_call.1} parent=11 // pred_check
          %p275 = pneg %p132
        $region26: #{tpu_custom_call.1} parent=11 // pred_check_branch
          %277 = sbr.rel (%p275) target = $region28
        $region27: #{tpu_custom_call.1} parent=11 // pred_region
          _
        $region28: #{tpu_custom_call.1} parent=11 // pred_fallthru
          _
        // Predicated region
        $region29: #{tpu_custom_call.1} parent=11 // pred_check
          %p278 = pneg %p153
        $region30: #{tpu_custom_call.1} parent=11 // pred_check_branch
          %280 = sbr.rel (%p278) target = $region32
        $region31: #{tpu_custom_call.1} parent=11 // pred_region
          _
        $region32: #{tpu_custom_call.1} parent=11 // pred_fallthru
          _
        // Predicated region
        $region33: #{tpu_custom_call.1} parent=11 // pred_check
          %p281 = pneg %p174
        $region34: #{tpu_custom_call.1} parent=11 // pred_check_branch
          %283 = sbr.rel (%p281) target = $region36
        $region35: #{tpu_custom_call.1} parent=11 // pred_region
          _
        $region36: #{tpu_custom_call.1} parent=11 // pred_fallthru
          _
        // Predicated region
        $region37: #{tpu_custom_call.1} parent=11 // pred_check
          %p284 = pneg %p195
        $region38: #{tpu_custom_call.1} parent=11 // pred_check_branch
          %286 = sbr.rel (%p284) target = $region40
        $region39: #{tpu_custom_call.1} parent=11 // pred_region
          _
        $region40: #{tpu_custom_call.1} parent=11 // pred_fallthru
          _
      $region12: #{tpu_custom_call.1} parent=5 // pred_fallthru
        _
      %p287 = scmp.lt.s32.totalorder %s22, 2
      // Predicated region
      $region41: #{tpu_custom_call.1} parent=5 // pred_check
        %p288 = pneg %p287
      $region42: #{tpu_custom_call.1} parent=5 // pred_check_branch
        %290 = sbr.rel (%p288) target = $region44
      $region43: #{tpu_custom_call.1} parent=5 // pred_region
        // Predicated region
        $region45: #{tpu_custom_call.1} parent=43 // pred_check
          %p291 = pneg %p42
        $region46: #{tpu_custom_call.1} parent=43 // pred_check_branch
          %293 = sbr.rel (%p291) target = $region48
        $region47: #{tpu_custom_call.1} parent=43 // pred_region
          %s294 = sand.u32 %s32, 1
          %s295 = scalar_lea.sflag [#allocation3], %s294
          %s296 = sand.u32 %s32, 1
          %s297 = smul.addr %s296, 32
          %s298 = scalar_lea.vmem [#allocation2], %s297
          %s300 = ssub.s32 512, 512
          %301 = vsyncadd %s295, %s300
          %s302 = smul.addr %s22, 4
          %s303 = smul.addr %s302, 128
          %s304 = scalar_lea.hbm %s0, %s303
          %s305 = sshll.u32 %s298, 4
          %s306 = int_to_ptr.vmem [resolvable:$true] %s305
          %311 = dma.hbm_to_vmem [thread:$0]  %s304, 512, %s306, %s295, 128, 128, 8
        $region48: #{tpu_custom_call.1} parent=43 // pred_fallthru
          _
      $region44: #{tpu_custom_call.1} parent=5 // pred_fallthru
        _
      %p312 = scmp.le.s32.totalorder 1, %s22
      %p313 = scmp.lt.s32.totalorder %s22, 3
      %p314 = pnand %p312, %p313
      %p315 = pneg %p314
      // Predicated region
      $region49: #{tpu_custom_call.1} parent=5 // pred_check
        _
      $region50: #{tpu_custom_call.1} parent=5 // pred_check_branch
        %317 = sbr.rel (%p314) target = $region52
      $region51: #{tpu_custom_call.1} parent=5 // pred_region
        %s318 = ssub.s32 %s22, 1
        %s319 = sand.u32 %s35, 1
        %s320 = scalar_lea.sflag [#allocation3], %s319
        %s321 = sand.u32 %s35, 1
        %s322 = smul.addr %s321, 32
        %s323 = scalar_lea.vmem [#allocation2], %s322
        // Predicated region
        $region53: #{tpu_custom_call.1} parent=51 // pred_check
          %p324 = pneg %p48
        $region54: #{tpu_custom_call.1} parent=51 // pred_check_branch
          %326 = sbr.rel (%p324) target = $region56
        $region55: #{tpu_custom_call.1} parent=51 // pred_region
          %327 = dma.done %s320, 512
        $region56: #{tpu_custom_call.1} parent=51 // pred_fallthru
          _
        // Predicated region
        $region57: #{tpu_custom_call.1} parent=51 // pred_check
          %p328 = pneg %p69
        $region58: #{tpu_custom_call.1} parent=51 // pred_check_branch
          %330 = sbr.rel (%p328) target = $region60
        $region59: #{tpu_custom_call.1} parent=51 // pred_region
          %331 = dma.done [#allocation6], 2048
        $region60: #{tpu_custom_call.1} parent=51 // pred_fallthru
          _
        // Predicated region
        $region61: #{tpu_custom_call.1} parent=51 // pred_check
          %p332 = pneg %p90
        $region62: #{tpu_custom_call.1} parent=51 // pred_check_branch
          %334 = sbr.rel (%p332) target = $region64
        $region63: #{tpu_custom_call.1} parent=51 // pred_region
          %335 = dma.done [#allocation6], 2304
        $region64: #{tpu_custom_call.1} parent=51 // pred_fallthru
          _
        // Predicated region
        $region65: #{tpu_custom_call.1} parent=51 // pred_check
          %p336 = pneg %p111
        $region66: #{tpu_custom_call.1} parent=51 // pred_check_branch
          %338 = sbr.rel (%p336) target = $region68
        $region67: #{tpu_custom_call.1} parent=51 // pred_region
          %339 = dma.done [#allocation9], 1152
        $region68: #{tpu_custom_call.1} parent=51 // pred_fallthru
          _
        %s340 = sand.u32 %s35, 1
        %s341 = scalar_lea.sflag [#allocation3], %s340
        %s342 = sand.u32 %s35, 1
        %s343 = smul.addr %s342, 32
        %s344 = scalar_lea.vmem [#allocation2], %s343
        %p345 = pneg %p48
        %p346 = pneg %p45
        %p347 = pneg %p69
        %p348 = pneg %p66
        %p349 = pneg %p90
        %p350 = pneg %p87
        %p351 = pneg %p111
        %p352 = pneg %p108
        %p353 = pneg %p132
        %p354 = pneg %p129
        %p355 = pneg %p153
        %p356 = pneg %p150
        %p357 = pneg %p174
        %p358 = pneg %p171
        %p359 = pneg %p195
        %p360 = pneg %p192
        %p361 = pneg %p221
        %p362 = pneg %p218
        %s363 = sand.u32 %s208, 1
        %s364 = scalar_lea.sflag [#allocation4], %s363
        %s365 = sand.u32 %s208, 1
        %s366 = smul.addr %s365, 32
        %s367 = scalar_lea.vmem [#allocation10], %s366
        %v369 = vlaneseq
        %v370 = vand.u32 %v369, 127
        %v371 = vadd.s32 %v370, 128
        %v372 = vcvt.s32.f32 %v370
        %v373 = vcvt.s32.f32 %v371
        %v374 = vadd.f32 %v372, 0.5
        %v375 = vadd.f32 %v373, 0.5
        %v376 = vmul.f32 %v374, 0.0625
        %v377 = vmul.f32 %v375, 0.0625
        %v378 = vfloor.f32 %v376
        %v379 = vfloor.f32 %v377
        %v380 = vcvt.f32.s32.to.zero.pseudo %v378
        %v381 = vcvt.f32.s32.to.zero.pseudo %v379
        %v382 = vmul.u32 %v380, 16
        %v383 = vmul.u32 %v381, 16
        %v384 = vsub.s32 %v370, %v382
        %v385 = vsub.s32 %v371, %v383
        %v386 = vadd.s32 %v380, 4294967295
        %v387 = vadd.s32 %v381, 4294967295
        %v388 = vadd.s32 %v384, 4294967295
        %v389 = vadd.s32 %v385, 4294967295
        %vm390 = vcmp.ge.s32.totalorder %v386, 0
        %vm391 = vcmp.ge.s32.totalorder %v387, 0
        %vm392 = vcmp.lt.s32.totalorder %v386, 16
        %vm393 = vcmp.lt.s32.totalorder %v387, 16
        %vm394 = vmand %vm390, %vm392
        %vm395 = vmand %vm391, %vm393
        %vm396 = vcmp.ge.s32.totalorder %v388, 0
        %vm397 = vcmp.ge.s32.totalorder %v389, 0
        %vm398 = vmand %vm394, %vm396
        %vm399 = vmand %vm395, %vm397
        %vm400 = vcmp.lt.s32.totalorder %v388, 16
        %vm401 = vcmp.lt.s32.totalorder %v389, 16
        %vm402 = vmand %vm398, %vm400
        %vm403 = vmand %vm399, %vm401
        %vm404 = vcmp.ge.s32.totalorder %v384, 0
        %vm405 = vcmp.ge.s32.totalorder %v385, 0
        %vm406 = vmand %vm394, %vm404
        %vm407 = vmand %vm395, %vm405
        %vm408 = vcmp.lt.s32.totalorder %v384, 16
        %vm409 = vcmp.lt.s32.totalorder %v385, 16
        %vm410 = vmand %vm406, %vm408
        %vm411 = vmand %vm407, %vm409
        %v412 = vadd.s32 %v384, 1
        %v413 = vadd.s32 %v385, 1
        %vm414 = vcmp.ge.s32.totalorder %v412, 0
        %vm415 = vcmp.ge.s32.totalorder %v413, 0
        %vm416 = vmand %vm394, %vm414
        %vm417 = vmand %vm395, %vm415
        %vm418 = vcmp.lt.s32.totalorder %v412, 16
        %vm419 = vcmp.lt.s32.totalorder %v413, 16
        %vm420 = vmand %vm416, %vm418
        %vm421 = vmand %vm417, %vm419
        %vm422 = vcmp.ge.s32.totalorder %v380, 0
        %vm423 = vcmp.ge.s32.totalorder %v381, 0
        %vm424 = vcmp.lt.s32.totalorder %v380, 16
        %vm425 = vcmp.lt.s32.totalorder %v381, 16
        %vm426 = vmand %vm422, %vm424
        %vm427 = vmand %vm423, %vm425
        %vm428 = vmand %vm426, %vm396
        %vm429 = vmand %vm427, %vm397
        %vm430 = vmand %vm428, %vm400
        %vm431 = vmand %vm429, %vm401
        %vm432 = vmand %vm426, %vm414
        %vm433 = vmand %vm427, %vm415
        %vm434 = vmand %vm432, %vm418
        %vm435 = vmand %vm433, %vm419
        %v436 = vadd.s32 %v380, 1
        %v437 = vadd.s32 %v381, 1
        %vm438 = vcmp.ge.s32.totalorder %v436, 0
        %vm439 = vcmp.ge.s32.totalorder %v437, 0
        %vm440 = vcmp.lt.s32.totalorder %v436, 16
        %vm441 = vcmp.lt.s32.totalorder %v437, 16
        %vm442 = vmand %vm438, %vm440
        %vm443 = vmand %vm439, %vm441
        %vm444 = vmand %vm442, %vm396
        %vm445 = vmand %vm443, %vm397
        %vm446 = vmand %vm444, %vm400
        %vm447 = vmand %vm445, %vm401
        %vm448 = vmand %vm442, %vm404
        %vm449 = vmand %vm443, %vm405
        %vm450 = vmand %vm448, %vm408
        %vm451 = vmand %vm449, %vm409
        %vm452 = vmand %vm442, %vm414
        %vm453 = vmand %vm443, %vm415
        %vm454 = vmand %vm452, %vm418
        %vm455 = vmand %vm453, %vm419
        %v456 = vld [vmem:[%s323] sm:$0xff]
        %v457 = vld [vmem:[%s323 + $0x8] sm:$0xff]
        %v458 = vld [vmem:[%s323 + $0x10] sm:$0xff]
        %v459 = vld [vmem:[%s323 + $0x18] sm:$0xff]
        %v460 = vld [vmem:[#allocation5] sm:$0xff]
        %v461 = vld [vmem:[#allocation5 + $0x8] sm:$0xff]
        %v462 = vld [vmem:[#allocation5 + $0x10] sm:$0xff]
        %v463 = vld [vmem:[#allocation5 + $0x18] sm:$0xff]
        %v464 = vld [vmem:[#allocation5 + $0x20] sm:$0xff]
        %v465 = vld [vmem:[#allocation5 + $0x28] sm:$0xff]
        %v466 = vld [vmem:[#allocation5 + $0x30] sm:$0xff]
        %v467 = vld [vmem:[#allocation5 + $0x38] sm:$0xff]
        %v468 = vld [vmem:[#allocation5 + $0x40] sm:$0xff]
        %v469 = vld [vmem:[#allocation5 + $0x48] sm:$0xff]
        %v470 = vld [vmem:[#allocation5 + $0x50] sm:$0xff]
        %v471 = vld [vmem:[#allocation5 + $0x58] sm:$0xff]
        %v472 = vld [vmem:[#allocation5 + $0x60] sm:$0xff]
        %v473 = vld [vmem:[#allocation5 + $0x68] sm:$0xff]
        %v474 = vld [vmem:[#allocation5 + $0x70] sm:$0xff]
        %v475 = vld [vmem:[#allocation5 + $0x78] sm:$0xff]
        %vm476 = vcmask 523264
        %v478 = vsel %vm476, %v456, 0
        %v481 = vsel %vm476, %v457, 0
        %v484 = vsel %vm476, %v458, 0
        %v487 = vsel %vm476, %v459, 0
        %489 = vmatprep.subr.mxu0 0.0
        %490 = vmatpush1.msra.mxu0 0.0
        %491 = vmatprep.subr.mxu0 0.0
        %492 = vmatpush1.msra.mxu0 0.0
        %493 = vmatprep.subr.mxu0 0.0
        %494 = vmatpush1.msra.mxu0 0.0
        %495 = vmatprep.subr.mxu0 0.0
        %496 = vmatpush1.msra.mxu0 0.0
        %497 = vmatprep.subr.mxu0 0.0
        %498 = vmatpush1.msra.mxu0 0.0
        %499 = vmatprep.subr.mxu0 0.0
        %500 = vmatpush1.msra.mxu0 0.0
        %501 = vmatprep.subr.mxu0 0.0
        %502 = vmatpush1.msra.mxu0 0.0
        %503 = vmatprep.subr.mxu0 0.0
        %504 = vmatpush1.msra.mxu0 0.0
        %505 = vmatprep.subr.mxu0 %v475
        %506 = vmatpush1.msra.mxu0 %v474
        %507 = vmatprep.subr.mxu0 %v473
        %508 = vmatpush1.msra.mxu0 %v472
        %509 = vmatprep.subr.mxu0 %v471
        %510 = vmatpush1.msra.mxu0 %v470
        %511 = vmatprep.subr.mxu0 %v469
        %512 = vmatpush1.msra.mxu0 %v468
        %513 = vmatprep.subr.mxu0 %v467
        %514 = vmatpush1.msra.mxu0 %v466
        %515 = vmatprep.subr.mxu0 %v465
        %516 = vmatpush1.msra.mxu0 %v464
        %517 = vmatprep.subr.mxu0 %v463
        %518 = vmatpush1.msra.mxu0 %v462
        %519 = vmatprep.subr.mxu0 %v461
        %520 = vmatpush1.msra.mxu0 %v460
        %521 = vmatprep.subr.mxu0 0.0
        %522 = vmatpush2.msra.mxu0 0.0
        %523 = vmatprep.subr.mxu0 0.0
        %524 = vmatpush2.msra.mxu0 0.0
        %525 = vmatprep.subr.mxu0 0.0
        %526 = vmatpush2.msra.mxu0 0.0
        %527 = vmatprep.subr.mxu0 0.0
        %528 = vmatpush2.msra.mxu0 0.0
        %529 = vmatprep.subr.mxu0 0.0
        %530 = vmatpush2.msra.mxu0 0.0
        %531 = vmatprep.subr.mxu0 0.0
        %532 = vmatpush2.msra.mxu0 0.0
        %533 = vmatprep.subr.mxu0 0.0
        %534 = vmatpush2.msra.mxu0 0.0
        %535 = vmatprep.subr.mxu0 0.0
        %536 = vmatpush2.msra.mxu0 0.0
        %537 = vmatprep.subr.mxu0 0.0
        %538 = vmatpush2.msra.mxu0 0.0
        %539 = vmatprep.subr.mxu0 0.0
        %540 = vmatpush2.msra.mxu0 0.0
        %541 = vmatprep.subr.mxu0 0.0
        %542 = vmatpush2.msra.mxu0 0.0
        %543 = vmatprep.subr.mxu0 0.0
        %544 = vmatpush2.msra.mxu0 0.0
        %545 = vmatprep.subr.mxu0 0.0
        %546 = vmatpush2.msra.mxu0 0.0
        %547 = vmatprep.subr.mxu0 0.0
        %548 = vmatpush2.msra.mxu0 0.0
        %549 = vmatprep.subr.mxu0 0.0
        %550 = vmatpush2.msra.mxu0 0.0
        %551 = vmatprep.subr.mxu0 0.0
        %552 = vmatpush2.msra.mxu0 0.0
        %553 = vmatprep.mubr.f32.mxu0 0.0
        %554 = vmatmul.mubr.f32.gmra.mxu0 %v478
        %v555 = vpop.f32.mrf.mxu0
        %v556 = vadd.f32 0.0, %v555
        %v557 = vpop.f32.mrf.mxu0
        %v558 = vadd.f32 0.0, %v557
        %559 = vmatprep.mubr.f32.mxu0 0.0
        %560 = vmatmul.mubr.f32.gmra.mxu0 %v481
        %v561 = vpop.f32.mrf.mxu0
        %v562 = vadd.f32 0.0, %v561
        %v563 = vpop.f32.mrf.mxu0
        %v564 = vadd.f32 0.0, %v563
        %565 = vmatprep.mubr.f32.mxu0 0.0
        %566 = vmatmul.mubr.f32.gmra.mxu0 %v484
        %v567 = vpop.f32.mrf.mxu0
        %v568 = vadd.f32 0.0, %v567
        %v569 = vpop.f32.mrf.mxu0
        %v570 = vadd.f32 0.0, %v569
        %571 = vmatprep.mubr.f32.mxu0 0.0
        %572 = vmatmul.mubr.f32.gmra.mxu0 %v487
        %v573 = vpop.f32.mrf.mxu0
        %v574 = vadd.f32 0.0, %v573
        %v575 = vpop.f32.mrf.mxu0
        %v576 = vadd.f32 0.0, %v575
        %577 = vdwg.mxu0
        %578 = vrot.lane.b32.xlu0 %v556, 17
        %v579 = vpop.permute.xlu0 %578
        %580 = vrot.lane.b32.xlu0 %v562, 17
        %v581 = vpop.permute.xlu0 %580
        %582 = vrot.lane.b32.xlu0 %v568, 17
        %v583 = vpop.permute.xlu0 %582
        %584 = vrot.lane.b32.xlu0 %v574, 17
        %v585 = vpop.permute.xlu0 %584
        %586 = vrot.lane.b32.xlu0 %v558, 17
        %v587 = vpop.permute.xlu0 %586
        %588 = vrot.lane.b32.xlu0 %v564, 17
        %v589 = vpop.permute.xlu0 %588
        %590 = vrot.lane.b32.xlu0 %v570, 17
        %v591 = vpop.permute.xlu0 %590
        %592 = vrot.lane.b32.xlu0 %v576, 17
        %v593 = vpop.permute.xlu0 %592
        %vm594 = vcmp.lt.s32.totalorder %v370, 17
        %v595 = vsel %vm594, %v579, %v587
        %v596 = vsel %vm594, %v581, %v589
        %v597 = vsel %vm594, %v583, %v591
        %v598 = vsel %vm594, %v585, %v593
        %v599 = vsel %vm594, %v587, %v579
        %v600 = vsel %vm594, %v589, %v581
        %v601 = vsel %vm594, %v591, %v583
        %v602 = vsel %vm594, %v593, %v585
        %v603 = vsel %vm402, 1, 0
        %v604 = vsel %vm403, 1, 0
        %vm605 = vcmp.eq.s32.totalorder %v603, 1
        %vm606 = vcmp.eq.s32.totalorder %v604, 1
        %v607 = vsel %vm605, %v599, 0.0
        %v608 = vsel %vm606, %v595, 0.0
        %v609 = vsel %vm605, %v600, 0.0
        %v610 = vsel %vm606, %v596, 0.0
        %v611 = vsel %vm605, %v601, 0.0
        %v612 = vsel %vm606, %v597, 0.0
        %v613 = vsel %vm605, %v602, 0.0
        %v614 = vsel %vm606, %v598, 0.0
        %v615 = vld [vmem:[#allocation7] sm:$0xf]
        %v616 = vld [vmem:[#allocation7 + $0x4] sm:$0xf]
        %v617 = vld [vmem:[#allocation7 + $0x8] sm:$0xf]
        %v618 = vld [vmem:[#allocation7 + $0xc] sm:$0xf]
        %v619 = vpack.c.bf16 %v609, %v607
        %v620 = vpack.c.bf16 %v610, %v608
        %v621 = vpack.c.bf16 %v613, %v611
        %v622 = vpack.c.bf16 %v614, %v612
        %623 = vrot.lane.b32.xlu0 %v556, 16
        %v624 = vpop.permute.xlu0 %623
        %625 = vrot.lane.b32.xlu0 %v562, 16
        %v626 = vpop.permute.xlu0 %625
        %627 = vrot.lane.b32.xlu0 %v568, 16
        %v628 = vpop.permute.xlu0 %627
        %629 = vrot.lane.b32.xlu0 %v574, 16
        %v630 = vpop.permute.xlu0 %629
        %631 = vrot.lane.b32.xlu0 %v558, 16
        %v632 = vpop.permute.xlu0 %631
        %633 = vrot.lane.b32.xlu0 %v564, 16
        %v634 = vpop.permute.xlu0 %633
        %635 = vrot.lane.b32.xlu0 %v570, 16
        %v636 = vpop.permute.xlu0 %635
        %637 = vrot.lane.b32.xlu0 %v576, 16
        %v638 = vpop.permute.xlu0 %637
        %vm639 = vcmp.lt.s32.totalorder %v370, 16
        %v640 = vsel %vm639, %v624, %v632
        %v641 = vsel %vm639, %v626, %v634
        %v642 = vsel %vm639, %v628, %v636
        %v643 = vsel %vm639, %v630, %v638
        %v644 = vsel %vm639, %v632, %v624
        %v645 = vsel %vm639, %v634, %v626
        %v646 = vsel %vm639, %v636, %v628
        %v647 = vsel %vm639, %v638, %v630
        %v648 = vsel %vm410, 1, 0
        %v649 = vsel %vm411, 1, 0
        %vm650 = vcmp.eq.s32.totalorder %v648, 1
        %vm651 = vcmp.eq.s32.totalorder %v649, 1
        %v652 = vsel %vm650, %v644, 0.0
        %v653 = vsel %vm651, %v640, 0.0
        %v654 = vsel %vm650, %v645, 0.0
        %v655 = vsel %vm651, %v641, 0.0
        %v656 = vsel %vm650, %v646, 0.0
        %v657 = vsel %vm651, %v642, 0.0
        %v658 = vsel %vm650, %v647, 0.0
        %v659 = vsel %vm651, %v643, 0.0
        %s660 = scalar_lea.vmem [#allocation7], 16
        %v661 = vld [vmem:[%s660] sm:$0xf]
        %v662 = vld [vmem:[%s660 + $0x4] sm:$0xf]
        %v663 = vld [vmem:[%s660 + $0x8] sm:$0xf]
        %v664 = vld [vmem:[%s660 + $0xc] sm:$0xf]
        %v665 = vpack.c.bf16 %v654, %v652
        %v666 = vpack.c.bf16 %v655, %v653
        %v667 = vpack.c.bf16 %v658, %v656
        %v668 = vpack.c.bf16 %v659, %v657
        %v673 = vunpack.c.l.b16 %v661
        %v674 = vunpack.c.l.b16 %v662
        %v675 = vunpack.c.l.b16 %v663
        %v676 = vunpack.c.l.b16 %v664
        %v677 = vpack.c.b16 %v674, %v673
        %v678 = vpack.c.b16 %v676, %v675
        %vm679 = vcmask 261120
        %v681 = vsel %vm679, %v677, 0
        %v684 = vsel %vm679, %v678, 0
        %686 = vmatprep.subr.bf16.mxu0 0
        %687 = vmatpush1.bf16.msra.mxu0 0
        %688 = vmatprep.subr.bf16.mxu0 0
        %689 = vmatpush1.bf16.msra.mxu0 0
        %690 = vmatprep.subr.bf16.mxu0 0
        %691 = vmatpush1.bf16.msra.mxu0 0
        %692 = vmatprep.subr.bf16.mxu0 0
        %693 = vmatpush1.bf16.msra.mxu0 0
        %694 = vmatprep.subr.bf16.mxu0 0
        %695 = vmatpush1.bf16.msra.mxu0 0
        %696 = vmatprep.subr.bf16.mxu0 0
        %697 = vmatpush1.bf16.msra.mxu0 0
        %698 = vmatprep.subr.bf16.mxu0 %v668
        %699 = vmatpush1.bf16.msra.mxu0 %v667
        %700 = vmatprep.subr.bf16.mxu0 %v666
        %701 = vmatpush1.bf16.msra.mxu0 %v665
        %702 = vmatprep.subr.bf16.mxu0 0
        %703 = vmatpush2.bf16.msra.mxu0 0
        %704 = vmatprep.subr.bf16.mxu0 0
        %705 = vmatpush2.bf16.msra.mxu0 0
        %706 = vmatprep.subr.bf16.mxu0 0
        %707 = vmatpush2.bf16.msra.mxu0 0
        %708 = vmatprep.subr.bf16.mxu0 0
        %709 = vmatpush2.bf16.msra.mxu0 0
        %710 = vmatprep.subr.bf16.mxu0 0
        %711 = vmatpush2.bf16.msra.mxu0 0
        %712 = vmatprep.subr.bf16.mxu0 0
        %713 = vmatpush2.bf16.msra.mxu0 0
        %714 = vmatprep.subr.bf16.mxu0 0
        %715 = vmatpush2.bf16.msra.mxu0 0
        %716 = vmatprep.subr.bf16.mxu0 0
        %717 = vmatpush2.bf16.msra.mxu0 0
        %718 = vmatprep.mubr.bf16.mxu0 0
        %719 = vmatmul.mubr.bf16.gmra.mxu0 %v681
        %v720 = vpop.f32.mrf.mxu0
        %v721 = vadd.f32 0.0, %v720
        %v722 = vpop.f32.mrf.mxu0
        %v723 = vadd.f32 0.0, %v722
        %v724 = vpop.f32.mrf.mxu0
        %v725 = vadd.f32 0.0, %v724
        %v726 = vpop.f32.mrf.mxu0
        %v727 = vadd.f32 0.0, %v726
        %728 = vmatprep.mubr.bf16.mxu0 0
        %729 = vmatmul.mubr.bf16.gmra.mxu0 %v684
        %v730 = vpop.f32.mrf.mxu0
        %v731 = vadd.f32 0.0, %v730
        %v732 = vpop.f32.mrf.mxu0
        %v733 = vadd.f32 0.0, %v732
        %v734 = vpop.f32.mrf.mxu0
        %v735 = vadd.f32 0.0, %v734
        %v736 = vpop.f32.mrf.mxu0
        %v737 = vadd.f32 0.0, %v736
        %738 = vdwg.mxu0
        %v743 = vunpack.c.l.b16 %v615
        %v744 = vunpack.c.l.b16 %v616
        %v745 = vunpack.c.l.b16 %v617
        %v746 = vunpack.c.l.b16 %v618
        %v747 = vpack.c.b16 %v744, %v743
        %v748 = vpack.c.b16 %v746, %v745
        %v750 = vsel %vm679, %v747, 0
        %v753 = vsel %vm679, %v748, 0
        %755 = vmatprep.subr.bf16.mxu0 0
        %756 = vmatpush1.bf16.msra.mxu0 0
        %757 = vmatprep.subr.bf16.mxu0 0
        %758 = vmatpush1.bf16.msra.mxu0 0
        %759 = vmatprep.subr.bf16.mxu0 0
        %760 = vmatpush1.bf16.msra.mxu0 0
        %761 = vmatprep.subr.bf16.mxu0 0
        %762 = vmatpush1.bf16.msra.mxu0 0
        %763 = vmatprep.subr.bf16.mxu0 0
        %764 = vmatpush1.bf16.msra.mxu0 0
        %765 = vmatprep.subr.bf16.mxu0 0
        %766 = vmatpush1.bf16.msra.mxu0 0
        %767 = vmatprep.subr.bf16.mxu0 %v622
        %768 = vmatpush1.bf16.msra.mxu0 %v621
        %769 = vmatprep.subr.bf16.mxu0 %v620
        %770 = vmatpush1.bf16.msra.mxu0 %v619
        %771 = vmatprep.subr.bf16.mxu0 0
        %772 = vmatpush2.bf16.msra.mxu0 0
        %773 = vmatprep.subr.bf16.mxu0 0
        %774 = vmatpush2.bf16.msra.mxu0 0
        %775 = vmatprep.subr.bf16.mxu0 0
        %776 = vmatpush2.bf16.msra.mxu0 0
        %777 = vmatprep.subr.bf16.mxu0 0
        %778 = vmatpush2.bf16.msra.mxu0 0
        %779 = vmatprep.subr.bf16.mxu0 0
        %780 = vmatpush2.bf16.msra.mxu0 0
        %781 = vmatprep.subr.bf16.mxu0 0
        %782 = vmatpush2.bf16.msra.mxu0 0
        %783 = vmatprep.subr.bf16.mxu0 0
        %784 = vmatpush2.bf16.msra.mxu0 0
        %785 = vmatprep.subr.bf16.mxu0 0
        %786 = vmatpush2.bf16.msra.mxu0 0
        %787 = vmatprep.mubr.bf16.mxu0 0
        %788 = vmatmul.mubr.bf16.gmra.mxu0 %v750
        %v789 = vpop.f32.mrf.mxu0
        %v790 = vadd.f32 %v721, %v789
        %v791 = vpop.f32.mrf.mxu0
        %v792 = vadd.f32 %v723, %v791
        %v793 = vpop.f32.mrf.mxu0
        %v794 = vadd.f32 %v725, %v793
        %v795 = vpop.f32.mrf.mxu0
        %v796 = vadd.f32 %v727, %v795
        %797 = vmatprep.mubr.bf16.mxu0 0
        %798 = vmatmul.mubr.bf16.gmra.mxu0 %v753
        %v799 = vpop.f32.mrf.mxu0
        %v800 = vadd.f32 %v731, %v799
        %v801 = vpop.f32.mrf.mxu0
        %v802 = vadd.f32 %v733, %v801
        %v803 = vpop.f32.mrf.mxu0
        %v804 = vadd.f32 %v735, %v803
        %v805 = vpop.f32.mrf.mxu0
        %v806 = vadd.f32 %v737, %v805
        %807 = vdwg.mxu0
        %808 = vrot.lane.b32.xlu0 %v556, 15
        %v809 = vpop.permute.xlu0 %808
        %810 = vrot.lane.b32.xlu0 %v562, 15
        %v811 = vpop.permute.xlu0 %810
        %812 = vrot.lane.b32.xlu0 %v568, 15
        %v813 = vpop.permute.xlu0 %812
        %814 = vrot.lane.b32.xlu0 %v574, 15
        %v815 = vpop.permute.xlu0 %814
        %816 = vrot.lane.b32.xlu0 %v558, 15
        %v817 = vpop.permute.xlu0 %816
        %818 = vrot.lane.b32.xlu0 %v564, 15
        %v819 = vpop.permute.xlu0 %818
        %820 = vrot.lane.b32.xlu0 %v570, 15
        %v821 = vpop.permute.xlu0 %820
        %822 = vrot.lane.b32.xlu0 %v576, 15
        %v823 = vpop.permute.xlu0 %822
        %vm824 = vcmp.lt.s32.totalorder %v370, 15
        %v825 = vsel %vm824, %v809, %v817
        %v826 = vsel %vm824, %v811, %v819
        %v827 = vsel %vm824, %v813, %v821
        %v828 = vsel %vm824, %v815, %v823
        %v829 = vsel %vm824, %v817, %v809
        %v830 = vsel %vm824, %v819, %v811
        %v831 = vsel %vm824, %v821, %v813
        %v832 = vsel %vm824, %v823, %v815
        %v833 = vsel %vm420, 1, 0
        %v834 = vsel %vm421, 1, 0
        %vm835 = vcmp.eq.s32.totalorder %v833, 1
        %vm836 = vcmp.eq.s32.totalorder %v834, 1
        %v837 = vsel %vm835, %v829, 0.0
        %v838 = vsel %vm836, %v825, 0.0
        %v839 = vsel %vm835, %v830, 0.0
        %v840 = vsel %vm836, %v826, 0.0
        %v841 = vsel %vm835, %v831, 0.0
        %v842 = vsel %vm836, %v827, 0.0
        %v843 = vsel %vm835, %v832, 0.0
        %v844 = vsel %vm836, %v828, 0.0
        %s845 = scalar_lea.vmem [#allocation7], 32
        %v846 = vld [vmem:[%s845] sm:$0xf]
        %v847 = vld [vmem:[%s845 + $0x4] sm:$0xf]
        %v848 = vld [vmem:[%s845 + $0x8] sm:$0xf]
        %v849 = vld [vmem:[%s845 + $0xc] sm:$0xf]
        %v850 = vpack.c.bf16 %v839, %v837
        %v851 = vpack.c.bf16 %v840, %v838
        %v852 = vpack.c.bf16 %v843, %v841
        %v853 = vpack.c.bf16 %v844, %v842
        %v858 = vunpack.c.l.b16 %v846
        %v859 = vunpack.c.l.b16 %v847
        %v860 = vunpack.c.l.b16 %v848
        %v861 = vunpack.c.l.b16 %v849
        %v862 = vpack.c.b16 %v859, %v858
        %v863 = vpack.c.b16 %v861, %v860
        %v865 = vsel %vm679, %v862, 0
        %v868 = vsel %vm679, %v863, 0
        %870 = vmatprep.subr.bf16.mxu0 0
        %871 = vmatpush1.bf16.msra.mxu0 0
        %872 = vmatprep.subr.bf16.mxu0 0
        %873 = vmatpush1.bf16.msra.mxu0 0
        %874 = vmatprep.subr.bf16.mxu0 0
        %875 = vmatpush1.bf16.msra.mxu0 0
        %876 = vmatprep.subr.bf16.mxu0 0
        %877 = vmatpush1.bf16.msra.mxu0 0
        %878 = vmatprep.subr.bf16.mxu0 0
        %879 = vmatpush1.bf16.msra.mxu0 0
        %880 = vmatprep.subr.bf16.mxu0 0
        %881 = vmatpush1.bf16.msra.mxu0 0
        %882 = vmatprep.subr.bf16.mxu0 %v853
        %883 = vmatpush1.bf16.msra.mxu0 %v852
        %884 = vmatprep.subr.bf16.mxu0 %v851
        %885 = vmatpush1.bf16.msra.mxu0 %v850
        %886 = vmatprep.subr.bf16.mxu0 0
        %887 = vmatpush2.bf16.msra.mxu0 0
        %888 = vmatprep.subr.bf16.mxu0 0
        %889 = vmatpush2.bf16.msra.mxu0 0
        %890 = vmatprep.subr.bf16.mxu0 0
        %891 = vmatpush2.bf16.msra.mxu0 0
        %892 = vmatprep.subr.bf16.mxu0 0
        %893 = vmatpush2.bf16.msra.mxu0 0
        %894 = vmatprep.subr.bf16.mxu0 0
        %895 = vmatpush2.bf16.msra.mxu0 0
        %896 = vmatprep.subr.bf16.mxu0 0
        %897 = vmatpush2.bf16.msra.mxu0 0
        %898 = vmatprep.subr.bf16.mxu0 0
        %899 = vmatpush2.bf16.msra.mxu0 0
        %900 = vmatprep.subr.bf16.mxu0 0
        %901 = vmatpush2.bf16.msra.mxu0 0
        %902 = vmatprep.mubr.bf16.mxu0 0
        %903 = vmatmul.mubr.bf16.gmra.mxu0 %v865
        %v904 = vpop.f32.mrf.mxu0
        %v905 = vadd.f32 0.0, %v904
        %v906 = vpop.f32.mrf.mxu0
        %v907 = vadd.f32 0.0, %v906
        %v908 = vpop.f32.mrf.mxu0
        %v909 = vadd.f32 0.0, %v908
        %v910 = vpop.f32.mrf.mxu0
        %v911 = vadd.f32 0.0, %v910
        %912 = vmatprep.mubr.bf16.mxu0 0
        %913 = vmatmul.mubr.bf16.gmra.mxu0 %v868
        %v914 = vpop.f32.mrf.mxu0
        %v915 = vadd.f32 0.0, %v914
        %v916 = vpop.f32.mrf.mxu0
        %v917 = vadd.f32 0.0, %v916
        %v918 = vpop.f32.mrf.mxu0
        %v919 = vadd.f32 0.0, %v918
        %v920 = vpop.f32.mrf.mxu0
        %v921 = vadd.f32 0.0, %v920
        %922 = vdwg.mxu0
        %v923 = vadd.f32 %v790, %v905
        %v924 = vadd.f32 %v792, %v907
        %v925 = vadd.f32 %v794, %v909
        %v926 = vadd.f32 %v796, %v911
        %v927 = vadd.f32 %v800, %v915
        %v928 = vadd.f32 %v802, %v917
        %v929 = vadd.f32 %v804, %v919
        %v930 = vadd.f32 %v806, %v921
        %931 = vrot.lane.b32.xlu0 %v556, 1
        %v932 = vpop.permute.xlu0 %931
        %933 = vrot.lane.b32.xlu0 %v562, 1
        %v934 = vpop.permute.xlu0 %933
        %935 = vrot.lane.b32.xlu0 %v568, 1
        %v936 = vpop.permute.xlu0 %935
        %937 = vrot.lane.b32.xlu0 %v574, 1
        %v938 = vpop.permute.xlu0 %937
        %939 = vrot.lane.b32.xlu0 %v558, 1
        %v940 = vpop.permute.xlu0 %939
        %941 = vrot.lane.b32.xlu0 %v564, 1
        %v942 = vpop.permute.xlu0 %941
        %943 = vrot.lane.b32.xlu0 %v570, 1
        %v944 = vpop.permute.xlu0 %943
        %945 = vrot.lane.b32.xlu0 %v576, 1
        %v946 = vpop.permute.xlu0 %945
        %vm947 = vcmp.lt.s32.totalorder %v370, 1
        %v948 = vsel %vm947, %v932, %v940
        %v949 = vsel %vm947, %v934, %v942
        %v950 = vsel %vm947, %v936, %v944
        %v951 = vsel %vm947, %v938, %v946
        %v952 = vsel %vm947, %v940, %v932
        %v953 = vsel %vm947, %v942, %v934
        %v954 = vsel %vm947, %v944, %v936
        %v955 = vsel %vm947, %v946, %v938
        %v956 = vsel %vm430, 1, 0
        %v957 = vsel %vm431, 1, 0
        %vm958 = vcmp.eq.s32.totalorder %v956, 1
        %vm959 = vcmp.eq.s32.totalorder %v957, 1
        %v960 = vsel %vm958, %v952, 0.0
        %v961 = vsel %vm959, %v948, 0.0
        %v962 = vsel %vm958, %v953, 0.0
        %v963 = vsel %vm959, %v949, 0.0
        %v964 = vsel %vm958, %v954, 0.0
        %v965 = vsel %vm959, %v950, 0.0
        %v966 = vsel %vm958, %v955, 0.0
        %v967 = vsel %vm959, %v951, 0.0
        %s968 = scalar_lea.vmem [#allocation7], 48
        %v969 = vld [vmem:[%s968] sm:$0xf]
        %v970 = vld [vmem:[%s968 + $0x4] sm:$0xf]
        %v971 = vld [vmem:[%s968 + $0x8] sm:$0xf]
        %v972 = vld [vmem:[%s968 + $0xc] sm:$0xf]
        %v973 = vpack.c.bf16 %v962, %v960
        %v974 = vpack.c.bf16 %v963, %v961
        %v975 = vpack.c.bf16 %v966, %v964
        %v976 = vpack.c.bf16 %v967, %v965
        %v981 = vunpack.c.l.b16 %v969
        %v982 = vunpack.c.l.b16 %v970
        %v983 = vunpack.c.l.b16 %v971
        %v984 = vunpack.c.l.b16 %v972
        %v985 = vpack.c.b16 %v982, %v981
        %v986 = vpack.c.b16 %v984, %v983
        %v988 = vsel %vm679, %v985, 0
        %v991 = vsel %vm679, %v986, 0
        %993 = vmatprep.subr.bf16.mxu0 0
        %994 = vmatpush1.bf16.msra.mxu0 0
        %995 = vmatprep.subr.bf16.mxu0 0
        %996 = vmatpush1.bf16.msra.mxu0 0
        %997 = vmatprep.subr.bf16.mxu0 0
        %998 = vmatpush1.bf16.msra.mxu0 0
        %999 = vmatprep.subr.bf16.mxu0 0
        %1000 = vmatpush1.bf16.msra.mxu0 0
        %1001 = vmatprep.subr.bf16.mxu0 0
        %1002 = vmatpush1.bf16.msra.mxu0 0
        %1003 = vmatprep.subr.bf16.mxu0 0
        %1004 = vmatpush1.bf16.msra.mxu0 0
        %1005 = vmatprep.subr.bf16.mxu0 %v976
        %1006 = vmatpush1.bf16.msra.mxu0 %v975
        %1007 = vmatprep.subr.bf16.mxu0 %v974
        %1008 = vmatpush1.bf16.msra.mxu0 %v973
        %1009 = vmatprep.subr.bf16.mxu0 0
        %1010 = vmatpush2.bf16.msra.mxu0 0
        %1011 = vmatprep.subr.bf16.mxu0 0
        %1012 = vmatpush2.bf16.msra.mxu0 0
        %1013 = vmatprep.subr.bf16.mxu0 0
        %1014 = vmatpush2.bf16.msra.mxu0 0
        %1015 = vmatprep.subr.bf16.mxu0 0
        %1016 = vmatpush2.bf16.msra.mxu0 0
        %1017 = vmatprep.subr.bf16.mxu0 0
        %1018 = vmatpush2.bf16.msra.mxu0 0
        %1019 = vmatprep.subr.bf16.mxu0 0
        %1020 = vmatpush2.bf16.msra.mxu0 0
        %1021 = vmatprep.subr.bf16.mxu0 0
        %1022 = vmatpush2.bf16.msra.mxu0 0
        %1023 = vmatprep.subr.bf16.mxu0 0
        %1024 = vmatpush2.bf16.msra.mxu0 0
        %1025 = vmatprep.mubr.bf16.mxu0 0
        %1026 = vmatmul.mubr.bf16.gmra.mxu0 %v988
        %v1027 = vpop.f32.mrf.mxu0
        %v1028 = vadd.f32 0.0, %v1027
        %v1029 = vpop.f32.mrf.mxu0
        %v1030 = vadd.f32 0.0, %v1029
        %v1031 = vpop.f32.mrf.mxu0
        %v1032 = vadd.f32 0.0, %v1031
        %v1033 = vpop.f32.mrf.mxu0
        %v1034 = vadd.f32 0.0, %v1033
        %1035 = vmatprep.mubr.bf16.mxu0 0
        %1036 = vmatmul.mubr.bf16.gmra.mxu0 %v991
        %v1037 = vpop.f32.mrf.mxu0
        %v1038 = vadd.f32 0.0, %v1037
        %v1039 = vpop.f32.mrf.mxu0
        %v1040 = vadd.f32 0.0, %v1039
        %v1041 = vpop.f32.mrf.mxu0
        %v1042 = vadd.f32 0.0, %v1041
        %v1043 = vpop.f32.mrf.mxu0
        %v1044 = vadd.f32 0.0, %v1043
        %1045 = vdwg.mxu0
        %v1046 = vadd.f32 %v923, %v1028
        %v1047 = vadd.f32 %v924, %v1030
        %v1048 = vadd.f32 %v925, %v1032
        %v1049 = vadd.f32 %v926, %v1034
        %v1050 = vadd.f32 %v927, %v1038
        %v1051 = vadd.f32 %v928, %v1040
        %v1052 = vadd.f32 %v929, %v1042
        %v1053 = vadd.f32 %v930, %v1044
        %s1054 = scalar_lea.vmem [#allocation7], 64
        %v1055 = vld [vmem:[%s1054] sm:$0xf]
        %v1056 = vld [vmem:[%s1054 + $0x4] sm:$0xf]
        %v1057 = vld [vmem:[%s1054 + $0x8] sm:$0xf]
        %v1058 = vld [vmem:[%s1054 + $0xc] sm:$0xf]
        %v1059 = vpack.c.bf16 %v562, %v556
        %v1060 = vpack.c.bf16 %v564, %v558
        %v1061 = vpack.c.bf16 %v574, %v568
        %v1062 = vpack.c.bf16 %v576, %v570
        %v1067 = vunpack.c.l.b16 %v1055
        %v1068 = vunpack.c.l.b16 %v1056
        %v1069 = vunpack.c.l.b16 %v1057
        %v1070 = vunpack.c.l.b16 %v1058
        %v1071 = vpack.c.b16 %v1068, %v1067
        %v1072 = vpack.c.b16 %v1070, %v1069
        %v1074 = vsel %vm679, %v1071, 0
        %v1077 = vsel %vm679, %v1072, 0
        %1079 = vmatprep.subr.bf16.mxu0 0
        %1080 = vmatpush1.bf16.msra.mxu0 0
        %1081 = vmatprep.subr.bf16.mxu0 0
        %1082 = vmatpush1.bf16.msra.mxu0 0
        %1083 = vmatprep.subr.bf16.mxu0 0
        %1084 = vmatpush1.bf16.msra.mxu0 0
        %1085 = vmatprep.subr.bf16.mxu0 0
        %1086 = vmatpush1.bf16.msra.mxu0 0
        %1087 = vmatprep.subr.bf16.mxu0 0
        %1088 = vmatpush1.bf16.msra.mxu0 0
        %1089 = vmatprep.subr.bf16.mxu0 0
        %1090 = vmatpush1.bf16.msra.mxu0 0
        %1091 = vmatprep.subr.bf16.mxu0 %v1062
        %1092 = vmatpush1.bf16.msra.mxu0 %v1061
        %1093 = vmatprep.subr.bf16.mxu0 %v1060
        %1094 = vmatpush1.bf16.msra.mxu0 %v1059
        %1095 = vmatprep.subr.bf16.mxu0 0
        %1096 = vmatpush2.bf16.msra.mxu0 0
        %1097 = vmatprep.subr.bf16.mxu0 0
        %1098 = vmatpush2.bf16.msra.mxu0 0
        %1099 = vmatprep.subr.bf16.mxu0 0
        %1100 = vmatpush2.bf16.msra.mxu0 0
        %1101 = vmatprep.subr.bf16.mxu0 0
        %1102 = vmatpush2.bf16.msra.mxu0 0
        %1103 = vmatprep.subr.bf16.mxu0 0
        %1104 = vmatpush2.bf16.msra.mxu0 0
        %1105 = vmatprep.subr.bf16.mxu0 0
        %1106 = vmatpush2.bf16.msra.mxu0 0
        %1107 = vmatprep.subr.bf16.mxu0 0
        %1108 = vmatpush2.bf16.msra.mxu0 0
        %1109 = vmatprep.subr.bf16.mxu0 0
        %1110 = vmatpush2.bf16.msra.mxu0 0
        %1111 = vmatprep.mubr.bf16.mxu0 0
        %1112 = vmatmul.mubr.bf16.gmra.mxu0 %v1074
        %v1113 = vpop.f32.mrf.mxu0
        %v1114 = vadd.f32 0.0, %v1113
        %v1115 = vpop.f32.mrf.mxu0
        %v1116 = vadd.f32 0.0, %v1115
        %v1117 = vpop.f32.mrf.mxu0
        %v1118 = vadd.f32 0.0, %v1117
        %v1119 = vpop.f32.mrf.mxu0
        %v1120 = vadd.f32 0.0, %v1119
        %1121 = vmatprep.mubr.bf16.mxu0 0
        %1122 = vmatmul.mubr.bf16.gmra.mxu0 %v1077
        %v1123 = vpop.f32.mrf.mxu0
        %v1124 = vadd.f32 0.0, %v1123
        %v1125 = vpop.f32.mrf.mxu0
        %v1126 = vadd.f32 0.0, %v1125
        %v1127 = vpop.f32.mrf.mxu0
        %v1128 = vadd.f32 0.0, %v1127
        %v1129 = vpop.f32.mrf.mxu0
        %v1130 = vadd.f32 0.0, %v1129
        %1131 = vdwg.mxu0
        %v1132 = vadd.f32 %v1046, %v1114
        %v1133 = vadd.f32 %v1047, %v1116
        %v1134 = vadd.f32 %v1048, %v1118
        %v1135 = vadd.f32 %v1049, %v1120
        %v1136 = vadd.f32 %v1050, %v1124
        %v1137 = vadd.f32 %v1051, %v1126
        %v1138 = vadd.f32 %v1052, %v1128
        %v1139 = vadd.f32 %v1053, %v1130
        %1140 = vrot.lane.b32.xlu0 %v556, 127
        %v1141 = vpop.permute.xlu0 %1140
        %1142 = vrot.lane.b32.xlu0 %v562, 127
        %v1143 = vpop.permute.xlu0 %1142
        %1144 = vrot.lane.b32.xlu0 %v568, 127
        %v1145 = vpop.permute.xlu0 %1144
        %1146 = vrot.lane.b32.xlu0 %v574, 127
        %v1147 = vpop.permute.xlu0 %1146
        %1148 = vrot.lane.b32.xlu0 %v558, 127
        %v1149 = vpop.permute.xlu0 %1148
        %1150 = vrot.lane.b32.xlu0 %v564, 127
        %v1151 = vpop.permute.xlu0 %1150
        %1152 = vrot.lane.b32.xlu0 %v570, 127
        %v1153 = vpop.permute.xlu0 %1152
        %1154 = vrot.lane.b32.xlu0 %v576, 127
        %v1155 = vpop.permute.xlu0 %1154
        %vm1156 = vcmp.lt.s32.totalorder %v370, 127
        %v1157 = vsel %vm1156, %v1141, %v1149
        %v1158 = vsel %vm1156, %v1143, %v1151
        %v1159 = vsel %vm1156, %v1145, %v1153
        %v1160 = vsel %vm1156, %v1147, %v1155
        %v1161 = vsel %vm1156, %v1149, %v1141
        %v1162 = vsel %vm1156, %v1151, %v1143
        %v1163 = vsel %vm1156, %v1153, %v1145
        %v1164 = vsel %vm1156, %v1155, %v1147
        %v1165 = vsel %vm434, 1, 0
        %v1166 = vsel %vm435, 1, 0
        %vm1167 = vcmp.eq.s32.totalorder %v1165, 1
        %vm1168 = vcmp.eq.s32.totalorder %v1166, 1
        %v1169 = vsel %vm1167, %v1157, 0.0
        %v1170 = vsel %vm1168, %v1161, 0.0
        %v1171 = vsel %vm1167, %v1158, 0.0
        %v1172 = vsel %vm1168, %v1162, 0.0
        %v1173 = vsel %vm1167, %v1159, 0.0
        %v1174 = vsel %vm1168, %v1163, 0.0
        %v1175 = vsel %vm1167, %v1160, 0.0
        %v1176 = vsel %vm1168, %v1164, 0.0
        %s1177 = scalar_lea.vmem [#allocation7], 80
        %v1178 = vld [vmem:[%s1177] sm:$0xf]
        %v1179 = vld [vmem:[%s1177 + $0x4] sm:$0xf]
        %v1180 = vld [vmem:[%s1177 + $0x8] sm:$0xf]
        %v1181 = vld [vmem:[%s1177 + $0xc] sm:$0xf]
        %v1182 = vpack.c.bf16 %v1171, %v1169
        %v1183 = vpack.c.bf16 %v1172, %v1170
        %v1184 = vpack.c.bf16 %v1175, %v1173
        %v1185 = vpack.c.bf16 %v1176, %v1174
        %v1190 = vunpack.c.l.b16 %v1178
        %v1191 = vunpack.c.l.b16 %v1179
        %v1192 = vunpack.c.l.b16 %v1180
        %v1193 = vunpack.c.l.b16 %v1181
        %v1194 = vpack.c.b16 %v1191, %v1190
        %v1195 = vpack.c.b16 %v1193, %v1192
        %v1197 = vsel %vm679, %v1194, 0
        %v1200 = vsel %vm679, %v1195, 0
        %1202 = vmatprep.subr.bf16.mxu0 0
        %1203 = vmatpush1.bf16.msra.mxu0 0
        %1204 = vmatprep.subr.bf16.mxu0 0
        %1205 = vmatpush1.bf16.msra.mxu0 0
        %1206 = vmatprep.subr.bf16.mxu0 0
        %1207 = vmatpush1.bf16.msra.mxu0 0
        %1208 = vmatprep.subr.bf16.mxu0 0
        %1209 = vmatpush1.bf16.msra.mxu0 0
        %1210 = vmatprep.subr.bf16.mxu0 0
        %1211 = vmatpush1.bf16.msra.mxu0 0
        %1212 = vmatprep.subr.bf16.mxu0 0
        %1213 = vmatpush1.bf16.msra.mxu0 0
        %1214 = vmatprep.subr.bf16.mxu0 %v1185
        %1215 = vmatpush1.bf16.msra.mxu0 %v1184
        %1216 = vmatprep.subr.bf16.mxu0 %v1183
        %1217 = vmatpush1.bf16.msra.mxu0 %v1182
        %1218 = vmatprep.subr.bf16.mxu0 0
        %1219 = vmatpush2.bf16.msra.mxu0 0
        %1220 = vmatprep.subr.bf16.mxu0 0
        %1221 = vmatpush2.bf16.msra.mxu0 0
        %1222 = vmatprep.subr.bf16.mxu0 0
        %1223 = vmatpush2.bf16.msra.mxu0 0
        %1224 = vmatprep.subr.bf16.mxu0 0
        %1225 = vmatpush2.bf16.msra.mxu0 0
        %1226 = vmatprep.subr.bf16.mxu0 0
        %1227 = vmatpush2.bf16.msra.mxu0 0
        %1228 = vmatprep.subr.bf16.mxu0 0
        %1229 = vmatpush2.bf16.msra.mxu0 0
        %1230 = vmatprep.subr.bf16.mxu0 0
        %1231 = vmatpush2.bf16.msra.mxu0 0
        %1232 = vmatprep.subr.bf16.mxu0 0
        %1233 = vmatpush2.bf16.msra.mxu0 0
        %1234 = vmatprep.mubr.bf16.mxu0 0
        %1235 = vmatmul.mubr.bf16.gmra.mxu0 %v1197
        %v1236 = vpop.f32.mrf.mxu0
        %v1237 = vadd.f32 0.0, %v1236
        %v1238 = vpop.f32.mrf.mxu0
        %v1239 = vadd.f32 0.0, %v1238
        %v1240 = vpop.f32.mrf.mxu0
        %v1241 = vadd.f32 0.0, %v1240
        %v1242 = vpop.f32.mrf.mxu0
        %v1243 = vadd.f32 0.0, %v1242
        %1244 = vmatprep.mubr.bf16.mxu0 0
        %1245 = vmatmul.mubr.bf16.gmra.mxu0 %v1200
        %v1246 = vpop.f32.mrf.mxu0
        %v1247 = vadd.f32 0.0, %v1246
        %v1248 = vpop.f32.mrf.mxu0
        %v1249 = vadd.f32 0.0, %v1248
        %v1250 = vpop.f32.mrf.mxu0
        %v1251 = vadd.f32 0.0, %v1250
        %v1252 = vpop.f32.mrf.mxu0
        %v1253 = vadd.f32 0.0, %v1252
        %1254 = vdwg.mxu0
        %v1255 = vadd.f32 %v1132, %v1237
        %v1256 = vadd.f32 %v1133, %v1239
        %v1257 = vadd.f32 %v1134, %v1241
        %v1258 = vadd.f32 %v1135, %v1243
        %v1259 = vadd.f32 %v1136, %v1247
        %v1260 = vadd.f32 %v1137, %v1249
        %v1261 = vadd.f32 %v1138, %v1251
        %v1262 = vadd.f32 %v1139, %v1253
        %1263 = vrot.lane.b32.xlu0 %v556, 113
        %v1264 = vpop.permute.xlu0 %1263
        %1265 = vrot.lane.b32.xlu0 %v562, 113
        %v1266 = vpop.permute.xlu0 %1265
        %1267 = vrot.lane.b32.xlu0 %v568, 113
        %v1268 = vpop.permute.xlu0 %1267
        %1269 = vrot.lane.b32.xlu0 %v574, 113
        %v1270 = vpop.permute.xlu0 %1269
        %1271 = vrot.lane.b32.xlu0 %v558, 113
        %v1272 = vpop.permute.xlu0 %1271
        %1273 = vrot.lane.b32.xlu0 %v564, 113
        %v1274 = vpop.permute.xlu0 %1273
        %1275 = vrot.lane.b32.xlu0 %v570, 113
        %v1276 = vpop.permute.xlu0 %1275
        %1277 = vrot.lane.b32.xlu0 %v576, 113
        %v1278 = vpop.permute.xlu0 %1277
        %vm1279 = vcmp.lt.s32.totalorder %v370, 113
        %v1280 = vsel %vm1279, %v1264, %v1272
        %v1281 = vsel %vm1279, %v1266, %v1274
        %v1282 = vsel %vm1279, %v1268, %v1276
        %v1283 = vsel %vm1279, %v1270, %v1278
        %v1284 = vsel %vm1279, %v1272, %v1264
        %v1285 = vsel %vm1279, %v1274, %v1266
        %v1286 = vsel %vm1279, %v1276, %v1268
        %v1287 = vsel %vm1279, %v1278, %v1270
        %v1288 = vsel %vm446, 1, 0
        %v1289 = vsel %vm447, 1, 0
        %vm1290 = vcmp.eq.s32.totalorder %v1288, 1
        %vm1291 = vcmp.eq.s32.totalorder %v1289, 1
        %v1292 = vsel %vm1290, %v1280, 0.0
        %v1293 = vsel %vm1291, %v1284, 0.0
        %v1294 = vsel %vm1290, %v1281, 0.0
        %v1295 = vsel %vm1291, %v1285, 0.0
        %v1296 = vsel %vm1290, %v1282, 0.0
        %v1297 = vsel %vm1291, %v1286, 0.0
        %v1298 = vsel %vm1290, %v1283, 0.0
        %v1299 = vsel %vm1291, %v1287, 0.0
        %s1300 = scalar_lea.vmem [#allocation7], 96
        %v1301 = vld [vmem:[%s1300] sm:$0xf]
        %v1302 = vld [vmem:[%s1300 + $0x4] sm:$0xf]
        %v1303 = vld [vmem:[%s1300 + $0x8] sm:$0xf]
        %v1304 = vld [vmem:[%s1300 + $0xc] sm:$0xf]
        %v1305 = vpack.c.bf16 %v1294, %v1292
        %v1306 = vpack.c.bf16 %v1295, %v1293
        %v1307 = vpack.c.bf16 %v1298, %v1296
        %v1308 = vpack.c.bf16 %v1299, %v1297
        %v1313 = vunpack.c.l.b16 %v1301
        %v1314 = vunpack.c.l.b16 %v1302
        %v1315 = vunpack.c.l.b16 %v1303
        %v1316 = vunpack.c.l.b16 %v1304
        %v1317 = vpack.c.b16 %v1314, %v1313
        %v1318 = vpack.c.b16 %v1316, %v1315
        %v1320 = vsel %vm679, %v1317, 0
        %v1323 = vsel %vm679, %v1318, 0
        %1325 = vmatprep.subr.bf16.mxu0 0
        %1326 = vmatpush1.bf16.msra.mxu0 0
        %1327 = vmatprep.subr.bf16.mxu0 0
        %1328 = vmatpush1.bf16.msra.mxu0 0
        %1329 = vmatprep.subr.bf16.mxu0 0
        %1330 = vmatpush1.bf16.msra.mxu0 0
        %1331 = vmatprep.subr.bf16.mxu0 0
        %1332 = vmatpush1.bf16.msra.mxu0 0
        %1333 = vmatprep.subr.bf16.mxu0 0
        %1334 = vmatpush1.bf16.msra.mxu0 0
        %1335 = vmatprep.subr.bf16.mxu0 0
        %1336 = vmatpush1.bf16.msra.mxu0 0
        %1337 = vmatprep.subr.bf16.mxu0 %v1308
        %1338 = vmatpush1.bf16.msra.mxu0 %v1307
        %1339 = vmatprep.subr.bf16.mxu0 %v1306
        %1340 = vmatpush1.bf16.msra.mxu0 %v1305
        %1341 = vmatprep.subr.bf16.mxu0 0
        %1342 = vmatpush2.bf16.msra.mxu0 0
        %1343 = vmatprep.subr.bf16.mxu0 0
        %1344 = vmatpush2.bf16.msra.mxu0 0
        %1345 = vmatprep.subr.bf16.mxu0 0
        %1346 = vmatpush2.bf16.msra.mxu0 0
        %1347 = vmatprep.subr.bf16.mxu0 0
        %1348 = vmatpush2.bf16.msra.mxu0 0
        %1349 = vmatprep.subr.bf16.mxu0 0
        %1350 = vmatpush2.bf16.msra.mxu0 0
        %1351 = vmatprep.subr.bf16.mxu0 0
        %1352 = vmatpush2.bf16.msra.mxu0 0
        %1353 = vmatprep.subr.bf16.mxu0 0
        %1354 = vmatpush2.bf16.msra.mxu0 0
        %1355 = vmatprep.subr.bf16.mxu0 0
        %1356 = vmatpush2.bf16.msra.mxu0 0
        %1357 = vmatprep.mubr.bf16.mxu0 0
        %1358 = vmatmul.mubr.bf16.gmra.mxu0 %v1320
        %v1359 = vpop.f32.mrf.mxu0
        %v1360 = vadd.f32 0.0, %v1359
        %v1361 = vpop.f32.mrf.mxu0
        %v1362 = vadd.f32 0.0, %v1361
        %v1363 = vpop.f32.mrf.mxu0
        %v1364 = vadd.f32 0.0, %v1363
        %v1365 = vpop.f32.mrf.mxu0
        %v1366 = vadd.f32 0.0, %v1365
        %1367 = vmatprep.mubr.bf16.mxu0 0
        %1368 = vmatmul.mubr.bf16.gmra.mxu0 %v1323
        %v1369 = vpop.f32.mrf.mxu0
        %v1370 = vadd.f32 0.0, %v1369
        %v1371 = vpop.f32.mrf.mxu0
        %v1372 = vadd.f32 0.0, %v1371
        %v1373 = vpop.f32.mrf.mxu0
        %v1374 = vadd.f32 0.0, %v1373
        %v1375 = vpop.f32.mrf.mxu0
        %v1376 = vadd.f32 0.0, %v1375
        %1377 = vdwg.mxu0
        %v1378 = vadd.f32 %v1255, %v1360
        %v1379 = vadd.f32 %v1256, %v1362
        %v1380 = vadd.f32 %v1257, %v1364
        %v1381 = vadd.f32 %v1258, %v1366
        %v1382 = vadd.f32 %v1259, %v1370
        %v1383 = vadd.f32 %v1260, %v1372
        %v1384 = vadd.f32 %v1261, %v1374
        %v1385 = vadd.f32 %v1262, %v1376
        %1386 = vrot.lane.b32.xlu0 %v556, 112
        %v1387 = vpop.permute.xlu0 %1386
        %1388 = vrot.lane.b32.xlu0 %v562, 112
        %v1389 = vpop.permute.xlu0 %1388
        %1390 = vrot.lane.b32.xlu0 %v568, 112
        %v1391 = vpop.permute.xlu0 %1390
        %1392 = vrot.lane.b32.xlu0 %v574, 112
        %v1393 = vpop.permute.xlu0 %1392
        %1394 = vrot.lane.b32.xlu0 %v558, 112
        %v1395 = vpop.permute.xlu0 %1394
        %1396 = vrot.lane.b32.xlu0 %v564, 112
        %v1397 = vpop.permute.xlu0 %1396
        %1398 = vrot.lane.b32.xlu0 %v570, 112
        %v1399 = vpop.permute.xlu0 %1398
        %1400 = vrot.lane.b32.xlu0 %v576, 112
        %v1401 = vpop.permute.xlu0 %1400
        %vm1402 = vcmp.lt.s32.totalorder %v370, 112
        %v1403 = vsel %vm1402, %v1387, %v1395
        %v1404 = vsel %vm1402, %v1389, %v1397
        %v1405 = vsel %vm1402, %v1391, %v1399
        %v1406 = vsel %vm1402, %v1393, %v1401
        %v1407 = vsel %vm1402, %v1395, %v1387
        %v1408 = vsel %vm1402, %v1397, %v1389
        %v1409 = vsel %vm1402, %v1399, %v1391
        %v1410 = vsel %vm1402, %v1401, %v1393
        %v1411 = vsel %vm450, 1, 0
        %v1412 = vsel %vm451, 1, 0
        %vm1413 = vcmp.eq.s32.totalorder %v1411, 1
        %vm1414 = vcmp.eq.s32.totalorder %v1412, 1
        %v1415 = vsel %vm1413, %v1403, 0.0
        %v1416 = vsel %vm1414, %v1407, 0.0
        %v1417 = vsel %vm1413, %v1404, 0.0
        %v1418 = vsel %vm1414, %v1408, 0.0
        %v1419 = vsel %vm1413, %v1405, 0.0
        %v1420 = vsel %vm1414, %v1409, 0.0
        %v1421 = vsel %vm1413, %v1406, 0.0
        %v1422 = vsel %vm1414, %v1410, 0.0
        %s1423 = scalar_lea.vmem [#allocation7], 112
        %v1424 = vld [vmem:[%s1423] sm:$0xf]
        %v1425 = vld [vmem:[%s1423 + $0x4] sm:$0xf]
        %v1426 = vld [vmem:[%s1423 + $0x8] sm:$0xf]
        %v1427 = vld [vmem:[%s1423 + $0xc] sm:$0xf]
        %v1428 = vpack.c.bf16 %v1417, %v1415
        %v1429 = vpack.c.bf16 %v1418, %v1416
        %v1430 = vpack.c.bf16 %v1421, %v1419
        %v1431 = vpack.c.bf16 %v1422, %v1420
        %v1436 = vunpack.c.l.b16 %v1424
        %v1437 = vunpack.c.l.b16 %v1425
        %v1438 = vunpack.c.l.b16 %v1426
        %v1439 = vunpack.c.l.b16 %v1427
        %v1440 = vpack.c.b16 %v1437, %v1436
        %v1441 = vpack.c.b16 %v1439, %v1438
        %v1443 = vsel %vm679, %v1440, 0
        %v1446 = vsel %vm679, %v1441, 0
        %1448 = vmatprep.subr.bf16.mxu0 0
        %1449 = vmatpush1.bf16.msra.mxu0 0
        %1450 = vmatprep.subr.bf16.mxu0 0
        %1451 = vmatpush1.bf16.msra.mxu0 0
        %1452 = vmatprep.subr.bf16.mxu0 0
        %1453 = vmatpush1.bf16.msra.mxu0 0
        %1454 = vmatprep.subr.bf16.mxu0 0
        %1455 = vmatpush1.bf16.msra.mxu0 0
        %1456 = vmatprep.subr.bf16.mxu0 0
        %1457 = vmatpush1.bf16.msra.mxu0 0
        %1458 = vmatprep.subr.bf16.mxu0 0
        %1459 = vmatpush1.bf16.msra.mxu0 0
        %1460 = vmatprep.subr.bf16.mxu0 %v1431
        %1461 = vmatpush1.bf16.msra.mxu0 %v1430
        %1462 = vmatprep.subr.bf16.mxu0 %v1429
        %1463 = vmatpush1.bf16.msra.mxu0 %v1428
        %1464 = vmatprep.subr.bf16.mxu0 0
        %1465 = vmatpush2.bf16.msra.mxu0 0
        %1466 = vmatprep.subr.bf16.mxu0 0
        %1467 = vmatpush2.bf16.msra.mxu0 0
        %1468 = vmatprep.subr.bf16.mxu0 0
        %1469 = vmatpush2.bf16.msra.mxu0 0
        %1470 = vmatprep.subr.bf16.mxu0 0
        %1471 = vmatpush2.bf16.msra.mxu0 0
        %1472 = vmatprep.subr.bf16.mxu0 0
        %1473 = vmatpush2.bf16.msra.mxu0 0
        %1474 = vmatprep.subr.bf16.mxu0 0
        %1475 = vmatpush2.bf16.msra.mxu0 0
        %1476 = vmatprep.subr.bf16.mxu0 0
        %1477 = vmatpush2.bf16.msra.mxu0 0
        %1478 = vmatprep.subr.bf16.mxu0 0
        %1479 = vmatpush2.bf16.msra.mxu0 0
        %1480 = vmatprep.mubr.bf16.mxu0 0
        %1481 = vmatmul.mubr.bf16.gmra.mxu0 %v1443
        %v1482 = vpop.f32.mrf.mxu0
        %v1483 = vadd.f32 0.0, %v1482
        %v1484 = vpop.f32.mrf.mxu0
        %v1485 = vadd.f32 0.0, %v1484
        %v1486 = vpop.f32.mrf.mxu0
        %v1487 = vadd.f32 0.0, %v1486
        %v1488 = vpop.f32.mrf.mxu0
        %v1489 = vadd.f32 0.0, %v1488
        %1490 = vmatprep.mubr.bf16.mxu0 0
        %1491 = vmatmul.mubr.bf16.gmra.mxu0 %v1446
        %v1492 = vpop.f32.mrf.mxu0
        %v1493 = vadd.f32 0.0, %v1492
        %v1494 = vpop.f32.mrf.mxu0
        %v1495 = vadd.f32 0.0, %v1494
        %v1496 = vpop.f32.mrf.mxu0
        %v1497 = vadd.f32 0.0, %v1496
        %v1498 = vpop.f32.mrf.mxu0
        %v1499 = vadd.f32 0.0, %v1498
        %1500 = vdwg.mxu0
        %v1501 = vadd.f32 %v1378, %v1483
        %v1502 = vadd.f32 %v1379, %v1485
        %v1503 = vadd.f32 %v1380, %v1487
        %v1504 = vadd.f32 %v1381, %v1489
        %v1505 = vadd.f32 %v1382, %v1493
        %v1506 = vadd.f32 %v1383, %v1495
        %v1507 = vadd.f32 %v1384, %v1497
        %v1508 = vadd.f32 %v1385, %v1499
        %1509 = vrot.lane.b32.xlu0 %v556, 111
        %v1510 = vpop.permute.xlu0 %1509
        %1511 = vrot.lane.b32.xlu0 %v562, 111
        %v1512 = vpop.permute.xlu0 %1511
        %1513 = vrot.lane.b32.xlu0 %v568, 111
        %v1514 = vpop.permute.xlu0 %1513
        %1515 = vrot.lane.b32.xlu0 %v574, 111
        %v1516 = vpop.permute.xlu0 %1515
        %1517 = vrot.lane.b32.xlu0 %v558, 111
        %v1518 = vpop.permute.xlu0 %1517
        %1519 = vrot.lane.b32.xlu0 %v564, 111
        %v1520 = vpop.permute.xlu0 %1519
        %1521 = vrot.lane.b32.xlu0 %v570, 111
        %v1522 = vpop.permute.xlu0 %1521
        %1523 = vrot.lane.b32.xlu0 %v576, 111
        %v1524 = vpop.permute.xlu0 %1523
        %vm1525 = vcmp.lt.s32.totalorder %v370, 111
        %v1526 = vsel %vm1525, %v1510, %v1518
        %v1527 = vsel %vm1525, %v1512, %v1520
        %v1528 = vsel %vm1525, %v1514, %v1522
        %v1529 = vsel %vm1525, %v1516, %v1524
        %v1530 = vsel %vm1525, %v1518, %v1510
        %v1531 = vsel %vm1525, %v1520, %v1512
        %v1532 = vsel %vm1525, %v1522, %v1514
        %v1533 = vsel %vm1525, %v1524, %v1516
        %v1534 = vsel %vm454, 1, 0
        %v1535 = vsel %vm455, 1, 0
        %vm1536 = vcmp.eq.s32.totalorder %v1534, 1
        %vm1537 = vcmp.eq.s32.totalorder %v1535, 1
        %v1538 = vsel %vm1536, %v1526, 0.0
        %v1539 = vsel %vm1537, %v1530, 0.0
        %v1540 = vsel %vm1536, %v1527, 0.0
        %v1541 = vsel %vm1537, %v1531, 0.0
        %v1542 = vsel %vm1536, %v1528, 0.0
        %v1543 = vsel %vm1537, %v1532, 0.0
        %v1544 = vsel %vm1536, %v1529, 0.0
        %v1545 = vsel %vm1537, %v1533, 0.0
        %s1546 = scalar_lea.vmem [#allocation7], 128
        %v1547 = vld [vmem:[%s1546] sm:$0xf]
        %v1548 = vld [vmem:[%s1546 + $0x4] sm:$0xf]
        %v1549 = vld [vmem:[%s1546 + $0x8] sm:$0xf]
        %v1550 = vld [vmem:[%s1546 + $0xc] sm:$0xf]
        %v1551 = vpack.c.bf16 %v1540, %v1538
        %v1552 = vpack.c.bf16 %v1541, %v1539
        %v1553 = vpack.c.bf16 %v1544, %v1542
        %v1554 = vpack.c.bf16 %v1545, %v1543
        %v1559 = vunpack.c.l.b16 %v1547
        %v1560 = vunpack.c.l.b16 %v1548
        %v1561 = vunpack.c.l.b16 %v1549
        %v1562 = vunpack.c.l.b16 %v1550
        %v1563 = vpack.c.b16 %v1560, %v1559
        %v1564 = vpack.c.b16 %v1562, %v1561
        %v1566 = vsel %vm679, %v1563, 0
        %v1569 = vsel %vm679, %v1564, 0
        %1571 = vmatprep.subr.bf16.mxu0 0
        %1572 = vmatpush1.bf16.msra.mxu0 0
        %1573 = vmatprep.subr.bf16.mxu0 0
        %1574 = vmatpush1.bf16.msra.mxu0 0
        %1575 = vmatprep.subr.bf16.mxu0 0
        %1576 = vmatpush1.bf16.msra.mxu0 0
        %1577 = vmatprep.subr.bf16.mxu0 0
        %1578 = vmatpush1.bf16.msra.mxu0 0
        %1579 = vmatprep.subr.bf16.mxu0 0
        %1580 = vmatpush1.bf16.msra.mxu0 0
        %1581 = vmatprep.subr.bf16.mxu0 0
        %1582 = vmatpush1.bf16.msra.mxu0 0
        %1583 = vmatprep.subr.bf16.mxu0 %v1554
        %1584 = vmatpush1.bf16.msra.mxu0 %v1553
        %1585 = vmatprep.subr.bf16.mxu0 %v1552
        %1586 = vmatpush1.bf16.msra.mxu0 %v1551
        %1587 = vmatprep.subr.bf16.mxu0 0
        %1588 = vmatpush2.bf16.msra.mxu0 0
        %1589 = vmatprep.subr.bf16.mxu0 0
        %1590 = vmatpush2.bf16.msra.mxu0 0
        %1591 = vmatprep.subr.bf16.mxu0 0
        %1592 = vmatpush2.bf16.msra.mxu0 0
        %1593 = vmatprep.subr.bf16.mxu0 0
        %1594 = vmatpush2.bf16.msra.mxu0 0
        %1595 = vmatprep.subr.bf16.mxu0 0
        %1596 = vmatpush2.bf16.msra.mxu0 0
        %1597 = vmatprep.subr.bf16.mxu0 0
        %1598 = vmatpush2.bf16.msra.mxu0 0
        %1599 = vmatprep.subr.bf16.mxu0 0
        %1600 = vmatpush2.bf16.msra.mxu0 0
        %1601 = vmatprep.subr.bf16.mxu0 0
        %1602 = vmatpush2.bf16.msra.mxu0 0
        %1603 = vmatprep.mubr.bf16.mxu0 0
        %1604 = vmatmul.mubr.bf16.gmra.mxu0 %v1566
        %v1605 = vpop.f32.mrf.mxu0
        %v1606 = vadd.f32 0.0, %v1605
        %v1607 = vpop.f32.mrf.mxu0
        %v1608 = vadd.f32 0.0, %v1607
        %v1609 = vpop.f32.mrf.mxu0
        %v1610 = vadd.f32 0.0, %v1609
        %v1611 = vpop.f32.mrf.mxu0
        %v1612 = vadd.f32 0.0, %v1611
        %1613 = vmatprep.mubr.bf16.mxu0 0
        %1614 = vmatmul.mubr.bf16.gmra.mxu0 %v1569
        %v1615 = vpop.f32.mrf.mxu0
        %v1616 = vadd.f32 0.0, %v1615
        %v1617 = vpop.f32.mrf.mxu0
        %v1618 = vadd.f32 0.0, %v1617
        %v1619 = vpop.f32.mrf.mxu0
        %v1620 = vadd.f32 0.0, %v1619
        %v1621 = vpop.f32.mrf.mxu0
        %v1622 = vadd.f32 0.0, %v1621
        %1623 = vdwg.mxu0
        %v1624 = vadd.f32 %v1501, %v1606
        %v1625 = vadd.f32 %v1502, %v1608
        %v1626 = vadd.f32 %v1503, %v1610
        %v1627 = vadd.f32 %v1504, %v1612
        %v1628 = vadd.f32 %v1505, %v1616
        %v1629 = vadd.f32 %v1506, %v1618
        %v1630 = vadd.f32 %v1507, %v1620
        %v1631 = vadd.f32 %v1508, %v1622
        %1632 = vrot.lane.b32.xlu0 %v1624, 17
        %v1633 = vpop.permute.xlu0 %1632
        %1634 = vrot.lane.b32.xlu0 %v1626, 17
        %v1635 = vpop.permute.xlu0 %1634
        %1636 = vrot.lane.b32.xlu0 %v1628, 17
        %v1637 = vpop.permute.xlu0 %1636
        %1638 = vrot.lane.b32.xlu0 %v1630, 17
        %v1639 = vpop.permute.xlu0 %1638
        %1640 = vrot.lane.b32.xlu0 %v1625, 17
        %v1641 = vpop.permute.xlu0 %1640
        %1642 = vrot.lane.b32.xlu0 %v1627, 17
        %v1643 = vpop.permute.xlu0 %1642
        %1644 = vrot.lane.b32.xlu0 %v1629, 17
        %v1645 = vpop.permute.xlu0 %1644
        %1646 = vrot.lane.b32.xlu0 %v1631, 17
        %v1647 = vpop.permute.xlu0 %1646
        %v1648 = vsel %vm594, %v1633, %v1641
        %v1649 = vsel %vm594, %v1635, %v1643
        %v1650 = vsel %vm594, %v1637, %v1645
        %v1651 = vsel %vm594, %v1639, %v1647
        %v1652 = vsel %vm594, %v1641, %v1633
        %v1653 = vsel %vm594, %v1643, %v1635
        %v1654 = vsel %vm594, %v1645, %v1637
        %v1655 = vsel %vm594, %v1647, %v1639
        %v1656 = vsel %vm605, %v1652, 0.0
        %v1657 = vsel %vm606, %v1648, 0.0
        %v1658 = vsel %vm605, %v1653, 0.0
        %v1659 = vsel %vm606, %v1649, 0.0
        %v1660 = vsel %vm605, %v1654, 0.0
        %v1661 = vsel %vm606, %v1650, 0.0
        %v1662 = vsel %vm605, %v1655, 0.0
        %v1663 = vsel %vm606, %v1651, 0.0
        %v1664 = vld [vmem:[#allocation8] sm:$0xf]
        %v1665 = vld [vmem:[#allocation8 + $0x4] sm:$0xf]
        %v1666 = vpack.c.bf16 %v1658, %v1656
        %v1667 = vpack.c.bf16 %v1659, %v1657
        %v1668 = vpack.c.bf16 %v1662, %v1660
        %v1669 = vpack.c.bf16 %v1663, %v1661
        %1670 = vrot.lane.b32.xlu0 %v1624, 16
        %v1671 = vpop.permute.xlu0 %1670
        %1672 = vrot.lane.b32.xlu0 %v1626, 16
        %v1673 = vpop.permute.xlu0 %1672
        %1674 = vrot.lane.b32.xlu0 %v1628, 16
        %v1675 = vpop.permute.xlu0 %1674
        %1676 = vrot.lane.b32.xlu0 %v1630, 16
        %v1677 = vpop.permute.xlu0 %1676
        %1678 = vrot.lane.b32.xlu0 %v1625, 16
        %v1679 = vpop.permute.xlu0 %1678
        %1680 = vrot.lane.b32.xlu0 %v1627, 16
        %v1681 = vpop.permute.xlu0 %1680
        %1682 = vrot.lane.b32.xlu0 %v1629, 16
        %v1683 = vpop.permute.xlu0 %1682
        %1684 = vrot.lane.b32.xlu0 %v1631, 16
        %v1685 = vpop.permute.xlu0 %1684
        %v1686 = vsel %vm639, %v1671, %v1679
        %v1687 = vsel %vm639, %v1673, %v1681
        %v1688 = vsel %vm639, %v1675, %v1683
        %v1689 = vsel %vm639, %v1677, %v1685
        %v1690 = vsel %vm639, %v1679, %v1671
        %v1691 = vsel %vm639, %v1681, %v1673
        %v1692 = vsel %vm639, %v1683, %v1675
        %v1693 = vsel %vm639, %v1685, %v1677
        %v1694 = vsel %vm650, %v1690, 0.0
        %v1695 = vsel %vm651, %v1686, 0.0
        %v1696 = vsel %vm650, %v1691, 0.0
        %v1697 = vsel %vm651, %v1687, 0.0
        %v1698 = vsel %vm650, %v1692, 0.0
        %v1699 = vsel %vm651, %v1688, 0.0
        %v1700 = vsel %vm650, %v1693, 0.0
        %v1701 = vsel %vm651, %v1689, 0.0
        %s1702 = scalar_lea.vmem [#allocation8], 8
        %v1703 = vld [vmem:[%s1702] sm:$0xf]
        %v1704 = vld [vmem:[%s1702 + $0x4] sm:$0xf]
        %v1705 = vpack.c.bf16 %v1696, %v1694
        %v1706 = vpack.c.bf16 %v1697, %v1695
        %v1707 = vpack.c.bf16 %v1700, %v1698
        %v1708 = vpack.c.bf16 %v1701, %v1699
        %v1711 = vunpack.c.l.b16 %v1703
        %v1712 = vunpack.c.l.b16 %v1704
        %v1713 = vpack.c.b16 %v1712, %v1711
        %v1715 = vsel %vm679, %v1713, 0
        %1717 = vmatprep.subr.bf16.mxu0 0
        %1718 = vmatpush1.bf16.msra.mxu0 0
        %1719 = vmatprep.subr.bf16.mxu0 0
        %1720 = vmatpush1.bf16.msra.mxu0 0
        %1721 = vmatprep.subr.bf16.mxu0 0
        %1722 = vmatpush1.bf16.msra.mxu0 0
        %1723 = vmatprep.subr.bf16.mxu0 0
        %1724 = vmatpush1.bf16.msra.mxu0 0
        %1725 = vmatprep.subr.bf16.mxu0 0
        %1726 = vmatpush1.bf16.msra.mxu0 0
        %1727 = vmatprep.subr.bf16.mxu0 0
        %1728 = vmatpush1.bf16.msra.mxu0 0
        %1729 = vmatprep.subr.bf16.mxu0 %v1708
        %1730 = vmatpush1.bf16.msra.mxu0 %v1707
        %1731 = vmatprep.subr.bf16.mxu0 %v1706
        %1732 = vmatpush1.bf16.msra.mxu0 %v1705
        %1733 = vmatprep.subr.bf16.mxu0 0
        %1734 = vmatpush2.bf16.msra.mxu0 0
        %1735 = vmatprep.subr.bf16.mxu0 0
        %1736 = vmatpush2.bf16.msra.mxu0 0
        %1737 = vmatprep.subr.bf16.mxu0 0
        %1738 = vmatpush2.bf16.msra.mxu0 0
        %1739 = vmatprep.subr.bf16.mxu0 0
        %1740 = vmatpush2.bf16.msra.mxu0 0
        %1741 = vmatprep.subr.bf16.mxu0 0
        %1742 = vmatpush2.bf16.msra.mxu0 0
        %1743 = vmatprep.subr.bf16.mxu0 0
        %1744 = vmatpush2.bf16.msra.mxu0 0
        %1745 = vmatprep.subr.bf16.mxu0 0
        %1746 = vmatpush2.bf16.msra.mxu0 0
        %1747 = vmatprep.subr.bf16.mxu0 0
        %1748 = vmatpush2.bf16.msra.mxu0 0
        %1749 = vmatprep.mubr.bf16.mxu0 0
        %1750 = vmatmul.mubr.bf16.gmra.mxu0 %v1715
        %v1751 = vpop.f32.mrf.mxu0
        %v1752 = vadd.f32 0.0, %v1751
        %v1753 = vpop.f32.mrf.mxu0
        %v1754 = vadd.f32 0.0, %v1753
        %v1755 = vpop.f32.mrf.mxu0
        %v1756 = vadd.f32 0.0, %v1755
        %v1757 = vpop.f32.mrf.mxu0
        %v1758 = vadd.f32 0.0, %v1757
        %1759 = vdwg.mxu0
        %v1762 = vunpack.c.l.b16 %v1664
        %v1763 = vunpack.c.l.b16 %v1665
        %v1764 = vpack.c.b16 %v1763, %v1762
        %v1766 = vsel %vm679, %v1764, 0
        %1768 = vmatprep.subr.bf16.mxu0 0
        %1769 = vmatpush1.bf16.msra.mxu0 0
        %1770 = vmatprep.subr.bf16.mxu0 0
        %1771 = vmatpush1.bf16.msra.mxu0 0
        %1772 = vmatprep.subr.bf16.mxu0 0
        %1773 = vmatpush1.bf16.msra.mxu0 0
        %1774 = vmatprep.subr.bf16.mxu0 0
        %1775 = vmatpush1.bf16.msra.mxu0 0
        %1776 = vmatprep.subr.bf16.mxu0 0
        %1777 = vmatpush1.bf16.msra.mxu0 0
        %1778 = vmatprep.subr.bf16.mxu0 0
        %1779 = vmatpush1.bf16.msra.mxu0 0
        %1780 = vmatprep.subr.bf16.mxu0 %v1669
        %1781 = vmatpush1.bf16.msra.mxu0 %v1668
        %1782 = vmatprep.subr.bf16.mxu0 %v1667
        %1783 = vmatpush1.bf16.msra.mxu0 %v1666
        %1784 = vmatprep.subr.bf16.mxu0 0
        %1785 = vmatpush2.bf16.msra.mxu0 0
        %1786 = vmatprep.subr.bf16.mxu0 0
        %1787 = vmatpush2.bf16.msra.mxu0 0
        %1788 = vmatprep.subr.bf16.mxu0 0
        %1789 = vmatpush2.bf16.msra.mxu0 0
        %1790 = vmatprep.subr.bf16.mxu0 0
        %1791 = vmatpush2.bf16.msra.mxu0 0
        %1792 = vmatprep.subr.bf16.mxu0 0
        %1793 = vmatpush2.bf16.msra.mxu0 0
        %1794 = vmatprep.subr.bf16.mxu0 0
        %1795 = vmatpush2.bf16.msra.mxu0 0
        %1796 = vmatprep.subr.bf16.mxu0 0
        %1797 = vmatpush2.bf16.msra.mxu0 0
        %1798 = vmatprep.subr.bf16.mxu0 0
        %1799 = vmatpush2.bf16.msra.mxu0 0
        %1800 = vmatprep.mubr.bf16.mxu0 0
        %1801 = vmatmul.mubr.bf16.gmra.mxu0 %v1766
        %v1802 = vpop.f32.mrf.mxu0
        %v1803 = vadd.f32 %v1752, %v1802
        %v1804 = vpop.f32.mrf.mxu0
        %v1805 = vadd.f32 %v1754, %v1804
        %v1806 = vpop.f32.mrf.mxu0
        %v1807 = vadd.f32 %v1756, %v1806
        %v1808 = vpop.f32.mrf.mxu0
        %v1809 = vadd.f32 %v1758, %v1808
        %1810 = vdwg.mxu0
        %1811 = vrot.lane.b32.xlu0 %v1624, 15
        %v1812 = vpop.permute.xlu0 %1811
        %1813 = vrot.lane.b32.xlu0 %v1626, 15
        %v1814 = vpop.permute.xlu0 %1813
        %1815 = vrot.lane.b32.xlu0 %v1628, 15
        %v1816 = vpop.permute.xlu0 %1815
        %1817 = vrot.lane.b32.xlu0 %v1630, 15
        %v1818 = vpop.permute.xlu0 %1817
        %1819 = vrot.lane.b32.xlu0 %v1625, 15
        %v1820 = vpop.permute.xlu0 %1819
        %1821 = vrot.lane.b32.xlu0 %v1627, 15
        %v1822 = vpop.permute.xlu0 %1821
        %1823 = vrot.lane.b32.xlu0 %v1629, 15
        %v1824 = vpop.permute.xlu0 %1823
        %1825 = vrot.lane.b32.xlu0 %v1631, 15
        %v1826 = vpop.permute.xlu0 %1825
        %v1827 = vsel %vm824, %v1812, %v1820
        %v1828 = vsel %vm824, %v1814, %v1822
        %v1829 = vsel %vm824, %v1816, %v1824
        %v1830 = vsel %vm824, %v1818, %v1826
        %v1831 = vsel %vm824, %v1820, %v1812
        %v1832 = vsel %vm824, %v1822, %v1814
        %v1833 = vsel %vm824, %v1824, %v1816
        %v1834 = vsel %vm824, %v1826, %v1818
        %v1835 = vsel %vm835, %v1831, 0.0
        %v1836 = vsel %vm836, %v1827, 0.0
        %v1837 = vsel %vm835, %v1832, 0.0
        %v1838 = vsel %vm836, %v1828, 0.0
        %v1839 = vsel %vm835, %v1833, 0.0
        %v1840 = vsel %vm836, %v1829, 0.0
        %v1841 = vsel %vm835, %v1834, 0.0
        %v1842 = vsel %vm836, %v1830, 0.0
        %s1843 = scalar_lea.vmem [#allocation8], 16
        %v1844 = vld [vmem:[%s1843] sm:$0xf]
        %v1845 = vld [vmem:[%s1843 + $0x4] sm:$0xf]
        %v1846 = vpack.c.bf16 %v1837, %v1835
        %v1847 = vpack.c.bf16 %v1838, %v1836
        %v1848 = vpack.c.bf16 %v1841, %v1839
        %v1849 = vpack.c.bf16 %v1842, %v1840
        %v1852 = vunpack.c.l.b16 %v1844
        %v1853 = vunpack.c.l.b16 %v1845
        %v1854 = vpack.c.b16 %v1853, %v1852
        %v1856 = vsel %vm679, %v1854, 0
        %1858 = vmatprep.subr.bf16.mxu0 0
        %1859 = vmatpush1.bf16.msra.mxu0 0
        %1860 = vmatprep.subr.bf16.mxu0 0
        %1861 = vmatpush1.bf16.msra.mxu0 0
        %1862 = vmatprep.subr.bf16.mxu0 0
        %1863 = vmatpush1.bf16.msra.mxu0 0
        %1864 = vmatprep.subr.bf16.mxu0 0
        %1865 = vmatpush1.bf16.msra.mxu0 0
        %1866 = vmatprep.subr.bf16.mxu0 0
        %1867 = vmatpush1.bf16.msra.mxu0 0
        %1868 = vmatprep.subr.bf16.mxu0 0
        %1869 = vmatpush1.bf16.msra.mxu0 0
        %1870 = vmatprep.subr.bf16.mxu0 %v1849
        %1871 = vmatpush1.bf16.msra.mxu0 %v1848
        %1872 = vmatprep.subr.bf16.mxu0 %v1847
        %1873 = vmatpush1.bf16.msra.mxu0 %v1846
        %1874 = vmatprep.subr.bf16.mxu0 0
        %1875 = vmatpush2.bf16.msra.mxu0 0
        %1876 = vmatprep.subr.bf16.mxu0 0
        %1877 = vmatpush2.bf16.msra.mxu0 0
        %1878 = vmatprep.subr.bf16.mxu0 0
        %1879 = vmatpush2.bf16.msra.mxu0 0
        %1880 = vmatprep.subr.bf16.mxu0 0
        %1881 = vmatpush2.bf16.msra.mxu0 0
        %1882 = vmatprep.subr.bf16.mxu0 0
        %1883 = vmatpush2.bf16.msra.mxu0 0
        %1884 = vmatprep.subr.bf16.mxu0 0
        %1885 = vmatpush2.bf16.msra.mxu0 0
        %1886 = vmatprep.subr.bf16.mxu0 0
        %1887 = vmatpush2.bf16.msra.mxu0 0
        %1888 = vmatprep.subr.bf16.mxu0 0
        %1889 = vmatpush2.bf16.msra.mxu0 0
        %1890 = vmatprep.mubr.bf16.mxu0 0
        %1891 = vmatmul.mubr.bf16.gmra.mxu0 %v1856
        %v1892 = vpop.f32.mrf.mxu0
        %v1893 = vadd.f32 0.0, %v1892
        %v1894 = vpop.f32.mrf.mxu0
        %v1895 = vadd.f32 0.0, %v1894
        %v1896 = vpop.f32.mrf.mxu0
        %v1897 = vadd.f32 0.0, %v1896
        %v1898 = vpop.f32.mrf.mxu0
        %v1899 = vadd.f32 0.0, %v1898
        %1900 = vdwg.mxu0
        %v1901 = vadd.f32 %v1803, %v1893
        %v1902 = vadd.f32 %v1805, %v1895
        %v1903 = vadd.f32 %v1807, %v1897
        %v1904 = vadd.f32 %v1809, %v1899
        %1905 = vrot.lane.b32.xlu0 %v1624, 1
        %v1906 = vpop.permute.xlu0 %1905
        %1907 = vrot.lane.b32.xlu0 %v1626, 1
        %v1908 = vpop.permute.xlu0 %1907
        %1909 = vrot.lane.b32.xlu0 %v1628, 1
        %v1910 = vpop.permute.xlu0 %1909
        %1911 = vrot.lane.b32.xlu0 %v1630, 1
        %v1912 = vpop.permute.xlu0 %1911
        %1913 = vrot.lane.b32.xlu0 %v1625, 1
        %v1914 = vpop.permute.xlu0 %1913
        %1915 = vrot.lane.b32.xlu0 %v1627, 1
        %v1916 = vpop.permute.xlu0 %1915
        %1917 = vrot.lane.b32.xlu0 %v1629, 1
        %v1918 = vpop.permute.xlu0 %1917
        %1919 = vrot.lane.b32.xlu0 %v1631, 1
        %v1920 = vpop.permute.xlu0 %1919
        %v1921 = vsel %vm947, %v1906, %v1914
        %v1922 = vsel %vm947, %v1908, %v1916
        %v1923 = vsel %vm947, %v1910, %v1918
        %v1924 = vsel %vm947, %v1912, %v1920
        %v1925 = vsel %vm947, %v1914, %v1906
        %v1926 = vsel %vm947, %v1916, %v1908
        %v1927 = vsel %vm947, %v1918, %v1910
        %v1928 = vsel %vm947, %v1920, %v1912
        %v1929 = vsel %vm958, %v1925, 0.0
        %v1930 = vsel %vm959, %v1921, 0.0
        %v1931 = vsel %vm958, %v1926, 0.0
        %v1932 = vsel %vm959, %v1922, 0.0
        %v1933 = vsel %vm958, %v1927, 0.0
        %v1934 = vsel %vm959, %v1923, 0.0
        %v1935 = vsel %vm958, %v1928, 0.0
        %v1936 = vsel %vm959, %v1924, 0.0
        %s1937 = scalar_lea.vmem [#allocation8], 24
        %v1938 = vld [vmem:[%s1937] sm:$0xf]
        %v1939 = vld [vmem:[%s1937 + $0x4] sm:$0xf]
        %v1940 = vpack.c.bf16 %v1931, %v1929
        %v1941 = vpack.c.bf16 %v1932, %v1930
        %v1942 = vpack.c.bf16 %v1935, %v1933
        %v1943 = vpack.c.bf16 %v1936, %v1934
        %v1946 = vunpack.c.l.b16 %v1938
        %v1947 = vunpack.c.l.b16 %v1939
        %v1948 = vpack.c.b16 %v1947, %v1946
        %v1950 = vsel %vm679, %v1948, 0
        %1952 = vmatprep.subr.bf16.mxu0 0
        %1953 = vmatpush1.bf16.msra.mxu0 0
        %1954 = vmatprep.subr.bf16.mxu0 0
        %1955 = vmatpush1.bf16.msra.mxu0 0
        %1956 = vmatprep.subr.bf16.mxu0 0
        %1957 = vmatpush1.bf16.msra.mxu0 0
        %1958 = vmatprep.subr.bf16.mxu0 0
        %1959 = vmatpush1.bf16.msra.mxu0 0
        %1960 = vmatprep.subr.bf16.mxu0 0
        %1961 = vmatpush1.bf16.msra.mxu0 0
        %1962 = vmatprep.subr.bf16.mxu0 0
        %1963 = vmatpush1.bf16.msra.mxu0 0
        %1964 = vmatprep.subr.bf16.mxu0 %v1943
        %1965 = vmatpush1.bf16.msra.mxu0 %v1942
        %1966 = vmatprep.subr.bf16.mxu0 %v1941
        %1967 = vmatpush1.bf16.msra.mxu0 %v1940
        %1968 = vmatprep.subr.bf16.mxu0 0
        %1969 = vmatpush2.bf16.msra.mxu0 0
        %1970 = vmatprep.subr.bf16.mxu0 0
        %1971 = vmatpush2.bf16.msra.mxu0 0
        %1972 = vmatprep.subr.bf16.mxu0 0
        %1973 = vmatpush2.bf16.msra.mxu0 0
        %1974 = vmatprep.subr.bf16.mxu0 0
        %1975 = vmatpush2.bf16.msra.mxu0 0
        %1976 = vmatprep.subr.bf16.mxu0 0
        %1977 = vmatpush2.bf16.msra.mxu0 0
        %1978 = vmatprep.subr.bf16.mxu0 0
        %1979 = vmatpush2.bf16.msra.mxu0 0
        %1980 = vmatprep.subr.bf16.mxu0 0
        %1981 = vmatpush2.bf16.msra.mxu0 0
        %1982 = vmatprep.subr.bf16.mxu0 0
        %1983 = vmatpush2.bf16.msra.mxu0 0
        %1984 = vmatprep.mubr.bf16.mxu0 0
        %1985 = vmatmul.mubr.bf16.gmra.mxu0 %v1950
        %v1986 = vpop.f32.mrf.mxu0
        %v1987 = vadd.f32 0.0, %v1986
        %v1988 = vpop.f32.mrf.mxu0
        %v1989 = vadd.f32 0.0, %v1988
        %v1990 = vpop.f32.mrf.mxu0
        %v1991 = vadd.f32 0.0, %v1990
        %v1992 = vpop.f32.mrf.mxu0
        %v1993 = vadd.f32 0.0, %v1992
        %1994 = vdwg.mxu0
        %v1995 = vadd.f32 %v1901, %v1987
        %v1996 = vadd.f32 %v1902, %v1989
        %v1997 = vadd.f32 %v1903, %v1991
        %v1998 = vadd.f32 %v1904, %v1993
        %s1999 = scalar_lea.vmem [#allocation8], 32
        %v2000 = vld [vmem:[%s1999] sm:$0xf]
        %v2001 = vld [vmem:[%s1999 + $0x4] sm:$0xf]
        %v2002 = vpack.c.bf16 %v1626, %v1624
        %v2003 = vpack.c.bf16 %v1627, %v1625
        %v2004 = vpack.c.bf16 %v1630, %v1628
        %v2005 = vpack.c.bf16 %v1631, %v1629
        %v2008 = vunpack.c.l.b16 %v2000
        %v2009 = vunpack.c.l.b16 %v2001
        %v2010 = vpack.c.b16 %v2009, %v2008
        %v2012 = vsel %vm679, %v2010, 0
        %2014 = vmatprep.subr.bf16.mxu0 0
        %2015 = vmatpush1.bf16.msra.mxu0 0
        %2016 = vmatprep.subr.bf16.mxu0 0
        %2017 = vmatpush1.bf16.msra.mxu0 0
        %2018 = vmatprep.subr.bf16.mxu0 0
        %2019 = vmatpush1.bf16.msra.mxu0 0
        %2020 = vmatprep.subr.bf16.mxu0 0
        %2021 = vmatpush1.bf16.msra.mxu0 0
        %2022 = vmatprep.subr.bf16.mxu0 0
        %2023 = vmatpush1.bf16.msra.mxu0 0
        %2024 = vmatprep.subr.bf16.mxu0 0
        %2025 = vmatpush1.bf16.msra.mxu0 0
        %2026 = vmatprep.subr.bf16.mxu0 %v2005
        %2027 = vmatpush1.bf16.msra.mxu0 %v2004
        %2028 = vmatprep.subr.bf16.mxu0 %v2003
        %2029 = vmatpush1.bf16.msra.mxu0 %v2002
        %2030 = vmatprep.subr.bf16.mxu0 0
        %2031 = vmatpush2.bf16.msra.mxu0 0
        %2032 = vmatprep.subr.bf16.mxu0 0
        %2033 = vmatpush2.bf16.msra.mxu0 0
        %2034 = vmatprep.subr.bf16.mxu0 0
        %2035 = vmatpush2.bf16.msra.mxu0 0
        %2036 = vmatprep.subr.bf16.mxu0 0
        %2037 = vmatpush2.bf16.msra.mxu0 0
        %2038 = vmatprep.subr.bf16.mxu0 0
        %2039 = vmatpush2.bf16.msra.mxu0 0
        %2040 = vmatprep.subr.bf16.mxu0 0
        %2041 = vmatpush2.bf16.msra.mxu0 0
        %2042 = vmatprep.subr.bf16.mxu0 0
        %2043 = vmatpush2.bf16.msra.mxu0 0
        %2044 = vmatprep.subr.bf16.mxu0 0
        %2045 = vmatpush2.bf16.msra.mxu0 0
        %2046 = vmatprep.mubr.bf16.mxu0 0
        %2047 = vmatmul.mubr.bf16.gmra.mxu0 %v2012
        %v2048 = vpop.f32.mrf.mxu0
        %v2049 = vadd.f32 0.0, %v2048
        %v2050 = vpop.f32.mrf.mxu0
        %v2051 = vadd.f32 0.0, %v2050
        %v2052 = vpop.f32.mrf.mxu0
        %v2053 = vadd.f32 0.0, %v2052
        %v2054 = vpop.f32.mrf.mxu0
        %v2055 = vadd.f32 0.0, %v2054
        %2056 = vdwg.mxu0
        %v2057 = vadd.f32 %v1995, %v2049
        %v2058 = vadd.f32 %v1996, %v2051
        %v2059 = vadd.f32 %v1997, %v2053
        %v2060 = vadd.f32 %v1998, %v2055
        %2061 = vrot.lane.b32.xlu0 %v1624, 127
        %v2062 = vpop.permute.xlu0 %2061
        %2063 = vrot.lane.b32.xlu0 %v1626, 127
        %v2064 = vpop.permute.xlu0 %2063
        %2065 = vrot.lane.b32.xlu0 %v1628, 127
        %v2066 = vpop.permute.xlu0 %2065
        %2067 = vrot.lane.b32.xlu0 %v1630, 127
        %v2068 = vpop.permute.xlu0 %2067
        %2069 = vrot.lane.b32.xlu0 %v1625, 127
        %v2070 = vpop.permute.xlu0 %2069
        %2071 = vrot.lane.b32.xlu0 %v1627, 127
        %v2072 = vpop.permute.xlu0 %2071
        %2073 = vrot.lane.b32.xlu0 %v1629, 127
        %v2074 = vpop.permute.xlu0 %2073
        %2075 = vrot.lane.b32.xlu0 %v1631, 127
        %v2076 = vpop.permute.xlu0 %2075
        %v2077 = vsel %vm1156, %v2062, %v2070
        %v2078 = vsel %vm1156, %v2064, %v2072
        %v2079 = vsel %vm1156, %v2066, %v2074
        %v2080 = vsel %vm1156, %v2068, %v2076
        %v2081 = vsel %vm1156, %v2070, %v2062
        %v2082 = vsel %vm1156, %v2072, %v2064
        %v2083 = vsel %vm1156, %v2074, %v2066
        %v2084 = vsel %vm1156, %v2076, %v2068
        %v2085 = vsel %vm1167, %v2077, 0.0
        %v2086 = vsel %vm1168, %v2081, 0.0
        %v2087 = vsel %vm1167, %v2078, 0.0
        %v2088 = vsel %vm1168, %v2082, 0.0
        %v2089 = vsel %vm1167, %v2079, 0.0
        %v2090 = vsel %vm1168, %v2083, 0.0
        %v2091 = vsel %vm1167, %v2080, 0.0
        %v2092 = vsel %vm1168, %v2084, 0.0
        %s2093 = scalar_lea.vmem [#allocation8], 40
        %v2094 = vld [vmem:[%s2093] sm:$0xf]
        %v2095 = vld [vmem:[%s2093 + $0x4] sm:$0xf]
        %v2096 = vpack.c.bf16 %v2087, %v2085
        %v2097 = vpack.c.bf16 %v2088, %v2086
        %v2098 = vpack.c.bf16 %v2091, %v2089
        %v2099 = vpack.c.bf16 %v2092, %v2090
        %v2102 = vunpack.c.l.b16 %v2094
        %v2103 = vunpack.c.l.b16 %v2095
        %v2104 = vpack.c.b16 %v2103, %v2102
        %v2106 = vsel %vm679, %v2104, 0
        %2108 = vmatprep.subr.bf16.mxu0 0
        %2109 = vmatpush1.bf16.msra.mxu0 0
        %2110 = vmatprep.subr.bf16.mxu0 0
        %2111 = vmatpush1.bf16.msra.mxu0 0
        %2112 = vmatprep.subr.bf16.mxu0 0
        %2113 = vmatpush1.bf16.msra.mxu0 0
        %2114 = vmatprep.subr.bf16.mxu0 0
        %2115 = vmatpush1.bf16.msra.mxu0 0
        %2116 = vmatprep.subr.bf16.mxu0 0
        %2117 = vmatpush1.bf16.msra.mxu0 0
        %2118 = vmatprep.subr.bf16.mxu0 0
        %2119 = vmatpush1.bf16.msra.mxu0 0
        %2120 = vmatprep.subr.bf16.mxu0 %v2099
        %2121 = vmatpush1.bf16.msra.mxu0 %v2098
        %2122 = vmatprep.subr.bf16.mxu0 %v2097
        %2123 = vmatpush1.bf16.msra.mxu0 %v2096
        %2124 = vmatprep.subr.bf16.mxu0 0
        %2125 = vmatpush2.bf16.msra.mxu0 0
        %2126 = vmatprep.subr.bf16.mxu0 0
        %2127 = vmatpush2.bf16.msra.mxu0 0
        %2128 = vmatprep.subr.bf16.mxu0 0
        %2129 = vmatpush2.bf16.msra.mxu0 0
        %2130 = vmatprep.subr.bf16.mxu0 0
        %2131 = vmatpush2.bf16.msra.mxu0 0
        %2132 = vmatprep.subr.bf16.mxu0 0
        %2133 = vmatpush2.bf16.msra.mxu0 0
        %2134 = vmatprep.subr.bf16.mxu0 0
        %2135 = vmatpush2.bf16.msra.mxu0 0
        %2136 = vmatprep.subr.bf16.mxu0 0
        %2137 = vmatpush2.bf16.msra.mxu0 0
        %2138 = vmatprep.subr.bf16.mxu0 0
        %2139 = vmatpush2.bf16.msra.mxu0 0
        %2140 = vmatprep.mubr.bf16.mxu0 0
        %2141 = vmatmul.mubr.bf16.gmra.mxu0 %v2106
        %v2142 = vpop.f32.mrf.mxu0
        %v2143 = vadd.f32 0.0, %v2142
        %v2144 = vpop.f32.mrf.mxu0
        %v2145 = vadd.f32 0.0, %v2144
        %v2146 = vpop.f32.mrf.mxu0
        %v2147 = vadd.f32 0.0, %v2146
        %v2148 = vpop.f32.mrf.mxu0
        %v2149 = vadd.f32 0.0, %v2148
        %2150 = vdwg.mxu0
        %v2151 = vadd.f32 %v2057, %v2143
        %v2152 = vadd.f32 %v2058, %v2145
        %v2153 = vadd.f32 %v2059, %v2147
        %v2154 = vadd.f32 %v2060, %v2149
        %2155 = vrot.lane.b32.xlu0 %v1624, 113
        %v2156 = vpop.permute.xlu0 %2155
        %2157 = vrot.lane.b32.xlu0 %v1626, 113
        %v2158 = vpop.permute.xlu0 %2157
        %2159 = vrot.lane.b32.xlu0 %v1628, 113
        %v2160 = vpop.permute.xlu0 %2159
        %2161 = vrot.lane.b32.xlu0 %v1630, 113
        %v2162 = vpop.permute.xlu0 %2161
        %2163 = vrot.lane.b32.xlu0 %v1625, 113
        %v2164 = vpop.permute.xlu0 %2163
        %2165 = vrot.lane.b32.xlu0 %v1627, 113
        %v2166 = vpop.permute.xlu0 %2165
        %2167 = vrot.lane.b32.xlu0 %v1629, 113
        %v2168 = vpop.permute.xlu0 %2167
        %2169 = vrot.lane.b32.xlu0 %v1631, 113
        %v2170 = vpop.permute.xlu0 %2169
        %v2171 = vsel %vm1279, %v2156, %v2164
        %v2172 = vsel %vm1279, %v2158, %v2166
        %v2173 = vsel %vm1279, %v2160, %v2168
        %v2174 = vsel %vm1279, %v2162, %v2170
        %v2175 = vsel %vm1279, %v2164, %v2156
        %v2176 = vsel %vm1279, %v2166, %v2158
        %v2177 = vsel %vm1279, %v2168, %v2160
        %v2178 = vsel %vm1279, %v2170, %v2162
        %v2179 = vsel %vm1290, %v2171, 0.0
        %v2180 = vsel %vm1291, %v2175, 0.0
        %v2181 = vsel %vm1290, %v2172, 0.0
        %v2182 = vsel %vm1291, %v2176, 0.0
        %v2183 = vsel %vm1290, %v2173, 0.0
        %v2184 = vsel %vm1291, %v2177, 0.0
        %v2185 = vsel %vm1290, %v2174, 0.0
        %v2186 = vsel %vm1291, %v2178, 0.0
        %s2187 = scalar_lea.vmem [#allocation8], 48
        %v2188 = vld [vmem:[%s2187] sm:$0xf]
        %v2189 = vld [vmem:[%s2187 + $0x4] sm:$0xf]
        %v2190 = vpack.c.bf16 %v2181, %v2179
        %v2191 = vpack.c.bf16 %v2182, %v2180
        %v2192 = vpack.c.bf16 %v2185, %v2183
        %v2193 = vpack.c.bf16 %v2186, %v2184
        %v2196 = vunpack.c.l.b16 %v2188
        %v2197 = vunpack.c.l.b16 %v2189
        %v2198 = vpack.c.b16 %v2197, %v2196
        %v2200 = vsel %vm679, %v2198, 0
        %2202 = vmatprep.subr.bf16.mxu0 0
        %2203 = vmatpush1.bf16.msra.mxu0 0
        %2204 = vmatprep.subr.bf16.mxu0 0
        %2205 = vmatpush1.bf16.msra.mxu0 0
        %2206 = vmatprep.subr.bf16.mxu0 0
        %2207 = vmatpush1.bf16.msra.mxu0 0
        %2208 = vmatprep.subr.bf16.mxu0 0
        %2209 = vmatpush1.bf16.msra.mxu0 0
        %2210 = vmatprep.subr.bf16.mxu0 0
        %2211 = vmatpush1.bf16.msra.mxu0 0
        %2212 = vmatprep.subr.bf16.mxu0 0
        %2213 = vmatpush1.bf16.msra.mxu0 0
        %2214 = vmatprep.subr.bf16.mxu0 %v2193
        %2215 = vmatpush1.bf16.msra.mxu0 %v2192
        %2216 = vmatprep.subr.bf16.mxu0 %v2191
        %2217 = vmatpush1.bf16.msra.mxu0 %v2190
        %2218 = vmatprep.subr.bf16.mxu0 0
        %2219 = vmatpush2.bf16.msra.mxu0 0
        %2220 = vmatprep.subr.bf16.mxu0 0
        %2221 = vmatpush2.bf16.msra.mxu0 0
        %2222 = vmatprep.subr.bf16.mxu0 0
        %2223 = vmatpush2.bf16.msra.mxu0 0
        %2224 = vmatprep.subr.bf16.mxu0 0
        %2225 = vmatpush2.bf16.msra.mxu0 0
        %2226 = vmatprep.subr.bf16.mxu0 0
        %2227 = vmatpush2.bf16.msra.mxu0 0
        %2228 = vmatprep.subr.bf16.mxu0 0
        %2229 = vmatpush2.bf16.msra.mxu0 0
        %2230 = vmatprep.subr.bf16.mxu0 0
        %2231 = vmatpush2.bf16.msra.mxu0 0
        %2232 = vmatprep.subr.bf16.mxu0 0
        %2233 = vmatpush2.bf16.msra.mxu0 0
        %2234 = vmatprep.mubr.bf16.mxu0 0
        %2235 = vmatmul.mubr.bf16.gmra.mxu0 %v2200
        %v2236 = vpop.f32.mrf.mxu0
        %v2237 = vadd.f32 0.0, %v2236
        %v2238 = vpop.f32.mrf.mxu0
        %v2239 = vadd.f32 0.0, %v2238
        %v2240 = vpop.f32.mrf.mxu0
        %v2241 = vadd.f32 0.0, %v2240
        %v2242 = vpop.f32.mrf.mxu0
        %v2243 = vadd.f32 0.0, %v2242
        %2244 = vdwg.mxu0
        %v2245 = vadd.f32 %v2151, %v2237
        %v2246 = vadd.f32 %v2152, %v2239
        %v2247 = vadd.f32 %v2153, %v2241
        %v2248 = vadd.f32 %v2154, %v2243
        %2249 = vrot.lane.b32.xlu0 %v1624, 112
        %v2250 = vpop.permute.xlu0 %2249
        %2251 = vrot.lane.b32.xlu0 %v1626, 112
        %v2252 = vpop.permute.xlu0 %2251
        %2253 = vrot.lane.b32.xlu0 %v1628, 112
        %v2254 = vpop.permute.xlu0 %2253
        %2255 = vrot.lane.b32.xlu0 %v1630, 112
        %v2256 = vpop.permute.xlu0 %2255
        %2257 = vrot.lane.b32.xlu0 %v1625, 112
        %v2258 = vpop.permute.xlu0 %2257
        %2259 = vrot.lane.b32.xlu0 %v1627, 112
        %v2260 = vpop.permute.xlu0 %2259
        %2261 = vrot.lane.b32.xlu0 %v1629, 112
        %v2262 = vpop.permute.xlu0 %2261
        %2263 = vrot.lane.b32.xlu0 %v1631, 112
        %v2264 = vpop.permute.xlu0 %2263
        %v2265 = vsel %vm1402, %v2250, %v2258
        %v2266 = vsel %vm1402, %v2252, %v2260
        %v2267 = vsel %vm1402, %v2254, %v2262
        %v2268 = vsel %vm1402, %v2256, %v2264
        %v2269 = vsel %vm1402, %v2258, %v2250
        %v2270 = vsel %vm1402, %v2260, %v2252
        %v2271 = vsel %vm1402, %v2262, %v2254
        %v2272 = vsel %vm1402, %v2264, %v2256
        %v2273 = vsel %vm1413, %v2265, 0.0
        %v2274 = vsel %vm1414, %v2269, 0.0
        %v2275 = vsel %vm1413, %v2266, 0.0
        %v2276 = vsel %vm1414, %v2270, 0.0
        %v2277 = vsel %vm1413, %v2267, 0.0
        %v2278 = vsel %vm1414, %v2271, 0.0
        %v2279 = vsel %vm1413, %v2268, 0.0
        %v2280 = vsel %vm1414, %v2272, 0.0
        %s2281 = scalar_lea.vmem [#allocation8], 56
        %v2282 = vld [vmem:[%s2281] sm:$0xf]
        %v2283 = vld [vmem:[%s2281 + $0x4] sm:$0xf]
        %v2284 = vpack.c.bf16 %v2275, %v2273
        %v2285 = vpack.c.bf16 %v2276, %v2274
        %v2286 = vpack.c.bf16 %v2279, %v2277
        %v2287 = vpack.c.bf16 %v2280, %v2278
        %v2290 = vunpack.c.l.b16 %v2282
        %v2291 = vunpack.c.l.b16 %v2283
        %v2292 = vpack.c.b16 %v2291, %v2290
        %v2294 = vsel %vm679, %v2292, 0
        %2296 = vmatprep.subr.bf16.mxu0 0
        %2297 = vmatpush1.bf16.msra.mxu0 0
        %2298 = vmatprep.subr.bf16.mxu0 0
        %2299 = vmatpush1.bf16.msra.mxu0 0
        %2300 = vmatprep.subr.bf16.mxu0 0
        %2301 = vmatpush1.bf16.msra.mxu0 0
        %2302 = vmatprep.subr.bf16.mxu0 0
        %2303 = vmatpush1.bf16.msra.mxu0 0
        %2304 = vmatprep.subr.bf16.mxu0 0
        %2305 = vmatpush1.bf16.msra.mxu0 0
        %2306 = vmatprep.subr.bf16.mxu0 0
        %2307 = vmatpush1.bf16.msra.mxu0 0
        %2308 = vmatprep.subr.bf16.mxu0 %v2287
        %2309 = vmatpush1.bf16.msra.mxu0 %v2286
        %2310 = vmatprep.subr.bf16.mxu0 %v2285
        %2311 = vmatpush1.bf16.msra.mxu0 %v2284
        %2312 = vmatprep.subr.bf16.mxu0 0
        %2313 = vmatpush2.bf16.msra.mxu0 0
        %2314 = vmatprep.subr.bf16.mxu0 0
        %2315 = vmatpush2.bf16.msra.mxu0 0
        %2316 = vmatprep.subr.bf16.mxu0 0
        %2317 = vmatpush2.bf16.msra.mxu0 0
        %2318 = vmatprep.subr.bf16.mxu0 0
        %2319 = vmatpush2.bf16.msra.mxu0 0
        %2320 = vmatprep.subr.bf16.mxu0 0
        %2321 = vmatpush2.bf16.msra.mxu0 0
        %2322 = vmatprep.subr.bf16.mxu0 0
        %2323 = vmatpush2.bf16.msra.mxu0 0
        %2324 = vmatprep.subr.bf16.mxu0 0
        %2325 = vmatpush2.bf16.msra.mxu0 0
        %2326 = vmatprep.subr.bf16.mxu0 0
        %2327 = vmatpush2.bf16.msra.mxu0 0
        %2328 = vmatprep.mubr.bf16.mxu0 0
        %2329 = vmatmul.mubr.bf16.gmra.mxu0 %v2294
        %v2330 = vpop.f32.mrf.mxu0
        %v2331 = vadd.f32 0.0, %v2330
        %v2332 = vpop.f32.mrf.mxu0
        %v2333 = vadd.f32 0.0, %v2332
        %v2334 = vpop.f32.mrf.mxu0
        %v2335 = vadd.f32 0.0, %v2334
        %v2336 = vpop.f32.mrf.mxu0
        %v2337 = vadd.f32 0.0, %v2336
        %2338 = vdwg.mxu0
        %v2339 = vadd.f32 %v2245, %v2331
        %v2340 = vadd.f32 %v2246, %v2333
        %v2341 = vadd.f32 %v2247, %v2335
        %v2342 = vadd.f32 %v2248, %v2337
        %2343 = vrot.lane.b32.xlu0 %v1624, 111
        %v2344 = vpop.permute.xlu0 %2343
        %2345 = vrot.lane.b32.xlu0 %v1626, 111
        %v2346 = vpop.permute.xlu0 %2345
        %2347 = vrot.lane.b32.xlu0 %v1628, 111
        %v2348 = vpop.permute.xlu0 %2347
        %2349 = vrot.lane.b32.xlu0 %v1630, 111
        %v2350 = vpop.permute.xlu0 %2349
        %2351 = vrot.lane.b32.xlu0 %v1625, 111
        %v2352 = vpop.permute.xlu0 %2351
        %2353 = vrot.lane.b32.xlu0 %v1627, 111
        %v2354 = vpop.permute.xlu0 %2353
        %2355 = vrot.lane.b32.xlu0 %v1629, 111
        %v2356 = vpop.permute.xlu0 %2355
        %2357 = vrot.lane.b32.xlu0 %v1631, 111
        %v2358 = vpop.permute.xlu0 %2357
        %v2359 = vsel %vm1525, %v2344, %v2352
        %v2360 = vsel %vm1525, %v2346, %v2354
        %v2361 = vsel %vm1525, %v2348, %v2356
        %v2362 = vsel %vm1525, %v2350, %v2358
        %v2363 = vsel %vm1525, %v2352, %v2344
        %v2364 = vsel %vm1525, %v2354, %v2346
        %v2365 = vsel %vm1525, %v2356, %v2348
        %v2366 = vsel %vm1525, %v2358, %v2350
        %v2367 = vsel %vm1536, %v2359, 0.0
        %v2368 = vsel %vm1537, %v2363, 0.0
        %v2369 = vsel %vm1536, %v2360, 0.0
        %v2370 = vsel %vm1537, %v2364, 0.0
        %v2371 = vsel %vm1536, %v2361, 0.0
        %v2372 = vsel %vm1537, %v2365, 0.0
        %v2373 = vsel %vm1536, %v2362, 0.0
        %v2374 = vsel %vm1537, %v2366, 0.0
        %s2375 = scalar_lea.vmem [#allocation8], 64
        %v2376 = vld [vmem:[%s2375] sm:$0xf]
        %v2377 = vld [vmem:[%s2375 + $0x4] sm:$0xf]
        %v2378 = vpack.c.bf16 %v2369, %v2367
        %v2379 = vpack.c.bf16 %v2370, %v2368
        %v2380 = vpack.c.bf16 %v2373, %v2371
        %v2381 = vpack.c.bf16 %v2374, %v2372
        %v2384 = vunpack.c.l.b16 %v2376
        %v2385 = vunpack.c.l.b16 %v2377
        %v2386 = vpack.c.b16 %v2385, %v2384
        %v2388 = vsel %vm679, %v2386, 0
        %2390 = vmatprep.subr.bf16.mxu0 0
        %2391 = vmatpush1.bf16.msra.mxu0 0
        %2392 = vmatprep.subr.bf16.mxu0 0
        %2393 = vmatpush1.bf16.msra.mxu0 0
        %2394 = vmatprep.subr.bf16.mxu0 0
        %2395 = vmatpush1.bf16.msra.mxu0 0
        %2396 = vmatprep.subr.bf16.mxu0 0
        %2397 = vmatpush1.bf16.msra.mxu0 0
        %2398 = vmatprep.subr.bf16.mxu0 0
        %2399 = vmatpush1.bf16.msra.mxu0 0
        %2400 = vmatprep.subr.bf16.mxu0 0
        %2401 = vmatpush1.bf16.msra.mxu0 0
        %2402 = vmatprep.subr.bf16.mxu0 %v2381
        %2403 = vmatpush1.bf16.msra.mxu0 %v2380
        %2404 = vmatprep.subr.bf16.mxu0 %v2379
        %2405 = vmatpush1.bf16.msra.mxu0 %v2378
        %2406 = vmatprep.subr.bf16.mxu0 0
        %2407 = vmatpush2.bf16.msra.mxu0 0
        %2408 = vmatprep.subr.bf16.mxu0 0
        %2409 = vmatpush2.bf16.msra.mxu0 0
        %2410 = vmatprep.subr.bf16.mxu0 0
        %2411 = vmatpush2.bf16.msra.mxu0 0
        %2412 = vmatprep.subr.bf16.mxu0 0
        %2413 = vmatpush2.bf16.msra.mxu0 0
        %2414 = vmatprep.subr.bf16.mxu0 0
        %2415 = vmatpush2.bf16.msra.mxu0 0
        %2416 = vmatprep.subr.bf16.mxu0 0
        %2417 = vmatpush2.bf16.msra.mxu0 0
        %2418 = vmatprep.subr.bf16.mxu0 0
        %2419 = vmatpush2.bf16.msra.mxu0 0
        %2420 = vmatprep.subr.bf16.mxu0 0
        %2421 = vmatpush2.bf16.msra.mxu0 0
        %2422 = vmatprep.mubr.bf16.mxu0 0
        %2423 = vmatmul.mubr.bf16.gmra.mxu0 %v2388
        %v2424 = vpop.f32.mrf.mxu0
        %v2425 = vadd.f32 0.0, %v2424
        %v2426 = vpop.f32.mrf.mxu0
        %v2427 = vadd.f32 0.0, %v2426
        %v2428 = vpop.f32.mrf.mxu0
        %v2429 = vadd.f32 0.0, %v2428
        %v2430 = vpop.f32.mrf.mxu0
        %v2431 = vadd.f32 0.0, %v2430
        %2432 = vdwg.mxu0
        %v2433 = vadd.f32 %v2339, %v2425
        %v2434 = vadd.f32 %v2340, %v2427
        %v2435 = vadd.f32 %v2341, %v2429
        %v2436 = vadd.f32 %v2342, %v2431
        %v2437 = vadd.f32 %v2433, %v2434
        %2438 = vadd.xlane.f32.xlu0 %v2437
        %v2439 = vpop.xlane.xlu0 %2438
        %v2440 = vadd.f32 %v2435, %v2436
        %2441 = vadd.xlane.f32.xlu0 %v2440
        %v2442 = vpop.xlane.xlu0 %2441
        %v2443 = vrcp.pop 256.0
        %v2444 = vmul.f32 %v2439, %v2443
        %v2445 = vmul.f32 %v2442, %v2443
        %v2446 = vsub.f32 %v2433, %v2444
        %v2447 = vsub.f32 %v2434, %v2444
        %v2448 = vsub.f32 %v2435, %v2445
        %v2449 = vsub.f32 %v2436, %v2445
        %v2450 = vmul.f32 %v2446, %v2446
        %v2451 = vmul.f32 %v2447, %v2447
        %v2452 = vmul.f32 %v2448, %v2448
        %v2453 = vmul.f32 %v2449, %v2449
        %v2454 = vadd.f32 %v2450, %v2451
        %2455 = vadd.xlane.f32.xlu0 %v2454
        %v2456 = vpop.xlane.xlu0 %2455
        %v2457 = vadd.f32 %v2452, %v2453
        %2458 = vadd.xlane.f32.xlu0 %v2457
        %v2459 = vpop.xlane.xlu0 %2458
        %v2460 = vmul.f32 %v2456, %v2443
        %v2461 = vmul.f32 %v2459, %v2443
        %v2462 = vadd.f32 %v2460, 1e-05
        %v2463 = vadd.f32 %v2461, 1e-05
        %v2464 = vrsqrt.pop %v2462
        %v2465 = vrsqrt.pop %v2463
        %v2466 = vmul.f32 %v2446, %v2464
        %v2467 = vmul.f32 %v2447, %v2464
        %v2468 = vmul.f32 %v2448, %v2465
        %v2469 = vmul.f32 %v2449, %v2465
        %v2470 = vmax.f32 %v2466, 0.0
        %v2471 = vmax.f32 %v2467, 0.0
        %v2472 = vmax.f32 %v2468, 0.0
        %v2473 = vmax.f32 %v2469, 0.0
        %v2474 = vmax.f32 %v2470, %v2471
        %2475 = vmax.xlane.f32.xlu0 %v2474
        %v2476 = vpop.xlane.xlu0 %2475
        %v2477 = vmax.f32 %v2472, %v2473
        %2478 = vmax.xlane.f32.xlu0 %v2477
        %v2479 = vpop.xlane.xlu0 %2478
        %v2480 = vadd.f32 %v2470, %v2471
        %2481 = vadd.xlane.f32.xlu0 %v2480
        %v2482 = vpop.xlane.xlu0 %2481
        %v2483 = vadd.f32 %v2472, %v2473
        %2484 = vadd.xlane.f32.xlu0 %v2483
        %v2485 = vpop.xlane.xlu0 %2484
        %v2486 = vmul.f32 %v2482, %v2443
        %v2487 = vmul.f32 %v2485, %v2443
        %v2488 = vld [vmem:[%s5] sm:$0x1]
        %v2489 = vld [vmem:[%s6] sm:$0xff]
        %v2490 = vld [vmem:[%s6 + $0x8] sm:$0xff]
        %vm2491 = vcmask 130048
        %v2493 = vsel %vm2491, %v2488, 0
        %2495 = vmatprep.subr.mxu0 0.0
        %2496 = vmatpush1.msra.mxu0 0.0
        %2497 = vmatprep.subr.mxu0 0.0
        %2498 = vmatpush1.msra.mxu0 0.0
        %2499 = vmatprep.subr.mxu0 0.0
        %2500 = vmatpush1.msra.mxu0 0.0
        %2501 = vmatprep.subr.mxu0 0.0
        %2502 = vmatpush1.msra.mxu0 0.0
        %2503 = vmatprep.subr.mxu0 0.0
        %2504 = vmatpush1.msra.mxu0 0.0
        %2505 = vmatprep.subr.mxu0 0.0
        %2506 = vmatpush1.msra.mxu0 0.0
        %2507 = vmatprep.subr.mxu0 0.0
        %2508 = vmatpush1.msra.mxu0 0.0
        %2509 = vmatprep.subr.mxu0 0.0
        %2510 = vmatpush1.msra.mxu0 0.0
        %2511 = vmatprep.subr.mxu0 0.0
        %2512 = vmatpush1.msra.mxu0 0.0
        %2513 = vmatprep.subr.mxu0 0.0
        %2514 = vmatpush1.msra.mxu0 0.0
        %2515 = vmatprep.subr.mxu0 0.0
        %2516 = vmatpush1.msra.mxu0 0.0
        %2517 = vmatprep.subr.mxu0 0.0
        %2518 = vmatpush1.msra.mxu0 0.0
        %2519 = vmatprep.subr.mxu0 0.0
        %2520 = vmatpush1.msra.mxu0 0.0
        %2521 = vmatprep.subr.mxu0 0.0
        %2522 = vmatpush1.msra.mxu0 0.0
        %2523 = vmatprep.subr.mxu0 0.0
        %2524 = vmatpush1.msra.mxu0 %v2479
        %2525 = vmatprep.subr.mxu0 0.0
        %2526 = vmatpush1.msra.mxu0 %v2476
        %2527 = vmatprep.subr.mxu0 0.0
        %2528 = vmatpush2.msra.mxu0 0.0
        %2529 = vmatprep.subr.mxu0 0.0
        %2530 = vmatpush2.msra.mxu0 0.0
        %2531 = vmatprep.subr.mxu0 0.0
        %2532 = vmatpush2.msra.mxu0 0.0
        %2533 = vmatprep.subr.mxu0 0.0
        %2534 = vmatpush2.msra.mxu0 0.0
        %2535 = vmatprep.subr.mxu0 0.0
        %2536 = vmatpush2.msra.mxu0 0.0
        %2537 = vmatprep.subr.mxu0 0.0
        %2538 = vmatpush2.msra.mxu0 0.0
        %2539 = vmatprep.subr.mxu0 0.0
        %2540 = vmatpush2.msra.mxu0 0.0
        %2541 = vmatprep.subr.mxu0 0.0
        %2542 = vmatpush2.msra.mxu0 0.0
        %2543 = vmatprep.subr.mxu0 0.0
        %2544 = vmatpush2.msra.mxu0 0.0
        %2545 = vmatprep.subr.mxu0 0.0
        %2546 = vmatpush2.msra.mxu0 0.0
        %2547 = vmatprep.subr.mxu0 0.0
        %2548 = vmatpush2.msra.mxu0 0.0
        %2549 = vmatprep.subr.mxu0 0.0
        %2550 = vmatpush2.msra.mxu0 0.0
        %2551 = vmatprep.subr.mxu0 0.0
        %2552 = vmatpush2.msra.mxu0 0.0
        %2553 = vmatprep.subr.mxu0 0.0
        %2554 = vmatpush2.msra.mxu0 0.0
        %2555 = vmatprep.subr.mxu0 0.0
        %2556 = vmatpush2.msra.mxu0 0.0
        %2557 = vmatprep.subr.mxu0 0.0
        %2558 = vmatpush2.msra.mxu0 0.0
        %2559 = vmatprep.mubr.f32.mxu0 0.0
        %2560 = vmatmul.mubr.f32.gmra.mxu0 %v2493
        %v2561 = vpop.f32.mrf.mxu0
        %v2562 = vadd.f32 0.0, %v2561
        %v2563 = vpop.f32.mrf.mxu0
        %2564 = vdwg.mxu0
        %v2565 = vmax.f32 %v2562, 0.0
        %2566 = vmatprep.subr.mxu0 0.0
        %2567 = vmatpush1.msra.mxu0 0.0
        %2568 = vmatprep.subr.mxu0 0.0
        %2569 = vmatpush1.msra.mxu0 0.0
        %2570 = vmatprep.subr.mxu0 0.0
        %2571 = vmatpush1.msra.mxu0 0.0
        %2572 = vmatprep.subr.mxu0 0.0
        %2573 = vmatpush1.msra.mxu0 0.0
        %2574 = vmatprep.subr.mxu0 0.0
        %2575 = vmatpush1.msra.mxu0 0.0
        %2576 = vmatprep.subr.mxu0 0.0
        %2577 = vmatpush1.msra.mxu0 0.0
        %2578 = vmatprep.subr.mxu0 0.0
        %2579 = vmatpush1.msra.mxu0 0.0
        %2580 = vmatprep.subr.mxu0 0.0
        %2581 = vmatpush1.msra.mxu0 0.0
        %2582 = vmatprep.subr.mxu0 0.0
        %2583 = vmatpush1.msra.mxu0 0.0
        %2584 = vmatprep.subr.mxu0 0.0
        %2585 = vmatpush1.msra.mxu0 0.0
        %2586 = vmatprep.subr.mxu0 0.0
        %2587 = vmatpush1.msra.mxu0 0.0
        %2588 = vmatprep.subr.mxu0 0.0
        %2589 = vmatpush1.msra.mxu0 0.0
        %2590 = vmatprep.subr.mxu0 0.0
        %2591 = vmatpush1.msra.mxu0 0.0
        %2592 = vmatprep.subr.mxu0 0.0
        %2593 = vmatpush1.msra.mxu0 0.0
        %2594 = vmatprep.subr.mxu0 0.0
        %2595 = vmatpush1.msra.mxu0 %v2487
        %2596 = vmatprep.subr.mxu0 0.0
        %2597 = vmatpush1.msra.mxu0 %v2486
        %2598 = vmatprep.subr.mxu0 0.0
        %2599 = vmatpush2.msra.mxu0 0.0
        %2600 = vmatprep.subr.mxu0 0.0
        %2601 = vmatpush2.msra.mxu0 0.0
        %2602 = vmatprep.subr.mxu0 0.0
        %2603 = vmatpush2.msra.mxu0 0.0
        %2604 = vmatprep.subr.mxu0 0.0
        %2605 = vmatpush2.msra.mxu0 0.0
        %2606 = vmatprep.subr.mxu0 0.0
        %2607 = vmatpush2.msra.mxu0 0.0
        %2608 = vmatprep.subr.mxu0 0.0
        %2609 = vmatpush2.msra.mxu0 0.0
        %2610 = vmatprep.subr.mxu0 0.0
        %2611 = vmatpush2.msra.mxu0 0.0
        %2612 = vmatprep.subr.mxu0 0.0
        %2613 = vmatpush2.msra.mxu0 0.0
        %2614 = vmatprep.subr.mxu0 0.0
        %2615 = vmatpush2.msra.mxu0 0.0
        %2616 = vmatprep.subr.mxu0 0.0
        %2617 = vmatpush2.msra.mxu0 0.0
        %2618 = vmatprep.subr.mxu0 0.0
        %2619 = vmatpush2.msra.mxu0 0.0
        %2620 = vmatprep.subr.mxu0 0.0
        %2621 = vmatpush2.msra.mxu0 0.0
        %2622 = vmatprep.subr.mxu0 0.0
        %2623 = vmatpush2.msra.mxu0 0.0
        %2624 = vmatprep.subr.mxu0 0.0
        %2625 = vmatpush2.msra.mxu0 0.0
        %2626 = vmatprep.subr.mxu0 0.0
        %2627 = vmatpush2.msra.mxu0 0.0
        %2628 = vmatprep.subr.mxu0 0.0
        %2629 = vmatpush2.msra.mxu0 0.0
        %2630 = vmatprep.mubr.f32.mxu0 0.0
        %2631 = vmatmul.mubr.f32.gmra.mxu0 %v2493
        %v2632 = vpop.f32.mrf.mxu0
        %v2633 = vadd.f32 0.0, %v2632
        %v2634 = vpop.f32.mrf.mxu0
        %2635 = vdwg.mxu0
        %v2636 = vmax.f32 %v2633, 0.0
        %vm2637 = vcmask 7168
        %v2639 = vsel %vm2637, %v2489, 0
        %v2642 = vsel %vm2637, %v2490, 0
        %vm2644 = vcmask 1040384
        %v2646 = vsel %vm2644, %v2636, 0
        %2648 = vmatprep.subr.mxu0 0.0
        %2649 = vmatpush1.msra.mxu0 0.0
        %2650 = vmatprep.subr.mxu0 0.0
        %2651 = vmatpush1.msra.mxu0 0.0
        %2652 = vmatprep.subr.mxu0 0.0
        %2653 = vmatpush1.msra.mxu0 0.0
        %2654 = vmatprep.subr.mxu0 0.0
        %2655 = vmatpush1.msra.mxu0 0.0
        %2656 = vmatprep.subr.mxu0 0.0
        %2657 = vmatpush1.msra.mxu0 0.0
        %2658 = vmatprep.subr.mxu0 0.0
        %2659 = vmatpush1.msra.mxu0 0.0
        %2660 = vmatprep.subr.mxu0 0.0
        %2661 = vmatpush1.msra.mxu0 0.0
        %2662 = vmatprep.subr.mxu0 0.0
        %2663 = vmatpush1.msra.mxu0 0.0
        %2664 = vmatprep.subr.mxu0 0.0
        %2665 = vmatpush1.msra.mxu0 0.0
        %2666 = vmatprep.subr.mxu0 0.0
        %2667 = vmatpush1.msra.mxu0 0.0
        %2668 = vmatprep.subr.mxu0 0.0
        %2669 = vmatpush1.msra.mxu0 0.0
        %2670 = vmatprep.subr.mxu0 0.0
        %2671 = vmatpush1.msra.mxu0 0.0
        %2672 = vmatprep.subr.mxu0 0.0
        %2673 = vmatpush1.msra.mxu0 0.0
        %2674 = vmatprep.subr.mxu0 0.0
        %2675 = vmatpush1.msra.mxu0 0.0
        %2676 = vmatprep.subr.mxu0 0.0
        %2677 = vmatpush1.msra.mxu0 0.0
        %2678 = vmatprep.subr.mxu0 0.0
        %2679 = vmatpush1.msra.mxu0 %v2646
        %2680 = vmatprep.subr.mxu0 0.0
        %2681 = vmatpush2.msra.mxu0 0.0
        %2682 = vmatprep.subr.mxu0 0.0
        %2683 = vmatpush2.msra.mxu0 0.0
        %2684 = vmatprep.subr.mxu0 0.0
        %2685 = vmatpush2.msra.mxu0 0.0
        %2686 = vmatprep.subr.mxu0 0.0
        %2687 = vmatpush2.msra.mxu0 0.0
        %2688 = vmatprep.subr.mxu0 0.0
        %2689 = vmatpush2.msra.mxu0 0.0
        %2690 = vmatprep.subr.mxu0 0.0
        %2691 = vmatpush2.msra.mxu0 0.0
        %2692 = vmatprep.subr.mxu0 0.0
        %2693 = vmatpush2.msra.mxu0 0.0
        %2694 = vmatprep.subr.mxu0 0.0
        %2695 = vmatpush2.msra.mxu0 0.0
        %2696 = vmatprep.subr.mxu0 0.0
        %2697 = vmatpush2.msra.mxu0 0.0
        %2698 = vmatprep.subr.mxu0 0.0
        %2699 = vmatpush2.msra.mxu0 0.0
        %2700 = vmatprep.subr.mxu0 0.0
        %2701 = vmatpush2.msra.mxu0 0.0
        %2702 = vmatprep.subr.mxu0 0.0
        %2703 = vmatpush2.msra.mxu0 0.0
        %2704 = vmatprep.subr.mxu0 0.0
        %2705 = vmatpush2.msra.mxu0 0.0
        %2706 = vmatprep.subr.mxu0 0.0
        %2707 = vmatpush2.msra.mxu0 0.0
        %2708 = vmatprep.subr.mxu0 0.0
        %2709 = vmatpush2.msra.mxu0 0.0
        %2710 = vmatprep.subr.mxu0 0.0
        %2711 = vmatpush2.msra.mxu0 0.0
        %2712 = vmatprep.mubr.f32.mxu0 0.0
        %2713 = vmatmul.mubr.f32.gmra.mxu0 %v2639
        %v2714 = vpop.f32.mrf.mxu0
        %v2715 = vadd.f32 0.0, %v2714
        %v2716 = vpop.f32.mrf.mxu0
        %2717 = vmatprep.mubr.f32.mxu0 0.0
        %2718 = vmatmul.mubr.f32.gmra.mxu0 %v2642
        %v2719 = vpop.f32.mrf.mxu0
        %v2720 = vadd.f32 0.0, %v2719
        %v2721 = vpop.f32.mrf.mxu0
        %2722 = vdwg.mxu0
        %v2724 = vsel %vm2644, %v2565, 0
        %2726 = vmatprep.subr.mxu0 0.0
        %2727 = vmatpush1.msra.mxu0 0.0
        %2728 = vmatprep.subr.mxu0 0.0
        %2729 = vmatpush1.msra.mxu0 0.0
        %2730 = vmatprep.subr.mxu0 0.0
        %2731 = vmatpush1.msra.mxu0 0.0
        %2732 = vmatprep.subr.mxu0 0.0
        %2733 = vmatpush1.msra.mxu0 0.0
        %2734 = vmatprep.subr.mxu0 0.0
        %2735 = vmatpush1.msra.mxu0 0.0
        %2736 = vmatprep.subr.mxu0 0.0
        %2737 = vmatpush1.msra.mxu0 0.0
        %2738 = vmatprep.subr.mxu0 0.0
        %2739 = vmatpush1.msra.mxu0 0.0
        %2740 = vmatprep.subr.mxu0 0.0
        %2741 = vmatpush1.msra.mxu0 0.0
        %2742 = vmatprep.subr.mxu0 0.0
        %2743 = vmatpush1.msra.mxu0 0.0
        %2744 = vmatprep.subr.mxu0 0.0
        %2745 = vmatpush1.msra.mxu0 0.0
        %2746 = vmatprep.subr.mxu0 0.0
        %2747 = vmatpush1.msra.mxu0 0.0
        %2748 = vmatprep.subr.mxu0 0.0
        %2749 = vmatpush1.msra.mxu0 0.0
        %2750 = vmatprep.subr.mxu0 0.0
        %2751 = vmatpush1.msra.mxu0 0.0
        %2752 = vmatprep.subr.mxu0 0.0
        %2753 = vmatpush1.msra.mxu0 0.0
        %2754 = vmatprep.subr.mxu0 0.0
        %2755 = vmatpush1.msra.mxu0 0.0
        %2756 = vmatprep.subr.mxu0 0.0
        %2757 = vmatpush1.msra.mxu0 %v2724
        %2758 = vmatprep.subr.mxu0 0.0
        %2759 = vmatpush2.msra.mxu0 0.0
        %2760 = vmatprep.subr.mxu0 0.0
        %2761 = vmatpush2.msra.mxu0 0.0
        %2762 = vmatprep.subr.mxu0 0.0
        %2763 = vmatpush2.msra.mxu0 0.0
        %2764 = vmatprep.subr.mxu0 0.0
        %2765 = vmatpush2.msra.mxu0 0.0
        %2766 = vmatprep.subr.mxu0 0.0
        %2767 = vmatpush2.msra.mxu0 0.0
        %2768 = vmatprep.subr.mxu0 0.0
        %2769 = vmatpush2.msra.mxu0 0.0
        %2770 = vmatprep.subr.mxu0 0.0
        %2771 = vmatpush2.msra.mxu0 0.0
        %2772 = vmatprep.subr.mxu0 0.0
        %2773 = vmatpush2.msra.mxu0 0.0
        %2774 = vmatprep.subr.mxu0 0.0
        %2775 = vmatpush2.msra.mxu0 0.0
        %2776 = vmatprep.subr.mxu0 0.0
        %2777 = vmatpush2.msra.mxu0 0.0
        %2778 = vmatprep.subr.mxu0 0.0
        %2779 = vmatpush2.msra.mxu0 0.0
        %2780 = vmatprep.subr.mxu0 0.0
        %2781 = vmatpush2.msra.mxu0 0.0
        %2782 = vmatprep.subr.mxu0 0.0
        %2783 = vmatpush2.msra.mxu0 0.0
        %2784 = vmatprep.subr.mxu0 0.0
        %2785 = vmatpush2.msra.mxu0 0.0
        %2786 = vmatprep.subr.mxu0 0.0
        %2787 = vmatpush2.msra.mxu0 0.0
        %2788 = vmatprep.subr.mxu0 0.0
        %2789 = vmatpush2.msra.mxu0 0.0
        %2790 = vmatprep.mubr.f32.mxu0 0.0
        %2791 = vmatmul.mubr.f32.gmra.mxu0 %v2639
        %v2792 = vpop.f32.mrf.mxu0
        %v2793 = vadd.f32 %v2715, %v2792
        %v2794 = vpop.f32.mrf.mxu0
        %2795 = vmatprep.mubr.f32.mxu0 0.0
        %2796 = vmatmul.mubr.f32.gmra.mxu0 %v2642
        %v2797 = vpop.f32.mrf.mxu0
        %v2798 = vadd.f32 %v2720, %v2797
        %v2799 = vpop.f32.mrf.mxu0
        %2800 = vdwg.mxu0
        %v2801 = vxor.u32 %v2793, 2147483648
        %v2802 = vxor.u32 %v2798, 2147483648
        %v2803 = vmul.f32 %v2801, 1.442695
        %v2804 = vpow.pop %v2803
        %v2805 = vmul.f32 %v2802, 1.442695
        %v2806 = vpow.pop %v2805
        %v2807 = vadd.f32 %v2804, 1.0
        %v2808 = vadd.f32 %v2806, 1.0
        %v2809 = vrcp.pop %v2807
        %v2810 = vmul.f32 1.0, %v2809
        %v2811 = vrcp.pop %v2808
        %v2812 = vmul.f32 1.0, %v2811
        %2814 = vset.pattern.permute.xlu0 0
        %2815 = vperm.xlu0 %2814, %v2810
        %v2816 = vpop.permute.xlu0 %2815
        %2819 = vset.pattern.permute.xlu0 0
        %2820 = vperm.xlu0 %2819, %v2812
        %v2821 = vpop.permute.xlu0 %2820
        %v2823 = vmul.f32 %v2470, %v2816
        %v2824 = vmul.f32 %v2471, %v2816
        %v2825 = vmul.f32 %v2472, %v2821
        %v2826 = vmul.f32 %v2473, %v2821
        %v2827 = vmax.f32 %v2823, %v2825
        %v2828 = vrot.slane %v2827, 4
        %v2829 = vmax.f32 %v2827, %v2828
        %v2830 = vrot.slane %v2829, 2
        %v2831 = vmax.f32 %v2829, %v2830
        %v2832 = vrot.slane %v2831, 1
        %v2833 = vmax.f32 %v2831, %v2832
        %v2834 = vmax.f32 %v2824, %v2826
        %v2835 = vrot.slane %v2834, 4
        %v2836 = vmax.f32 %v2834, %v2835
        %v2837 = vrot.slane %v2836, 2
        %v2838 = vmax.f32 %v2836, %v2837
        %v2839 = vrot.slane %v2838, 1
        %v2840 = vmax.f32 %v2838, %v2839
        %v2841 = vadd.f32 %v2823, %v2825
        %v2842 = vrot.slane %v2841, 4
        %v2843 = vadd.f32 %v2841, %v2842
        %v2844 = vrot.slane %v2843, 2
        %v2845 = vadd.f32 %v2843, %v2844
        %v2846 = vrot.slane %v2845, 1
        %v2847 = vadd.f32 %v2845, %v2846
        %v2848 = vadd.f32 %v2824, %v2826
        %v2849 = vrot.slane %v2848, 4
        %v2850 = vadd.f32 %v2848, %v2849
        %v2851 = vrot.slane %v2850, 2
        %v2852 = vadd.f32 %v2850, %v2851
        %v2853 = vrot.slane %v2852, 1
        %v2854 = vadd.f32 %v2852, %v2853
        %v2855 = vrcp.pop 16.0
        %v2856 = vmul.f32 %v2847, %v2855
        %v2857 = vmul.f32 %v2854, %v2855
        %v2858 = vsel %vm2644, %v2833, %v2856
        %v2859 = vsel %vm2644, %v2840, %v2857
        %2860 = vrot.lane.b32.xlu0 %v2858, 17
        %v2861 = vpop.permute.xlu0 %2860
        %2862 = vrot.lane.b32.xlu0 %v2859, 17
        %v2863 = vpop.permute.xlu0 %2862
        %v2864 = vsel %vm594, %v2861, %v2863
        %v2865 = vsel %vm594, %v2863, %v2861
        %v2866 = vsel %vm605, %v2865, 0.0
        %v2867 = vsel %vm606, %v2864, 0.0
        %v2868 = vld [vmem:[%s7] sm:$0x1]
        %2869 = vrot.lane.b32.xlu0 %v2858, 16
        %v2870 = vpop.permute.xlu0 %2869
        %2871 = vrot.lane.b32.xlu0 %v2859, 16
        %v2872 = vpop.permute.xlu0 %2871
        %v2873 = vsel %vm639, %v2870, %v2872
        %v2874 = vsel %vm639, %v2872, %v2870
        %v2875 = vsel %vm650, %v2874, 0.0
        %v2876 = vsel %vm651, %v2873, 0.0
        %s2877 = scalar_lea.vmem %s7, 1
        %v2878 = vld [vmem:[%s2877] sm:$0x1]
        %vm2879 = vcmask 15360
        %v2881 = vsel %vm2879, %v2878, 0
        %vm2883 = vcmask 1041408
        %v2885 = vsel %vm2883, %v2875, 0
        %v2888 = vsel %vm2883, %v2876, 0
        %2890 = vmatprep.subr.mxu0 0.0
        %2891 = vmatpush1.msra.mxu0 0.0
        %2892 = vmatprep.subr.mxu0 0.0
        %2893 = vmatpush1.msra.mxu0 0.0
        %2894 = vmatprep.subr.mxu0 0.0
        %2895 = vmatpush1.msra.mxu0 0.0
        %2896 = vmatprep.subr.mxu0 0.0
        %2897 = vmatpush1.msra.mxu0 0.0
        %2898 = vmatprep.subr.mxu0 0.0
        %2899 = vmatpush1.msra.mxu0 0.0
        %2900 = vmatprep.subr.mxu0 0.0
        %2901 = vmatpush1.msra.mxu0 0.0
        %2902 = vmatprep.subr.mxu0 0.0
        %2903 = vmatpush1.msra.mxu0 0.0
        %2904 = vmatprep.subr.mxu0 0.0
        %2905 = vmatpush1.msra.mxu0 0.0
        %2906 = vmatprep.subr.mxu0 0.0
        %2907 = vmatpush1.msra.mxu0 0.0
        %2908 = vmatprep.subr.mxu0 0.0
        %2909 = vmatpush1.msra.mxu0 0.0
        %2910 = vmatprep.subr.mxu0 0.0
        %2911 = vmatpush1.msra.mxu0 0.0
        %2912 = vmatprep.subr.mxu0 0.0
        %2913 = vmatpush1.msra.mxu0 0.0
        %2914 = vmatprep.subr.mxu0 0.0
        %2915 = vmatpush1.msra.mxu0 0.0
        %2916 = vmatprep.subr.mxu0 0.0
        %2917 = vmatpush1.msra.mxu0 0.0
        %2918 = vmatprep.subr.mxu0 0.0
        %2919 = vmatpush1.msra.mxu0 0.0
        %2920 = vmatprep.subr.mxu0 %v2888
        %2921 = vmatpush1.msra.mxu0 %v2885
        %2922 = vmatprep.subr.mxu0 0.0
        %2923 = vmatpush2.msra.mxu0 0.0
        %2924 = vmatprep.subr.mxu0 0.0
        %2925 = vmatpush2.msra.mxu0 0.0
        %2926 = vmatprep.subr.mxu0 0.0
        %2927 = vmatpush2.msra.mxu0 0.0
        %2928 = vmatprep.subr.mxu0 0.0
        %2929 = vmatpush2.msra.mxu0 0.0
        %2930 = vmatprep.subr.mxu0 0.0
        %2931 = vmatpush2.msra.mxu0 0.0
        %2932 = vmatprep.subr.mxu0 0.0
        %2933 = vmatpush2.msra.mxu0 0.0
        %2934 = vmatprep.subr.mxu0 0.0
        %2935 = vmatpush2.msra.mxu0 0.0
        %2936 = vmatprep.subr.mxu0 0.0
        %2937 = vmatpush2.msra.mxu0 0.0
        %2938 = vmatprep.subr.mxu0 0.0
        %2939 = vmatpush2.msra.mxu0 0.0
        %2940 = vmatprep.subr.mxu0 0.0
        %2941 = vmatpush2.msra.mxu0 0.0
        %2942 = vmatprep.subr.mxu0 0.0
        %2943 = vmatpush2.msra.mxu0 0.0
        %2944 = vmatprep.subr.mxu0 0.0
        %2945 = vmatpush2.msra.mxu0 0.0
        %2946 = vmatprep.subr.mxu0 0.0
        %2947 = vmatpush2.msra.mxu0 0.0
        %2948 = vmatprep.subr.mxu0 0.0
        %2949 = vmatpush2.msra.mxu0 0.0
        %2950 = vmatprep.subr.mxu0 0.0
        %2951 = vmatpush2.msra.mxu0 0.0
        %2952 = vmatprep.subr.mxu0 0.0
        %2953 = vmatpush2.msra.mxu0 0.0
        %2954 = vmatprep.mubr.f32.mxu0 0.0
        %2955 = vmatmul.mubr.f32.gmra.mxu0 %v2881
        %v2956 = vpop.f32.mrf.mxu0
        %v2957 = vadd.f32 0.0, %v2956
        %v2958 = vpop.f32.mrf.mxu0
        %v2959 = vadd.f32 0.0, %v2958
        %2960 = vdwg.mxu0
        %v2962 = vsel %vm2879, %v2868, 0
        %v2965 = vsel %vm2883, %v2866, 0
        %v2968 = vsel %vm2883, %v2867, 0
        %2970 = vmatprep.subr.mxu0 0.0
        %2971 = vmatpush1.msra.mxu0 0.0
        %2972 = vmatprep.subr.mxu0 0.0
        %2973 = vmatpush1.msra.mxu0 0.0
        %2974 = vmatprep.subr.mxu0 0.0
        %2975 = vmatpush1.msra.mxu0 0.0
        %2976 = vmatprep.subr.mxu0 0.0
        %2977 = vmatpush1.msra.mxu0 0.0
        %2978 = vmatprep.subr.mxu0 0.0
        %2979 = vmatpush1.msra.mxu0 0.0
        %2980 = vmatprep.subr.mxu0 0.0
        %2981 = vmatpush1.msra.mxu0 0.0
        %2982 = vmatprep.subr.mxu0 0.0
        %2983 = vmatpush1.msra.mxu0 0.0
        %2984 = vmatprep.subr.mxu0 0.0
        %2985 = vmatpush1.msra.mxu0 0.0
        %2986 = vmatprep.subr.mxu0 0.0
        %2987 = vmatpush1.msra.mxu0 0.0
        %2988 = vmatprep.subr.mxu0 0.0
        %2989 = vmatpush1.msra.mxu0 0.0
        %2990 = vmatprep.subr.mxu0 0.0
        %2991 = vmatpush1.msra.mxu0 0.0
        %2992 = vmatprep.subr.mxu0 0.0
        %2993 = vmatpush1.msra.mxu0 0.0
        %2994 = vmatprep.subr.mxu0 0.0
        %2995 = vmatpush1.msra.mxu0 0.0
        %2996 = vmatprep.subr.mxu0 0.0
        %2997 = vmatpush1.msra.mxu0 0.0
        %2998 = vmatprep.subr.mxu0 0.0
        %2999 = vmatpush1.msra.mxu0 0.0
        %3000 = vmatprep.subr.mxu0 %v2968
        %3001 = vmatpush1.msra.mxu0 %v2965
        %3002 = vmatprep.subr.mxu0 0.0
        %3003 = vmatpush2.msra.mxu0 0.0
        %3004 = vmatprep.subr.mxu0 0.0
        %3005 = vmatpush2.msra.mxu0 0.0
        %3006 = vmatprep.subr.mxu0 0.0
        %3007 = vmatpush2.msra.mxu0 0.0
        %3008 = vmatprep.subr.mxu0 0.0
        %3009 = vmatpush2.msra.mxu0 0.0
        %3010 = vmatprep.subr.mxu0 0.0
        %3011 = vmatpush2.msra.mxu0 0.0
        %3012 = vmatprep.subr.mxu0 0.0
        %3013 = vmatpush2.msra.mxu0 0.0
        %3014 = vmatprep.subr.mxu0 0.0
        %3015 = vmatpush2.msra.mxu0 0.0
        %3016 = vmatprep.subr.mxu0 0.0
        %3017 = vmatpush2.msra.mxu0 0.0
        %3018 = vmatprep.subr.mxu0 0.0
        %3019 = vmatpush2.msra.mxu0 0.0
        %3020 = vmatprep.subr.mxu0 0.0
        %3021 = vmatpush2.msra.mxu0 0.0
        %3022 = vmatprep.subr.mxu0 0.0
        %3023 = vmatpush2.msra.mxu0 0.0
        %3024 = vmatprep.subr.mxu0 0.0
        %3025 = vmatpush2.msra.mxu0 0.0
        %3026 = vmatprep.subr.mxu0 0.0
        %3027 = vmatpush2.msra.mxu0 0.0
        %3028 = vmatprep.subr.mxu0 0.0
        %3029 = vmatpush2.msra.mxu0 0.0
        %3030 = vmatprep.subr.mxu0 0.0
        %3031 = vmatpush2.msra.mxu0 0.0
        %3032 = vmatprep.subr.mxu0 0.0
        %3033 = vmatpush2.msra.mxu0 0.0
        %3034 = vmatprep.mubr.f32.mxu0 0.0
        %3035 = vmatmul.mubr.f32.gmra.mxu0 %v2962
        %v3036 = vpop.f32.mrf.mxu0
        %v3037 = vadd.f32 %v2957, %v3036
        %v3038 = vpop.f32.mrf.mxu0
        %v3039 = vadd.f32 %v2959, %v3038
        %3040 = vdwg.mxu0
        %3041 = vrot.lane.b32.xlu0 %v2858, 15
        %v3042 = vpop.permute.xlu0 %3041
        %3043 = vrot.lane.b32.xlu0 %v2859, 15
        %v3044 = vpop.permute.xlu0 %3043
        %v3045 = vsel %vm824, %v3042, %v3044
        %v3046 = vsel %vm824, %v3044, %v3042
        %v3047 = vsel %vm835, %v3046, 0.0
        %v3048 = vsel %vm836, %v3045, 0.0
        %s3049 = scalar_lea.vmem %s7, 2
        %v3050 = vld [vmem:[%s3049] sm:$0x1]
        %v3052 = vsel %vm2879, %v3050, 0
        %v3055 = vsel %vm2883, %v3047, 0
        %v3058 = vsel %vm2883, %v3048, 0
        %3060 = vmatprep.subr.mxu0 0.0
        %3061 = vmatpush1.msra.mxu0 0.0
        %3062 = vmatprep.subr.mxu0 0.0
        %3063 = vmatpush1.msra.mxu0 0.0
        %3064 = vmatprep.subr.mxu0 0.0
        %3065 = vmatpush1.msra.mxu0 0.0
        %3066 = vmatprep.subr.mxu0 0.0
        %3067 = vmatpush1.msra.mxu0 0.0
        %3068 = vmatprep.subr.mxu0 0.0
        %3069 = vmatpush1.msra.mxu0 0.0
        %3070 = vmatprep.subr.mxu0 0.0
        %3071 = vmatpush1.msra.mxu0 0.0
        %3072 = vmatprep.subr.mxu0 0.0
        %3073 = vmatpush1.msra.mxu0 0.0
        %3074 = vmatprep.subr.mxu0 0.0
        %3075 = vmatpush1.msra.mxu0 0.0
        %3076 = vmatprep.subr.mxu0 0.0
        %3077 = vmatpush1.msra.mxu0 0.0
        %3078 = vmatprep.subr.mxu0 0.0
        %3079 = vmatpush1.msra.mxu0 0.0
        %3080 = vmatprep.subr.mxu0 0.0
        %3081 = vmatpush1.msra.mxu0 0.0
        %3082 = vmatprep.subr.mxu0 0.0
        %3083 = vmatpush1.msra.mxu0 0.0
        %3084 = vmatprep.subr.mxu0 0.0
        %3085 = vmatpush1.msra.mxu0 0.0
        %3086 = vmatprep.subr.mxu0 0.0
        %3087 = vmatpush1.msra.mxu0 0.0
        %3088 = vmatprep.subr.mxu0 0.0
        %3089 = vmatpush1.msra.mxu0 0.0
        %3090 = vmatprep.subr.mxu0 %v3058
        %3091 = vmatpush1.msra.mxu0 %v3055
        %3092 = vmatprep.subr.mxu0 0.0
        %3093 = vmatpush2.msra.mxu0 0.0
        %3094 = vmatprep.subr.mxu0 0.0
        %3095 = vmatpush2.msra.mxu0 0.0
        %3096 = vmatprep.subr.mxu0 0.0
        %3097 = vmatpush2.msra.mxu0 0.0
        %3098 = vmatprep.subr.mxu0 0.0
        %3099 = vmatpush2.msra.mxu0 0.0
        %3100 = vmatprep.subr.mxu0 0.0
        %3101 = vmatpush2.msra.mxu0 0.0
        %3102 = vmatprep.subr.mxu0 0.0
        %3103 = vmatpush2.msra.mxu0 0.0
        %3104 = vmatprep.subr.mxu0 0.0
        %3105 = vmatpush2.msra.mxu0 0.0
        %3106 = vmatprep.subr.mxu0 0.0
        %3107 = vmatpush2.msra.mxu0 0.0
        %3108 = vmatprep.subr.mxu0 0.0
        %3109 = vmatpush2.msra.mxu0 0.0
        %3110 = vmatprep.subr.mxu0 0.0
        %3111 = vmatpush2.msra.mxu0 0.0
        %3112 = vmatprep.subr.mxu0 0.0
        %3113 = vmatpush2.msra.mxu0 0.0
        %3114 = vmatprep.subr.mxu0 0.0
        %3115 = vmatpush2.msra.mxu0 0.0
        %3116 = vmatprep.subr.mxu0 0.0
        %3117 = vmatpush2.msra.mxu0 0.0
        %3118 = vmatprep.subr.mxu0 0.0
        %3119 = vmatpush2.msra.mxu0 0.0
        %3120 = vmatprep.subr.mxu0 0.0
        %3121 = vmatpush2.msra.mxu0 0.0
        %3122 = vmatprep.subr.mxu0 0.0
        %3123 = vmatpush2.msra.mxu0 0.0
        %3124 = vmatprep.mubr.f32.mxu0 0.0
        %3125 = vmatmul.mubr.f32.gmra.mxu0 %v3052
        %v3126 = vpop.f32.mrf.mxu0
        %v3127 = vadd.f32 0.0, %v3126
        %v3128 = vpop.f32.mrf.mxu0
        %v3129 = vadd.f32 0.0, %v3128
        %3130 = vdwg.mxu0
        %v3131 = vadd.f32 %v3037, %v3127
        %v3132 = vadd.f32 %v3039, %v3129
        %3133 = vrot.lane.b32.xlu0 %v2858, 1
        %v3134 = vpop.permute.xlu0 %3133
        %3135 = vrot.lane.b32.xlu0 %v2859, 1
        %v3136 = vpop.permute.xlu0 %3135
        %v3137 = vsel %vm947, %v3134, %v3136
        %v3138 = vsel %vm947, %v3136, %v3134
        %v3139 = vsel %vm958, %v3138, 0.0
        %v3140 = vsel %vm959, %v3137, 0.0
        %s3141 = scalar_lea.vmem %s7, 3
        %v3142 = vld [vmem:[%s3141] sm:$0x1]
        %v3144 = vsel %vm2879, %v3142, 0
        %v3147 = vsel %vm2883, %v3139, 0
        %v3150 = vsel %vm2883, %v3140, 0
        %3152 = vmatprep.subr.mxu0 0.0
        %3153 = vmatpush1.msra.mxu0 0.0
        %3154 = vmatprep.subr.mxu0 0.0
        %3155 = vmatpush1.msra.mxu0 0.0
        %3156 = vmatprep.subr.mxu0 0.0
        %3157 = vmatpush1.msra.mxu0 0.0
        %3158 = vmatprep.subr.mxu0 0.0
        %3159 = vmatpush1.msra.mxu0 0.0
        %3160 = vmatprep.subr.mxu0 0.0
        %3161 = vmatpush1.msra.mxu0 0.0
        %3162 = vmatprep.subr.mxu0 0.0
        %3163 = vmatpush1.msra.mxu0 0.0
        %3164 = vmatprep.subr.mxu0 0.0
        %3165 = vmatpush1.msra.mxu0 0.0
        %3166 = vmatprep.subr.mxu0 0.0
        %3167 = vmatpush1.msra.mxu0 0.0
        %3168 = vmatprep.subr.mxu0 0.0
        %3169 = vmatpush1.msra.mxu0 0.0
        %3170 = vmatprep.subr.mxu0 0.0
        %3171 = vmatpush1.msra.mxu0 0.0
        %3172 = vmatprep.subr.mxu0 0.0
        %3173 = vmatpush1.msra.mxu0 0.0
        %3174 = vmatprep.subr.mxu0 0.0
        %3175 = vmatpush1.msra.mxu0 0.0
        %3176 = vmatprep.subr.mxu0 0.0
        %3177 = vmatpush1.msra.mxu0 0.0
        %3178 = vmatprep.subr.mxu0 0.0
        %3179 = vmatpush1.msra.mxu0 0.0
        %3180 = vmatprep.subr.mxu0 0.0
        %3181 = vmatpush1.msra.mxu0 0.0
        %3182 = vmatprep.subr.mxu0 %v3150
        %3183 = vmatpush1.msra.mxu0 %v3147
        %3184 = vmatprep.subr.mxu0 0.0
        %3185 = vmatpush2.msra.mxu0 0.0
        %3186 = vmatprep.subr.mxu0 0.0
        %3187 = vmatpush2.msra.mxu0 0.0
        %3188 = vmatprep.subr.mxu0 0.0
        %3189 = vmatpush2.msra.mxu0 0.0
        %3190 = vmatprep.subr.mxu0 0.0
        %3191 = vmatpush2.msra.mxu0 0.0
        %3192 = vmatprep.subr.mxu0 0.0
        %3193 = vmatpush2.msra.mxu0 0.0
        %3194 = vmatprep.subr.mxu0 0.0
        %3195 = vmatpush2.msra.mxu0 0.0
        %3196 = vmatprep.subr.mxu0 0.0
        %3197 = vmatpush2.msra.mxu0 0.0
        %3198 = vmatprep.subr.mxu0 0.0
        %3199 = vmatpush2.msra.mxu0 0.0
        %3200 = vmatprep.subr.mxu0 0.0
        %3201 = vmatpush2.msra.mxu0 0.0
        %3202 = vmatprep.subr.mxu0 0.0
        %3203 = vmatpush2.msra.mxu0 0.0
        %3204 = vmatprep.subr.mxu0 0.0
        %3205 = vmatpush2.msra.mxu0 0.0
        %3206 = vmatprep.subr.mxu0 0.0
        %3207 = vmatpush2.msra.mxu0 0.0
        %3208 = vmatprep.subr.mxu0 0.0
        %3209 = vmatpush2.msra.mxu0 0.0
        %3210 = vmatprep.subr.mxu0 0.0
        %3211 = vmatpush2.msra.mxu0 0.0
        %3212 = vmatprep.subr.mxu0 0.0
        %3213 = vmatpush2.msra.mxu0 0.0
        %3214 = vmatprep.subr.mxu0 0.0
        %3215 = vmatpush2.msra.mxu0 0.0
        %3216 = vmatprep.mubr.f32.mxu0 0.0
        %3217 = vmatmul.mubr.f32.gmra.mxu0 %v3144
        %v3218 = vpop.f32.mrf.mxu0
        %v3219 = vadd.f32 0.0, %v3218
        %v3220 = vpop.f32.mrf.mxu0
        %v3221 = vadd.f32 0.0, %v3220
        %3222 = vdwg.mxu0
        %v3223 = vadd.f32 %v3131, %v3219
        %v3224 = vadd.f32 %v3132, %v3221
        %s3225 = scalar_lea.vmem %s7, 4
        %v3226 = vld [vmem:[%s3225] sm:$0x1]
        %v3228 = vsel %vm2879, %v3226, 0
        %v3231 = vsel %vm2883, %v2858, 0
        %v3234 = vsel %vm2883, %v2859, 0
        %3236 = vmatprep.subr.mxu0 0.0
        %3237 = vmatpush1.msra.mxu0 0.0
        %3238 = vmatprep.subr.mxu0 0.0
        %3239 = vmatpush1.msra.mxu0 0.0
        %3240 = vmatprep.subr.mxu0 0.0
        %3241 = vmatpush1.msra.mxu0 0.0
        %3242 = vmatprep.subr.mxu0 0.0
        %3243 = vmatpush1.msra.mxu0 0.0
        %3244 = vmatprep.subr.mxu0 0.0
        %3245 = vmatpush1.msra.mxu0 0.0
        %3246 = vmatprep.subr.mxu0 0.0
        %3247 = vmatpush1.msra.mxu0 0.0
        %3248 = vmatprep.subr.mxu0 0.0
        %3249 = vmatpush1.msra.mxu0 0.0
        %3250 = vmatprep.subr.mxu0 0.0
        %3251 = vmatpush1.msra.mxu0 0.0
        %3252 = vmatprep.subr.mxu0 0.0
        %3253 = vmatpush1.msra.mxu0 0.0
        %3254 = vmatprep.subr.mxu0 0.0
        %3255 = vmatpush1.msra.mxu0 0.0
        %3256 = vmatprep.subr.mxu0 0.0
        %3257 = vmatpush1.msra.mxu0 0.0
        %3258 = vmatprep.subr.mxu0 0.0
        %3259 = vmatpush1.msra.mxu0 0.0
        %3260 = vmatprep.subr.mxu0 0.0
        %3261 = vmatpush1.msra.mxu0 0.0
        %3262 = vmatprep.subr.mxu0 0.0
        %3263 = vmatpush1.msra.mxu0 0.0
        %3264 = vmatprep.subr.mxu0 0.0
        %3265 = vmatpush1.msra.mxu0 0.0
        %3266 = vmatprep.subr.mxu0 %v3234
        %3267 = vmatpush1.msra.mxu0 %v3231
        %3268 = vmatprep.subr.mxu0 0.0
        %3269 = vmatpush2.msra.mxu0 0.0
        %3270 = vmatprep.subr.mxu0 0.0
        %3271 = vmatpush2.msra.mxu0 0.0
        %3272 = vmatprep.subr.mxu0 0.0
        %3273 = vmatpush2.msra.mxu0 0.0
        %3274 = vmatprep.subr.mxu0 0.0
        %3275 = vmatpush2.msra.mxu0 0.0
        %3276 = vmatprep.subr.mxu0 0.0
        %3277 = vmatpush2.msra.mxu0 0.0
        %3278 = vmatprep.subr.mxu0 0.0
        %3279 = vmatpush2.msra.mxu0 0.0
        %3280 = vmatprep.subr.mxu0 0.0
        %3281 = vmatpush2.msra.mxu0 0.0
        %3282 = vmatprep.subr.mxu0 0.0
        %3283 = vmatpush2.msra.mxu0 0.0
        %3284 = vmatprep.subr.mxu0 0.0
        %3285 = vmatpush2.msra.mxu0 0.0
        %3286 = vmatprep.subr.mxu0 0.0
        %3287 = vmatpush2.msra.mxu0 0.0
        %3288 = vmatprep.subr.mxu0 0.0
        %3289 = vmatpush2.msra.mxu0 0.0
        %3290 = vmatprep.subr.mxu0 0.0
        %3291 = vmatpush2.msra.mxu0 0.0
        %3292 = vmatprep.subr.mxu0 0.0
        %3293 = vmatpush2.msra.mxu0 0.0
        %3294 = vmatprep.subr.mxu0 0.0
        %3295 = vmatpush2.msra.mxu0 0.0
        %3296 = vmatprep.subr.mxu0 0.0
        %3297 = vmatpush2.msra.mxu0 0.0
        %3298 = vmatprep.subr.mxu0 0.0
        %3299 = vmatpush2.msra.mxu0 0.0
        %3300 = vmatprep.mubr.f32.mxu0 0.0
        %3301 = vmatmul.mubr.f32.gmra.mxu0 %v3228
        %v3302 = vpop.f32.mrf.mxu0
        %v3303 = vadd.f32 0.0, %v3302
        %v3304 = vpop.f32.mrf.mxu0
        %v3305 = vadd.f32 0.0, %v3304
        %3306 = vdwg.mxu0
        %v3307 = vadd.f32 %v3223, %v3303
        %v3308 = vadd.f32 %v3224, %v3305
        %3309 = vrot.lane.b32.xlu0 %v2858, 127
        %v3310 = vpop.permute.xlu0 %3309
        %3311 = vrot.lane.b32.xlu0 %v2859, 127
        %v3312 = vpop.permute.xlu0 %3311
        %v3313 = vsel %vm1156, %v3310, %v3312
        %v3314 = vsel %vm1156, %v3312, %v3310
        %v3315 = vsel %vm1167, %v3313, 0.0
        %v3316 = vsel %vm1168, %v3314, 0.0
        %s3317 = scalar_lea.vmem %s7, 5
        %v3318 = vld [vmem:[%s3317] sm:$0x1]
        %v3320 = vsel %vm2879, %v3318, 0
        %v3323 = vsel %vm2883, %v3315, 0
        %v3326 = vsel %vm2883, %v3316, 0
        %3328 = vmatprep.subr.mxu0 0.0
        %3329 = vmatpush1.msra.mxu0 0.0
        %3330 = vmatprep.subr.mxu0 0.0
        %3331 = vmatpush1.msra.mxu0 0.0
        %3332 = vmatprep.subr.mxu0 0.0
        %3333 = vmatpush1.msra.mxu0 0.0
        %3334 = vmatprep.subr.mxu0 0.0
        %3335 = vmatpush1.msra.mxu0 0.0
        %3336 = vmatprep.subr.mxu0 0.0
        %3337 = vmatpush1.msra.mxu0 0.0
        %3338 = vmatprep.subr.mxu0 0.0
        %3339 = vmatpush1.msra.mxu0 0.0
        %3340 = vmatprep.subr.mxu0 0.0
        %3341 = vmatpush1.msra.mxu0 0.0
        %3342 = vmatprep.subr.mxu0 0.0
        %3343 = vmatpush1.msra.mxu0 0.0
        %3344 = vmatprep.subr.mxu0 0.0
        %3345 = vmatpush1.msra.mxu0 0.0
        %3346 = vmatprep.subr.mxu0 0.0
        %3347 = vmatpush1.msra.mxu0 0.0
        %3348 = vmatprep.subr.mxu0 0.0
        %3349 = vmatpush1.msra.mxu0 0.0
        %3350 = vmatprep.subr.mxu0 0.0
        %3351 = vmatpush1.msra.mxu0 0.0
        %3352 = vmatprep.subr.mxu0 0.0
        %3353 = vmatpush1.msra.mxu0 0.0
        %3354 = vmatprep.subr.mxu0 0.0
        %3355 = vmatpush1.msra.mxu0 0.0
        %3356 = vmatprep.subr.mxu0 0.0
        %3357 = vmatpush1.msra.mxu0 0.0
        %3358 = vmatprep.subr.mxu0 %v3326
        %3359 = vmatpush1.msra.mxu0 %v3323
        %3360 = vmatprep.subr.mxu0 0.0
        %3361 = vmatpush2.msra.mxu0 0.0
        %3362 = vmatprep.subr.mxu0 0.0
        %3363 = vmatpush2.msra.mxu0 0.0
        %3364 = vmatprep.subr.mxu0 0.0
        %3365 = vmatpush2.msra.mxu0 0.0
        %3366 = vmatprep.subr.mxu0 0.0
        %3367 = vmatpush2.msra.mxu0 0.0
        %3368 = vmatprep.subr.mxu0 0.0
        %3369 = vmatpush2.msra.mxu0 0.0
        %3370 = vmatprep.subr.mxu0 0.0
        %3371 = vmatpush2.msra.mxu0 0.0
        %3372 = vmatprep.subr.mxu0 0.0
        %3373 = vmatpush2.msra.mxu0 0.0
        %3374 = vmatprep.subr.mxu0 0.0
        %3375 = vmatpush2.msra.mxu0 0.0
        %3376 = vmatprep.subr.mxu0 0.0
        %3377 = vmatpush2.msra.mxu0 0.0
        %3378 = vmatprep.subr.mxu0 0.0
        %3379 = vmatpush2.msra.mxu0 0.0
        %3380 = vmatprep.subr.mxu0 0.0
        %3381 = vmatpush2.msra.mxu0 0.0
        %3382 = vmatprep.subr.mxu0 0.0
        %3383 = vmatpush2.msra.mxu0 0.0
        %3384 = vmatprep.subr.mxu0 0.0
        %3385 = vmatpush2.msra.mxu0 0.0
        %3386 = vmatprep.subr.mxu0 0.0
        %3387 = vmatpush2.msra.mxu0 0.0
        %3388 = vmatprep.subr.mxu0 0.0
        %3389 = vmatpush2.msra.mxu0 0.0
        %3390 = vmatprep.subr.mxu0 0.0
        %3391 = vmatpush2.msra.mxu0 0.0
        %3392 = vmatprep.mubr.f32.mxu0 0.0
        %3393 = vmatmul.mubr.f32.gmra.mxu0 %v3320
        %v3394 = vpop.f32.mrf.mxu0
        %v3395 = vadd.f32 0.0, %v3394
        %v3396 = vpop.f32.mrf.mxu0
        %v3397 = vadd.f32 0.0, %v3396
        %3398 = vdwg.mxu0
        %v3399 = vadd.f32 %v3307, %v3395
        %v3400 = vadd.f32 %v3308, %v3397
        %3401 = vrot.lane.b32.xlu0 %v2858, 113
        %v3402 = vpop.permute.xlu0 %3401
        %3403 = vrot.lane.b32.xlu0 %v2859, 113
        %v3404 = vpop.permute.xlu0 %3403
        %v3405 = vsel %vm1279, %v3402, %v3404
        %v3406 = vsel %vm1279, %v3404, %v3402
        %v3407 = vsel %vm1290, %v3405, 0.0
        %v3408 = vsel %vm1291, %v3406, 0.0
        %s3409 = scalar_lea.vmem %s7, 6
        %v3410 = vld [vmem:[%s3409] sm:$0x1]
        %v3412 = vsel %vm2879, %v3410, 0
        %v3415 = vsel %vm2883, %v3407, 0
        %v3418 = vsel %vm2883, %v3408, 0
        %3420 = vmatprep.subr.mxu0 0.0
        %3421 = vmatpush1.msra.mxu0 0.0
        %3422 = vmatprep.subr.mxu0 0.0
        %3423 = vmatpush1.msra.mxu0 0.0
        %3424 = vmatprep.subr.mxu0 0.0
        %3425 = vmatpush1.msra.mxu0 0.0
        %3426 = vmatprep.subr.mxu0 0.0
        %3427 = vmatpush1.msra.mxu0 0.0
        %3428 = vmatprep.subr.mxu0 0.0
        %3429 = vmatpush1.msra.mxu0 0.0
        %3430 = vmatprep.subr.mxu0 0.0
        %3431 = vmatpush1.msra.mxu0 0.0
        %3432 = vmatprep.subr.mxu0 0.0
        %3433 = vmatpush1.msra.mxu0 0.0
        %3434 = vmatprep.subr.mxu0 0.0
        %3435 = vmatpush1.msra.mxu0 0.0
        %3436 = vmatprep.subr.mxu0 0.0
        %3437 = vmatpush1.msra.mxu0 0.0
        %3438 = vmatprep.subr.mxu0 0.0
        %3439 = vmatpush1.msra.mxu0 0.0
        %3440 = vmatprep.subr.mxu0 0.0
        %3441 = vmatpush1.msra.mxu0 0.0
        %3442 = vmatprep.subr.mxu0 0.0
        %3443 = vmatpush1.msra.mxu0 0.0
        %3444 = vmatprep.subr.mxu0 0.0
        %3445 = vmatpush1.msra.mxu0 0.0
        %3446 = vmatprep.subr.mxu0 0.0
        %3447 = vmatpush1.msra.mxu0 0.0
        %3448 = vmatprep.subr.mxu0 0.0
        %3449 = vmatpush1.msra.mxu0 0.0
        %3450 = vmatprep.subr.mxu0 %v3418
        %3451 = vmatpush1.msra.mxu0 %v3415
        %3452 = vmatprep.subr.mxu0 0.0
        %3453 = vmatpush2.msra.mxu0 0.0
        %3454 = vmatprep.subr.mxu0 0.0
        %3455 = vmatpush2.msra.mxu0 0.0
        %3456 = vmatprep.subr.mxu0 0.0
        %3457 = vmatpush2.msra.mxu0 0.0
        %3458 = vmatprep.subr.mxu0 0.0
        %3459 = vmatpush2.msra.mxu0 0.0
        %3460 = vmatprep.subr.mxu0 0.0
        %3461 = vmatpush2.msra.mxu0 0.0
        %3462 = vmatprep.subr.mxu0 0.0
        %3463 = vmatpush2.msra.mxu0 0.0
        %3464 = vmatprep.subr.mxu0 0.0
        %3465 = vmatpush2.msra.mxu0 0.0
        %3466 = vmatprep.subr.mxu0 0.0
        %3467 = vmatpush2.msra.mxu0 0.0
        %3468 = vmatprep.subr.mxu0 0.0
        %3469 = vmatpush2.msra.mxu0 0.0
        %3470 = vmatprep.subr.mxu0 0.0
        %3471 = vmatpush2.msra.mxu0 0.0
        %3472 = vmatprep.subr.mxu0 0.0
        %3473 = vmatpush2.msra.mxu0 0.0
        %3474 = vmatprep.subr.mxu0 0.0
        %3475 = vmatpush2.msra.mxu0 0.0
        %3476 = vmatprep.subr.mxu0 0.0
        %3477 = vmatpush2.msra.mxu0 0.0
        %3478 = vmatprep.subr.mxu0 0.0
        %3479 = vmatpush2.msra.mxu0 0.0
        %3480 = vmatprep.subr.mxu0 0.0
        %3481 = vmatpush2.msra.mxu0 0.0
        %3482 = vmatprep.subr.mxu0 0.0
        %3483 = vmatpush2.msra.mxu0 0.0
        %3484 = vmatprep.mubr.f32.mxu0 0.0
        %3485 = vmatmul.mubr.f32.gmra.mxu0 %v3412
        %v3486 = vpop.f32.mrf.mxu0
        %v3487 = vadd.f32 0.0, %v3486
        %v3488 = vpop.f32.mrf.mxu0
        %v3489 = vadd.f32 0.0, %v3488
        %3490 = vdwg.mxu0
        %v3491 = vadd.f32 %v3399, %v3487
        %v3492 = vadd.f32 %v3400, %v3489
        %3493 = vrot.lane.b32.xlu0 %v2858, 112
        %v3494 = vpop.permute.xlu0 %3493
        %3495 = vrot.lane.b32.xlu0 %v2859, 112
        %v3496 = vpop.permute.xlu0 %3495
        %v3497 = vsel %vm1402, %v3494, %v3496
        %v3498 = vsel %vm1402, %v3496, %v3494
        %v3499 = vsel %vm1413, %v3497, 0.0
        %v3500 = vsel %vm1414, %v3498, 0.0
        %s3501 = scalar_lea.vmem %s7, 7
        %v3502 = vld [vmem:[%s3501] sm:$0x1]
        %v3504 = vsel %vm2879, %v3502, 0
        %v3507 = vsel %vm2883, %v3499, 0
        %v3510 = vsel %vm2883, %v3500, 0
        %3512 = vmatprep.subr.mxu0 0.0
        %3513 = vmatpush1.msra.mxu0 0.0
        %3514 = vmatprep.subr.mxu0 0.0
        %3515 = vmatpush1.msra.mxu0 0.0
        %3516 = vmatprep.subr.mxu0 0.0
        %3517 = vmatpush1.msra.mxu0 0.0
        %3518 = vmatprep.subr.mxu0 0.0
        %3519 = vmatpush1.msra.mxu0 0.0
        %3520 = vmatprep.subr.mxu0 0.0
        %3521 = vmatpush1.msra.mxu0 0.0
        %3522 = vmatprep.subr.mxu0 0.0
        %3523 = vmatpush1.msra.mxu0 0.0
        %3524 = vmatprep.subr.mxu0 0.0
        %3525 = vmatpush1.msra.mxu0 0.0
        %3526 = vmatprep.subr.mxu0 0.0
        %3527 = vmatpush1.msra.mxu0 0.0
        %3528 = vmatprep.subr.mxu0 0.0
        %3529 = vmatpush1.msra.mxu0 0.0
        %3530 = vmatprep.subr.mxu0 0.0
        %3531 = vmatpush1.msra.mxu0 0.0
        %3532 = vmatprep.subr.mxu0 0.0
        %3533 = vmatpush1.msra.mxu0 0.0
        %3534 = vmatprep.subr.mxu0 0.0
        %3535 = vmatpush1.msra.mxu0 0.0
        %3536 = vmatprep.subr.mxu0 0.0
        %3537 = vmatpush1.msra.mxu0 0.0
        %3538 = vmatprep.subr.mxu0 0.0
        %3539 = vmatpush1.msra.mxu0 0.0
        %3540 = vmatprep.subr.mxu0 0.0
        %3541 = vmatpush1.msra.mxu0 0.0
        %3542 = vmatprep.subr.mxu0 %v3510
        %3543 = vmatpush1.msra.mxu0 %v3507
        %3544 = vmatprep.subr.mxu0 0.0
        %3545 = vmatpush2.msra.mxu0 0.0
        %3546 = vmatprep.subr.mxu0 0.0
        %3547 = vmatpush2.msra.mxu0 0.0
        %3548 = vmatprep.subr.mxu0 0.0
        %3549 = vmatpush2.msra.mxu0 0.0
        %3550 = vmatprep.subr.mxu0 0.0
        %3551 = vmatpush2.msra.mxu0 0.0
        %3552 = vmatprep.subr.mxu0 0.0
        %3553 = vmatpush2.msra.mxu0 0.0
        %3554 = vmatprep.subr.mxu0 0.0
        %3555 = vmatpush2.msra.mxu0 0.0
        %3556 = vmatprep.subr.mxu0 0.0
        %3557 = vmatpush2.msra.mxu0 0.0
        %3558 = vmatprep.subr.mxu0 0.0
        %3559 = vmatpush2.msra.mxu0 0.0
        %3560 = vmatprep.subr.mxu0 0.0
        %3561 = vmatpush2.msra.mxu0 0.0
        %3562 = vmatprep.subr.mxu0 0.0
        %3563 = vmatpush2.msra.mxu0 0.0
        %3564 = vmatprep.subr.mxu0 0.0
        %3565 = vmatpush2.msra.mxu0 0.0
        %3566 = vmatprep.subr.mxu0 0.0
        %3567 = vmatpush2.msra.mxu0 0.0
        %3568 = vmatprep.subr.mxu0 0.0
        %3569 = vmatpush2.msra.mxu0 0.0
        %3570 = vmatprep.subr.mxu0 0.0
        %3571 = vmatpush2.msra.mxu0 0.0
        %3572 = vmatprep.subr.mxu0 0.0
        %3573 = vmatpush2.msra.mxu0 0.0
        %3574 = vmatprep.subr.mxu0 0.0
        %3575 = vmatpush2.msra.mxu0 0.0
        %3576 = vmatprep.mubr.f32.mxu0 0.0
        %3577 = vmatmul.mubr.f32.gmra.mxu0 %v3504
        %v3578 = vpop.f32.mrf.mxu0
        %v3579 = vadd.f32 0.0, %v3578
        %v3580 = vpop.f32.mrf.mxu0
        %v3581 = vadd.f32 0.0, %v3580
        %3582 = vdwg.mxu0
        %v3583 = vadd.f32 %v3491, %v3579
        %v3584 = vadd.f32 %v3492, %v3581
        %3585 = vrot.lane.b32.xlu0 %v2858, 111
        %v3586 = vpop.permute.xlu0 %3585
        %3587 = vrot.lane.b32.xlu0 %v2859, 111
        %v3588 = vpop.permute.xlu0 %3587
        %v3589 = vsel %vm1525, %v3586, %v3588
        %v3590 = vsel %vm1525, %v3588, %v3586
        %v3591 = vsel %vm1536, %v3589, 0.0
        %v3592 = vsel %vm1537, %v3590, 0.0
        %s3593 = scalar_lea.vmem %s7, 8
        %v3594 = vld [vmem:[%s3593] sm:$0x1]
        %v3596 = vsel %vm2879, %v3594, 0
        %v3599 = vsel %vm2883, %v3591, 0
        %v3602 = vsel %vm2883, %v3592, 0
        %3604 = vmatprep.subr.mxu0 0.0
        %3605 = vmatpush1.msra.mxu0 0.0
        %3606 = vmatprep.subr.mxu0 0.0
        %3607 = vmatpush1.msra.mxu0 0.0
        %3608 = vmatprep.subr.mxu0 0.0
        %3609 = vmatpush1.msra.mxu0 0.0
        %3610 = vmatprep.subr.mxu0 0.0
        %3611 = vmatpush1.msra.mxu0 0.0
        %3612 = vmatprep.subr.mxu0 0.0
        %3613 = vmatpush1.msra.mxu0 0.0
        %3614 = vmatprep.subr.mxu0 0.0
        %3615 = vmatpush1.msra.mxu0 0.0
        %3616 = vmatprep.subr.mxu0 0.0
        %3617 = vmatpush1.msra.mxu0 0.0
        %3618 = vmatprep.subr.mxu0 0.0
        %3619 = vmatpush1.msra.mxu0 0.0
        %3620 = vmatprep.subr.mxu0 0.0
        %3621 = vmatpush1.msra.mxu0 0.0
        %3622 = vmatprep.subr.mxu0 0.0
        %3623 = vmatpush1.msra.mxu0 0.0
        %3624 = vmatprep.subr.mxu0 0.0
        %3625 = vmatpush1.msra.mxu0 0.0
        %3626 = vmatprep.subr.mxu0 0.0
        %3627 = vmatpush1.msra.mxu0 0.0
        %3628 = vmatprep.subr.mxu0 0.0
        %3629 = vmatpush1.msra.mxu0 0.0
        %3630 = vmatprep.subr.mxu0 0.0
        %3631 = vmatpush1.msra.mxu0 0.0
        %3632 = vmatprep.subr.mxu0 0.0
        %3633 = vmatpush1.msra.mxu0 0.0
        %3634 = vmatprep.subr.mxu0 %v3602
        %3635 = vmatpush1.msra.mxu0 %v3599
        %3636 = vmatprep.subr.mxu0 0.0
        %3637 = vmatpush2.msra.mxu0 0.0
        %3638 = vmatprep.subr.mxu0 0.0
        %3639 = vmatpush2.msra.mxu0 0.0
        %3640 = vmatprep.subr.mxu0 0.0
        %3641 = vmatpush2.msra.mxu0 0.0
        %3642 = vmatprep.subr.mxu0 0.0
        %3643 = vmatpush2.msra.mxu0 0.0
        %3644 = vmatprep.subr.mxu0 0.0
        %3645 = vmatpush2.msra.mxu0 0.0
        %3646 = vmatprep.subr.mxu0 0.0
        %3647 = vmatpush2.msra.mxu0 0.0
        %3648 = vmatprep.subr.mxu0 0.0
        %3649 = vmatpush2.msra.mxu0 0.0
        %3650 = vmatprep.subr.mxu0 0.0
        %3651 = vmatpush2.msra.mxu0 0.0
        %3652 = vmatprep.subr.mxu0 0.0
        %3653 = vmatpush2.msra.mxu0 0.0
        %3654 = vmatprep.subr.mxu0 0.0
        %3655 = vmatpush2.msra.mxu0 0.0
        %3656 = vmatprep.subr.mxu0 0.0
        %3657 = vmatpush2.msra.mxu0 0.0
        %3658 = vmatprep.subr.mxu0 0.0
        %3659 = vmatpush2.msra.mxu0 0.0
        %3660 = vmatprep.subr.mxu0 0.0
        %3661 = vmatpush2.msra.mxu0 0.0
        %3662 = vmatprep.subr.mxu0 0.0
        %3663 = vmatpush2.msra.mxu0 0.0
        %3664 = vmatprep.subr.mxu0 0.0
        %3665 = vmatpush2.msra.mxu0 0.0
        %3666 = vmatprep.subr.mxu0 0.0
        %3667 = vmatpush2.msra.mxu0 0.0
        %3668 = vmatprep.mubr.f32.mxu0 0.0
        %3669 = vmatmul.mubr.f32.gmra.mxu0 %v3596
        %v3670 = vpop.f32.mrf.mxu0
        %v3671 = vadd.f32 0.0, %v3670
        %v3672 = vpop.f32.mrf.mxu0
        %v3673 = vadd.f32 0.0, %v3672
        %3674 = vdwg.mxu0
        %v3675 = vadd.f32 %v3583, %v3671
        %v3676 = vadd.f32 %v3584, %v3673
        %v3677 = vxor.u32 %v3675, 2147483648
        %v3678 = vxor.u32 %v3676, 2147483648
        %v3679 = vmul.f32 %v3677, 1.442695
        %v3680 = vpow.pop %v3679
        %v3681 = vmul.f32 %v3678, 1.442695
        %v3682 = vpow.pop %v3681
        %v3683 = vadd.f32 %v3680, 1.0
        %v3684 = vadd.f32 %v3682, 1.0
        %v3685 = vrcp.pop %v3683
        %v3686 = vmul.f32 1.0, %v3685
        %v3687 = vrcp.pop %v3684
        %v3688 = vmul.f32 1.0, %v3687
        %v3689 = vlaneseq
        %v3690 = vshrl.u32 %v3689, 7
        %v3691 = vsub.s32 0, %v3690
        %v3692 = vrot.slane %v3686, %v3691
        %v3693 = vlaneseq
        %v3694 = vshrl.u32 %v3693, 7
        %v3695 = vsub.s32 0, %v3694
        %v3696 = vrot.slane %v3688, %v3695
        %v3697 = vmul.f32 %v2823, %v3692
        %v3698 = vmul.f32 %v2824, %v3696
        %v3699 = vmul.f32 %v2825, %v3692
        %v3700 = vmul.f32 %v2826, %v3696
        %v3701 = vld [vmem:[%s4] sm:$0xf]
        %v3702 = vld [vmem:[%s4 + $0x4] sm:$0xf]
        %v3705 = vunpack.c.l.b16 %v3701
        %v3706 = vunpack.c.l.b16 %v3702
        %v3707 = vpack.c.b16 %v3706, %v3705
        %v3709 = vsel %vm679, %v3707, 0
        %3711 = vmatprep.subr.bf16.mxu0 0
        %3712 = vmatpush1.bf16.msra.mxu0 0
        %3713 = vmatprep.subr.bf16.mxu0 0
        %3714 = vmatpush1.bf16.msra.mxu0 0
        %3715 = vmatprep.subr.bf16.mxu0 0
        %3716 = vmatpush1.bf16.msra.mxu0 0
        %3717 = vmatprep.subr.bf16.mxu0 0
        %3718 = vmatpush1.bf16.msra.mxu0 0
        %3719 = vmatprep.subr.bf16.mxu0 0
        %3720 = vmatpush1.bf16.msra.mxu0 0
        %3721 = vmatprep.subr.bf16.mxu0 0
        %3722 = vmatpush1.bf16.msra.mxu0 0
        %3723 = vmatprep.subr.bf16.mxu0 %v1062
        %3724 = vmatpush1.bf16.msra.mxu0 %v1061
        %3725 = vmatprep.subr.bf16.mxu0 %v1060
        %3726 = vmatpush1.bf16.msra.mxu0 %v1059
        %3727 = vmatprep.subr.bf16.mxu0 0
        %3728 = vmatpush2.bf16.msra.mxu0 0
        %3729 = vmatprep.subr.bf16.mxu0 0
        %3730 = vmatpush2.bf16.msra.mxu0 0
        %3731 = vmatprep.subr.bf16.mxu0 0
        %3732 = vmatpush2.bf16.msra.mxu0 0
        %3733 = vmatprep.subr.bf16.mxu0 0
        %3734 = vmatpush2.bf16.msra.mxu0 0
        %3735 = vmatprep.subr.bf16.mxu0 0
        %3736 = vmatpush2.bf16.msra.mxu0 0
        %3737 = vmatprep.subr.bf16.mxu0 0
        %3738 = vmatpush2.bf16.msra.mxu0 0
        %3739 = vmatprep.subr.bf16.mxu0 0
        %3740 = vmatpush2.bf16.msra.mxu0 0
        %3741 = vmatprep.subr.bf16.mxu0 0
        %3742 = vmatpush2.bf16.msra.mxu0 0
        %3743 = vmatprep.mubr.bf16.mxu0 0
        %3744 = vmatmul.mubr.bf16.gmra.mxu0 %v3709
        %v3745 = vpop.f32.mrf.mxu0
        %v3746 = vadd.f32 0.0, %v3745
        %v3747 = vpop.f32.mrf.mxu0
        %v3748 = vadd.f32 0.0, %v3747
        %v3749 = vpop.f32.mrf.mxu0
        %v3750 = vadd.f32 0.0, %v3749
        %v3751 = vpop.f32.mrf.mxu0
        %v3752 = vadd.f32 0.0, %v3751
        %3753 = vdwg.mxu0
        %v3754 = vadd.f32 %v3746, %v3748
        %3755 = vadd.xlane.f32.xlu0 %v3754
        %v3756 = vpop.xlane.xlu0 %3755
        %v3757 = vadd.f32 %v3750, %v3752
        %3758 = vadd.xlane.f32.xlu0 %v3757
        %v3759 = vpop.xlane.xlu0 %3758
        %v3760 = vmul.f32 %v3756, %v2443
        %v3761 = vmul.f32 %v3759, %v2443
        %v3762 = vsub.f32 %v3746, %v3760
        %v3763 = vsub.f32 %v3748, %v3760
        %v3764 = vsub.f32 %v3750, %v3761
        %v3765 = vsub.f32 %v3752, %v3761
        %v3766 = vmul.f32 %v3762, %v3762
        %v3767 = vmul.f32 %v3763, %v3763
        %v3768 = vmul.f32 %v3764, %v3764
        %v3769 = vmul.f32 %v3765, %v3765
        %v3770 = vadd.f32 %v3766, %v3767
        %3771 = vadd.xlane.f32.xlu0 %v3770
        %v3772 = vpop.xlane.xlu0 %3771
        %v3773 = vadd.f32 %v3768, %v3769
        %3774 = vadd.xlane.f32.xlu0 %v3773
        %v3775 = vpop.xlane.xlu0 %3774
        %v3776 = vmul.f32 %v3772, %v2443
        %v3777 = vmul.f32 %v3775, %v2443
        %v3778 = vadd.f32 %v3776, 1e-05
        %v3779 = vadd.f32 %v3777, 1e-05
        %v3780 = vrsqrt.pop %v3778
        %v3781 = vrsqrt.pop %v3779
        %v3782 = vmul.f32 %v3762, %v3780
        %v3783 = vmul.f32 %v3763, %v3780
        %v3784 = vmul.f32 %v3764, %v3781
        %v3785 = vmul.f32 %v3765, %v3781
        %v3786 = vmax.f32 %v3782, 0.0
        %v3787 = vmax.f32 %v3783, 0.0
        %v3788 = vmax.f32 %v3784, 0.0
        %v3789 = vmax.f32 %v3785, 0.0
        %v3790 = vadd.f32 %v3697, %v3786
        %v3791 = vadd.f32 %v3698, %v3787
        %v3792 = vadd.f32 %v3699, %v3788
        %v3793 = vadd.f32 %v3700, %v3789
        %3794 = vst [vmem:[%s367] sm:$0xff] %v3790
        %3795 = vst [vmem:[%s367 + $0x8] sm:$0xff] %v3791
        %3796 = vst [vmem:[%s367 + $0x10] sm:$0xff] %v3792
        %3797 = vst [vmem:[%s367 + $0x18] sm:$0xff] %v3793
        %s3798 = sand.u32 %s208, 1
        %s3799 = scalar_lea.sflag [#allocation4], %s3798
        %s3800 = sand.u32 %s208, 1
        %s3801 = smul.addr %s3800, 32
        %s3802 = scalar_lea.vmem [#allocation10], %s3801
        // Predicated region
        $region69: #{tpu_custom_call.1} parent=51 // pred_check
          %p3803 = pneg %p218
        $region70: #{tpu_custom_call.1} parent=51 // pred_check_branch
          %3805 = sbr.rel (%p3803) target = $region72
        $region71: #{tpu_custom_call.1} parent=51 // pred_region
          %s3807 = ssub.s32 512, 512
          %3808 = vsyncadd %s3799, %s3807
          %s3809 = smul.addr %s27, 4
          %s3810 = smul.addr %s3809, 128
          %s3811 = scalar_lea.hbm %s8, %s3810
          %s3812 = sshll.u32 %s3802, 4
          %s3813 = int_to_ptr.vmem [resolvable:$true] %s3812
          %3818 = dma.vmem_to_hbm [thread:$0]  %s3813, 512, %s3811, %s3799, 256, 256, 16
        $region72: #{tpu_custom_call.1} parent=51 // pred_fallthru
          _
      $region52: #{tpu_custom_call.1} parent=5 // pred_fallthru
        _
      %p3819 = scmp.le.s32.totalorder 2, %s22
      // Predicated region
      $region73: #{tpu_custom_call.1} parent=5 // pred_check
        %p3820 = pneg %p3819
      $region74: #{tpu_custom_call.1} parent=5 // pred_check_branch
        %3822 = sbr.rel (%p3820) target = $region76
      $region75: #{tpu_custom_call.1} parent=5 // pred_region
        %s3823 = ssub.s32 %s22, 2
        // Predicated region
        $region77: #{tpu_custom_call.1} parent=75 // pred_check
          %p3824 = pneg %p224
        $region78: #{tpu_custom_call.1} parent=75 // pred_check_branch
          %3826 = sbr.rel (%p3824) target = $region80
        $region79: #{tpu_custom_call.1} parent=75 // pred_region
          %s3827 = sand.u32 %s209, 1
          %s3828 = scalar_lea.sflag [#allocation4], %s3827
          %s3829 = sand.u32 %s209, 1
          %s3830 = smul.addr %s3829, 32
          %s3831 = scalar_lea.vmem [#allocation10], %s3830
          %3832 = dma.done %s3828, 512
        $region80: #{tpu_custom_call.1} parent=75 // pred_fallthru
          _
      $region76: #{tpu_custom_call.1} parent=5 // pred_fallthru
        _
    $region6: #{tpu_custom_call.1} parent=1 // loop_footer
      %s26 = sadd.s32 1, %s22
    $region7: #{tpu_custom_call.1} parent=1 // loop_footer_branch
      %21 = sbr.rel target = $region3
    $region8: #{tpu_custom_call.1} parent=1 // loop_exit
      _
    %3833 = vsyncpa [#allocation3], 1
    %s3834 = scalar_lea.sflag [#allocation3], 1
    %3835 = vsyncpa %s3834, 1
    %3836 = vsyncpa [#allocation6], 1
    %3837 = vsyncpa [#allocation9], 1
    %3838 = vsyncpa [#allocation4], 1
    %s3839 = scalar_lea.sflag [#allocation4], 1
    %3840 = vsyncpa %s3839, 1

</llo_original>
